<compile_context>
chip_gen: v7x
topology: tpu7x:2x2x1
jax: 0.10.0
libtpu: 0.0.40
codegen_flags: <defaults>
</compile_context>

<pallas_src>
import functools

import jax
import jax.numpy as jnp
from jax import lax
from jax.experimental import pallas as pl
from jax.experimental.pallas import tpu as pltpu

_PREC = lax.Precision.HIGHEST          # explicit: do not rely on global config
_DN_MM = (((1,), (0,)), ((), ()))      # plain (M,K) @ (K,N) — MXU-native


def _quadratic_net2_kernel(x_ref, w1t_ref, w1lt_ref, w2t_ref, w2lt_ref,
                           w1_ref, w1l_ref, y_ref, aw_ref):
    f32 = jnp.float32

    x = x_ref[...]          # (B, D_in)
    w1t = w1t_ref[...]      # (D_in, K1)   K1 = H*D_in
    w1lt = w1lt_ref[...]    # (K1, H)
    w2t = w2t_ref[...]      # (H, K2)      K2 = H*D_out
    w2lt = w2lt_ref[...]    # (K2, D_out)
    w1 = w1_ref[...]        # (K1, D_in)   torch layout, for aWeights
    w1l = w1l_ref[...]      # (H, K1)      torch layout, for aWeights

    # ---- y_pred path: strictly serial 4-matmul chain, all MXU-native ----
    a1 = lax.dot_general(x, w1t, _DN_MM,
                         precision=_PREC, preferred_element_type=f32)     # (B, K1)
    h = lax.dot_general(a1 * a1, w1lt, _DN_MM,
                        precision=_PREC, preferred_element_type=f32)      # (B, H)
    a2 = lax.dot_general(h, w2t, _DN_MM,
                         precision=_PREC, preferred_element_type=f32)     # (B, K2)
    y = lax.dot_general(a2 * a2, w2lt, _DN_MM,
                        precision=_PREC, preferred_element_type=f32)      # (B, D_out)
    y_ref[...] = y.astype(y_ref.dtype)

    # ---- aWeights: aw[q, i*D+j] = sum_k W1L[q,k] * W1[k,i] * W1[k,j] ----
    # P[k, i*D+j] = W1[k,i] * W1[k,j]: lane-broadcast column scale + lane concat,
    # then one MXU matmul.  Output last dim D_in^2 = 256 stays lane-dense.
    D_in = w1.shape[1]
    pieces = [w1 * w1[:, i:i + 1] for i in range(D_in)]      # D_in x (K1, D_in)
    P = jnp.concatenate(pieces, axis=1)                      # (K1, D_in*D_in)
    aw = lax.dot_general(w1l, P, _DN_MM,
                         precision=_PREC, preferred_element_type=f32)     # (H, D_in^2)
    aw_ref[...] = aw.astype(aw_ref.dtype)


@jax.jit
def quadratic_net2_forward(x, w1, w1l, w2, w2l):
    """Fused forward of QuadraticNet2: returns (y_pred, aWeights).

    x    : (..., D_in)        any leading batch dims are folded into ONE launch
    w1   : (H*D_in, D_in)     torch Linear weight layout (out, in)
    w1l  : (H, H*D_in)
    w2   : (H*D_out, H)
    w2l  : (D_out, H*D_out)
    """
    D_in = x.shape[-1]
    lead = x.shape[:-1]
    x2d = x.reshape((-1, D_in))                   # amortize launch over micro-batches
    B = x2d.shape[0]

    K1 = w1.shape[0]
    H = w1l.shape[0]
    K2 = w2.shape[0]
    D_out = w2l.shape[0]

    # One-time transposes OUTSIDE the kernel: chain matmuls become MXU-native
    # (M,K)@(K,N) with zero in-kernel relayouts.
    w1t = w1.T          # (D_in, K1)
    w1lt = w1l.T        # (K1, H)
    w2t = w2.T          # (H, K2)
    w2lt = w2l.T        # (K2, D_out)

    itemsize = jnp.dtype(x.dtype).itemsize
    in_elems = (B * D_in + 2 * K1 * D_in + 2 * H * K1 + K2 * H + D_out * K2)
    out_elems = B * D_out + H * D_in * D_in
    cost = pl.CostEstimate(
        flops=2 * (B * K1 * D_in + B * H * K1 + B * K2 * H + B * D_out * K2
                   + H * K1 * D_in * D_in),
        transcendentals=0,
        bytes_accessed=(in_elems + out_elems) * itemsize,
    )

    vmem = pl.BlockSpec(memory_space=pltpu.MemorySpace.VMEM)
    y2d, aw = pl.pallas_call(
        _quadratic_net2_kernel,
        out_shape=(
            jax.ShapeDtypeStruct((B, D_out), x.dtype),        # y_pred
            jax.ShapeDtypeStruct((H, D_in * D_in), x.dtype),  # aWeights (lane-dense)
        ),
        in_specs=[vmem] * 7,
        out_specs=(vmem, vmem),
        cost_estimate=cost,
    )(x2d, w1t, w1lt, w2t, w2lt, w1, w1l)

    return y2d.reshape(lead + (D_out,)), aw


def quadratic_net2_reference(x, w1, w1l, w2, w2l):
    """Plain-JAX reference mirroring the PyTorch forward, explicit precision."""
    mm = functools.partial(jnp.matmul, precision=_PREC)
    a1 = mm(x, w1.T)
    h = mm(a1 ** 2, w1l.T)
    a2 = mm(h, w2.T)
    y = mm(a2 ** 2, w2l.T)

    H = w1l.shape[0]
    rows = []
    for q in range(H):
        temp = mm(w1.T, jnp.diag(w1l[q, :]))
        temp2 = mm(temp, w1)
        rows.append(temp2.reshape(-1))
    aw = jnp.stack(rows, axis=0)
    return y, aw


if __name__ == "__main__":
    # Small shapes consistent with the module: D_in=16, H=4, D_out=8, batch=8.
    D_in, H, D_out = 16, 4, 8
    batch = 8
    dtype = jnp.float32

    key = jax.random.PRNGKey(0)
    kx, k1, k2, k3, k4 = jax.random.split(key, 5)
    x = jax.random.normal(kx, (batch, D_in), dtype)

    # Weights in torch Linear layout (out_features, in_features), no biases.
    w1 = jax.random.normal(k1, (H * D_in, D_in), dtype) * (0.5 / D_in ** 0.5)
    w1l = jax.random.normal(k2, (H, H * D_in), dtype) * (0.5 / (H * D_in) ** 0.5)
    w2 = jax.random.normal(k3, (H * D_out, H), dtype) * (0.5 / H ** 0.5)
    w2l = jax.random.normal(k4, (D_out, H * D_out), dtype) * (0.5 / (H * D_out) ** 0.5)

    # Single micro-batch.
    y, aw = quadratic_net2_forward(x, w1, w1l, w2, w2l)
    y, aw = jax.block_until_ready((y, aw))

    y_ref, aw_ref = quadratic_net2_reference(x, w1, w1l, w2, w2l)

    assert y.shape == (batch, D_out)
    assert aw.shape == (H, D_in * D_in)
    assert jnp.allclose(y, y_ref, rtol=1e-4, atol=1e-5), "y_pred mismatch vs reference"
    assert jnp.allclose(aw, aw_ref, rtol=1e-4, atol=1e-5), "aWeights mismatch vs reference"

    # Amortized path: 3 stacked micro-batches / timesteps in ONE launch.
    xs = jax.random.normal(kx, (3, batch, D_in), dtype)
    ys, aws = quadratic_net2_forward(xs, w1, w1l, w2, w2l)
    ys, aws = jax.block_until_ready((ys, aws))
    ys_ref, _ = quadratic_net2_reference(xs.reshape(-1, D_in), w1, w1l, w2, w2l)
    assert ys.shape == (3, batch, D_out)
    assert jnp.allclose(ys.reshape(-1, D_out), ys_ref, rtol=1e-4, atol=1e-5), \
        "stacked y_pred mismatch vs reference"
    assert jnp.allclose(aws, aw_ref, rtol=1e-4, atol=1e-5), "stacked aWeights mismatch"

    print("KERNEL_OK")
</pallas_src>

<mosaic_0001>
module attributes {stable_mosaic.version = 11 : i64} {
  func.func @_quadratic_net2_kernel(%arg0: memref<8x16xf32, #tpu.memory_space<vmem>>, %arg1: memref<16x64xf32, #tpu.memory_space<vmem>>, %arg2: memref<64x4xf32, #tpu.memory_space<vmem>>, %arg3: memref<4x32xf32, #tpu.memory_space<vmem>>, %arg4: memref<32x8xf32, #tpu.memory_space<vmem>>, %arg5: memref<64x16xf32, #tpu.memory_space<vmem>>, %arg6: memref<4x64xf32, #tpu.memory_space<vmem>>, %arg7: memref<8x8xf32, #tpu.memory_space<vmem>>, %arg8: memref<4x256xf32, #tpu.memory_space<vmem>>) attributes {dimension_semantics = [], scalar_prefetch = 0 : i64, scratch_operands = 0 : i64, tpu.core_type = #tpu.core_type<tc>} {
    %c0 = arith.constant 0 : index
    %c0_0 = arith.constant 0 : index
    %0 = vector.load %arg0[%c0, %c0_0] : memref<8x16xf32, #tpu.memory_space<vmem>>, vector<8x16xf32>
    %c0_1 = arith.constant 0 : index
    %c0_2 = arith.constant 0 : index
    %1 = vector.load %arg1[%c0_1, %c0_2] : memref<16x64xf32, #tpu.memory_space<vmem>>, vector<16x64xf32>
    %c0_3 = arith.constant 0 : index
    %c0_4 = arith.constant 0 : index
    %2 = vector.load %arg2[%c0_3, %c0_4] : memref<64x4xf32, #tpu.memory_space<vmem>>, vector<64x4xf32>
    %c0_5 = arith.constant 0 : index
    %c0_6 = arith.constant 0 : index
    %3 = vector.load %arg3[%c0_5, %c0_6] : memref<4x32xf32, #tpu.memory_space<vmem>>, vector<4x32xf32>
    %c0_7 = arith.constant 0 : index
    %c0_8 = arith.constant 0 : index
    %4 = vector.load %arg4[%c0_7, %c0_8] : memref<32x8xf32, #tpu.memory_space<vmem>>, vector<32x8xf32>
    %c0_9 = arith.constant 0 : index
    %c0_10 = arith.constant 0 : index
    %5 = vector.load %arg5[%c0_9, %c0_10] : memref<64x16xf32, #tpu.memory_space<vmem>>, vector<64x16xf32>
    %c0_11 = arith.constant 0 : index
    %c0_12 = arith.constant 0 : index
    %6 = vector.load %arg6[%c0_11, %c0_12] : memref<4x64xf32, #tpu.memory_space<vmem>>, vector<4x64xf32>
    %cst = arith.constant dense<0.000000e+00> : vector<8x64xf32>
    %7 = tpu.matmul %0, %1, %cst {dimension_numbers = #tpu.dot_dimension_numbers<[1], [0], [0], [1], [0, 0, 1, 1], [], []>, precision = #tpu.contract_precision<fp32>} : vector<8x16xf32>, vector<16x64xf32>, vector<8x64xf32> -> vector<8x64xf32>
    %8 = arith.mulf %7, %7 : vector<8x64xf32>
    %cst_13 = arith.constant dense<0.000000e+00> : vector<8x4xf32>
    %9 = tpu.matmul %8, %2, %cst_13 {dimension_numbers = #tpu.dot_dimension_numbers<[1], [0], [0], [1], [0, 0, 1, 1], [], []>, precision = #tpu.contract_precision<fp32>} : vector<8x64xf32>, vector<64x4xf32>, vector<8x4xf32> -> vector<8x4xf32>
    %cst_14 = arith.constant dense<0.000000e+00> : vector<8x32xf32>
    %10 = tpu.matmul %9, %3, %cst_14 {dimension_numbers = #tpu.dot_dimension_numbers<[1], [0], [0], [1], [0, 0, 1, 1], [], []>, precision = #tpu.contract_precision<fp32>} : vector<8x4xf32>, vector<4x32xf32>, vector<8x32xf32> -> vector<8x32xf32>
    %11 = arith.mulf %10, %10 : vector<8x32xf32>
    %cst_15 = arith.constant dense<0.000000e+00> : vector<8x8xf32>
    %12 = tpu.matmul %11, %4, %cst_15 {dimension_numbers = #tpu.dot_dimension_numbers<[1], [0], [0], [1], [0, 0, 1, 1], [], []>, precision = #tpu.contract_precision<fp32>} : vector<8x32xf32>, vector<32x8xf32>, vector<8x8xf32> -> vector<8x8xf32>
    %c0_16 = arith.constant 0 : index
    %c0_17 = arith.constant 0 : index
    %13 = vector.load %arg7[%c0_16, %c0_17] : memref<8x8xf32, #tpu.memory_space<vmem>>, vector<8x8xf32>
    tpu.vector_store %arg7[%c0_16, %c0_17], %12 {strides = array<i32>} : memref<8x8xf32, #tpu.memory_space<vmem>>, vector<8x8xf32>,
    %14 = vector.extract_strided_slice %5 {offsets = [0, 0], sizes = [64, 1], strides = [1, 1]} : vector<64x16xf32> to vector<64x1xf32>
    %15 = vector.broadcast %14 : vector<64x1xf32> to vector<64x16xf32>
    %16 = arith.mulf %5, %15 : vector<64x16xf32>
    %17 = vector.extract_strided_slice %5 {offsets = [0, 1], sizes = [64, 1], strides = [1, 1]} : vector<64x16xf32> to vector<64x1xf32>
    %18 = vector.broadcast %17 : vector<64x1xf32> to vector<64x16xf32>
    %19 = arith.mulf %5, %18 : vector<64x16xf32>
    %20 = vector.extract_strided_slice %5 {offsets = [0, 2], sizes = [64, 1], strides = [1, 1]} : vector<64x16xf32> to vector<64x1xf32>
    %21 = vector.broadcast %20 : vector<64x1xf32> to vector<64x16xf32>
    %22 = arith.mulf %5, %21 : vector<64x16xf32>
    %23 = vector.extract_strided_slice %5 {offsets = [0, 3], sizes = [64, 1], strides = [1, 1]} : vector<64x16xf32> to vector<64x1xf32>
    %24 = vector.broadcast %23 : vector<64x1xf32> to vector<64x16xf32>
    %25 = arith.mulf %5, %24 : vector<64x16xf32>
    %26 = vector.extract_strided_slice %5 {offsets = [0, 4], sizes = [64, 1], strides = [1, 1]} : vector<64x16xf32> to vector<64x1xf32>
    %27 = vector.broadcast %26 : vector<64x1xf32> to vector<64x16xf32>
    %28 = arith.mulf %5, %27 : vector<64x16xf32>
    %29 = vector.extract_strided_slice %5 {offsets = [0, 5], sizes = [64, 1], strides = [1, 1]} : vector<64x16xf32> to vector<64x1xf32>
    %30 = vector.broadcast %29 : vector<64x1xf32> to vector<64x16xf32>
    %31 = arith.mulf %5, %30 : vector<64x16xf32>
    %32 = vector.extract_strided_slice %5 {offsets = [0, 6], sizes = [64, 1], strides = [1, 1]} : vector<64x16xf32> to vector<64x1xf32>
    %33 = vector.broadcast %32 : vector<64x1xf32> to vector<64x16xf32>
    %34 = arith.mulf %5, %33 : vector<64x16xf32>
    %35 = vector.extract_strided_slice %5 {offsets = [0, 7], sizes = [64, 1], strides = [1, 1]} : vector<64x16xf32> to vector<64x1xf32>
    %36 = vector.broadcast %35 : vector<64x1xf32> to vector<64x16xf32>
    %37 = arith.mulf %5, %36 : vector<64x16xf32>
    %38 = vector.extract_strided_slice %5 {offsets = [0, 8], sizes = [64, 1], strides = [1, 1]} : vector<64x16xf32> to vector<64x1xf32>
    %39 = vector.broadcast %38 : vector<64x1xf32> to vector<64x16xf32>
    %40 = arith.mulf %5, %39 : vector<64x16xf32>
    %41 = vector.extract_strided_slice %5 {offsets = [0, 9], sizes = [64, 1], strides = [1, 1]} : vector<64x16xf32> to vector<64x1xf32>
    %42 = vector.broadcast %41 : vector<64x1xf32> to vector<64x16xf32>
    %43 = arith.mulf %5, %42 : vector<64x16xf32>
    %44 = vector.extract_strided_slice %5 {offsets = [0, 10], sizes = [64, 1], strides = [1, 1]} : vector<64x16xf32> to vector<64x1xf32>
    %45 = vector.broadcast %44 : vector<64x1xf32> to vector<64x16xf32>
    %46 = arith.mulf %5, %45 : vector<64x16xf32>
    %47 = vector.extract_strided_slice %5 {offsets = [0, 11], sizes = [64, 1], strides = [1, 1]} : vector<64x16xf32> to vector<64x1xf32>
    %48 = vector.broadcast %47 : vector<64x1xf32> to vector<64x16xf32>
    %49 = arith.mulf %5, %48 : vector<64x16xf32>
    %50 = vector.extract_strided_slice %5 {offsets = [0, 12], sizes = [64, 1], strides = [1, 1]} : vector<64x16xf32> to vector<64x1xf32>
    %51 = vector.broadcast %50 : vector<64x1xf32> to vector<64x16xf32>
    %52 = arith.mulf %5, %51 : vector<64x16xf32>
    %53 = vector.extract_strided_slice %5 {offsets = [0, 13], sizes = [64, 1], strides = [1, 1]} : vector<64x16xf32> to vector<64x1xf32>
    %54 = vector.broadcast %53 : vector<64x1xf32> to vector<64x16xf32>
    %55 = arith.mulf %5, %54 : vector<64x16xf32>
    %56 = vector.extract_strided_slice %5 {offsets = [0, 14], sizes = [64, 1], strides = [1, 1]} : vector<64x16xf32> to vector<64x1xf32>
    %57 = vector.broadcast %56 : vector<64x1xf32> to vector<64x16xf32>
    %58 = arith.mulf %5, %57 : vector<64x16xf32>
    %59 = vector.extract_strided_slice %5 {offsets = [0, 15], sizes = [64, 1], strides = [1, 1]} : vector<64x16xf32> to vector<64x1xf32>
    %60 = vector.broadcast %59 : vector<64x1xf32> to vector<64x16xf32>
    %61 = arith.mulf %5, %60 : vector<64x16xf32>
    %62 = tpu.concatenate %16, %19, %22, %25, %28, %31, %34, %37, %40, %43, %46, %49, %52, %55, %58, %61 in 1 : vector<64x16xf32>, vector<64x16xf32>, vector<64x16xf32>, vector<64x16xf32>, vector<64x16xf32>, vector<64x16xf32>, vector<64x16xf32>, vector<64x16xf32>, vector<64x16xf32>, vector<64x16xf32>, vector<64x16xf32>, vector<64x16xf32>, vector<64x16xf32>, vector<64x16xf32>, vector<64x16xf32>, vector<64x16xf32> -> vector<64x256xf32>
    %cst_18 = arith.constant dense<0.000000e+00> : vector<4x256xf32>
    %63 = tpu.matmul %6, %62, %cst_18 {dimension_numbers = #tpu.dot_dimension_numbers<[1], [0], [0], [1], [0, 0, 1, 1], [], []>, precision = #tpu.contract_precision<fp32>} : vector<4x64xf32>, vector<64x256xf32>, vector<4x256xf32> -> vector<4x256xf32>
    %c0_19 = arith.constant 0 : index
    %c0_20 = arith.constant 0 : index
    %64 = vector.load %arg8[%c0_19, %c0_20] : memref<4x256xf32, #tpu.memory_space<vmem>>, vector<4x256xf32>
    tpu.vector_store %arg8[%c0_19, %c0_20], %63 {strides = array<i32>} : memref<4x256xf32, #tpu.memory_space<vmem>>, vector<4x256xf32>,
    return
  }
}

</mosaic_0001>

<llo_original>
// kernel: quadratic_net2_forward.1
$region0: #{quadratic_net2_forward.1}
  #allocation0 [shape = 'u32[]', space=smem, size = 0x4, offset = 0x4, fixed_abs, tag = 'smem constant byte address 0x4 - core index']
  #allocation1 [shape = 'u32[144,128]{1,0:T(1,128)}', space=vmem, size = 0x12000, scoped, tag = 'internal scratch']
  %s0 = inlined_call_operand.vmem [shape: f32[8,16], index: 0, kind: input, shape index: {}]
  %s1 = inlined_call_operand.vmem [shape: f32[16,64], index: 1, kind: input, shape index: {}]
  %s2 = inlined_call_operand.vmem [shape: f32[64,4], index: 2, kind: input, shape index: {}]
  %s3 = inlined_call_operand.vmem [shape: f32[4,32], index: 3, kind: input, shape index: {}]
  %s4 = inlined_call_operand.vmem [shape: f32[32,8], index: 4, kind: input, shape index: {}]
  %s5 = inlined_call_operand.vmem [shape: f32[64,16], index: 5, kind: input, shape index: {}]
  %s6 = inlined_call_operand.vmem [shape: f32[4,64], index: 6, kind: input, shape index: {}]
  %s7 = inlined_call_operand.hbm [shape: f32[8,8], index: 7, kind: output, shape index: {0}]
  %s8 = inlined_call_operand.hbm [shape: f32[4,256], index: 8, kind: output, shape index: {1}]
  %9 = xla_tuple %s7, %s8
  %s10 = sld [smem:[#allocation0]]
  $region46: #{quadratic_net2_forward.1} parent=0
    _
  %s12 = ssub.s32 1, %s10
  %s13 = scalar_select 0, %s12, %s10
  $region1: #{quadratic_net2_forward.1} parent=0
    #allocation2 [shape = 'u8[4096]{0}', space=vmem, size = 0x1000, scoped, tag = 'output window, operand 0, single buffered']
    #allocation3 [shape = 's32[1]{0}', space=sflag, size = 0x4, scoped, tag = 'scoped memory for quadratic_net2_forward.1']
    #allocation4 [shape = 'u8[4096]{0}', space=vmem, size = 0x1000, scoped, tag = 'output window, operand 1, single buffered']
    #allocation5 [shape = 's32[1]{0}', space=sflag, size = 0x4, scoped, tag = 'scoped memory for quadratic_net2_forward.1']
    %14 = vsyncpa [#allocation3], 0
    %15 = vsyncpa [#allocation5], 0
    // Predicated region
    $region2: #{quadratic_net2_forward.1} parent=1 // pred_check
      _
    $region3: #{quadratic_net2_forward.1} parent=1 // pred_check_branch
      %17 = sbr.rel (0) target = $region5
    $region4: #{quadratic_net2_forward.1} parent=1 // pred_region
      _
    $region5: #{quadratic_net2_forward.1} parent=1 // pred_fallthru
      _
    // Predicated region
    $region6: #{quadratic_net2_forward.1} parent=1 // pred_check
      _
    $region7: #{quadratic_net2_forward.1} parent=1 // pred_check_branch
      %19 = sbr.rel (0) target = $region9
    $region8: #{quadratic_net2_forward.1} parent=1 // pred_region
      _
    $region9: #{quadratic_net2_forward.1} parent=1 // pred_fallthru
      _
    // Predicated region
    $region10: #{quadratic_net2_forward.1} parent=1 // pred_check
      _
    $region11: #{quadratic_net2_forward.1} parent=1 // pred_check_branch
      %21 = sbr.rel (0) target = $region13
    $region12: #{quadratic_net2_forward.1} parent=1 // pred_region
      _
    $region13: #{quadratic_net2_forward.1} parent=1 // pred_fallthru
      _
    // Predicated region
    $region14: #{quadratic_net2_forward.1} parent=1 // pred_check
      _
    $region15: #{quadratic_net2_forward.1} parent=1 // pred_check_branch
      %23 = sbr.rel (0) target = $region17
    $region16: #{quadratic_net2_forward.1} parent=1 // pred_region
      _
    $region17: #{quadratic_net2_forward.1} parent=1 // pred_fallthru
      _
    // Predicated region
    $region18: #{quadratic_net2_forward.1} parent=1 // pred_check
      _
    $region19: #{quadratic_net2_forward.1} parent=1 // pred_check_branch
      %25 = sbr.rel (0) target = $region21
    $region20: #{quadratic_net2_forward.1} parent=1 // pred_region
      _
    $region21: #{quadratic_net2_forward.1} parent=1 // pred_fallthru
      _
    // Predicated region
    $region22: #{quadratic_net2_forward.1} parent=1 // pred_check
      _
    $region23: #{quadratic_net2_forward.1} parent=1 // pred_check_branch
      %27 = sbr.rel (0) target = $region25
    $region24: #{quadratic_net2_forward.1} parent=1 // pred_region
      _
    $region25: #{quadratic_net2_forward.1} parent=1 // pred_fallthru
      _
    // Predicated region
    $region26: #{quadratic_net2_forward.1} parent=1 // pred_check
      _
    $region27: #{quadratic_net2_forward.1} parent=1 // pred_check_branch
      %29 = sbr.rel (0) target = $region29
    $region28: #{quadratic_net2_forward.1} parent=1 // pred_region
      _
    $region29: #{quadratic_net2_forward.1} parent=1 // pred_fallthru
      _
    %v30 = vld [vmem:[%s0] sm:$0xff]
    %v31 = vld [vmem:[%s1] sm:$0xff]
    %v32 = vld [vmem:[%s1 + $0x8] sm:$0xff]
    %v33 = vld [vmem:[%s2] sm:$0xff]
    %v34 = vld [vmem:[%s2 + $0x8] sm:$0xff]
    %v35 = vld [vmem:[%s2 + $0x10] sm:$0xff]
    %v36 = vld [vmem:[%s2 + $0x18] sm:$0xff]
    %v37 = vld [vmem:[%s2 + $0x20] sm:$0xff]
    %v38 = vld [vmem:[%s2 + $0x28] sm:$0xff]
    %v39 = vld [vmem:[%s2 + $0x30] sm:$0xff]
    %v40 = vld [vmem:[%s2 + $0x38] sm:$0xff]
    %v41 = vld [vmem:[%s3] sm:$0xf]
    %v42 = vld [vmem:[%s4] sm:$0xff]
    %v43 = vld [vmem:[%s4 + $0x8] sm:$0xff]
    %v44 = vld [vmem:[%s4 + $0x10] sm:$0xff]
    %v45 = vld [vmem:[%s4 + $0x18] sm:$0xff]
    %v46 = vld [vmem:[%s5] sm:$0xff]
    %v47 = vld [vmem:[%s5 + $0x8] sm:$0xff]
    %v48 = vld [vmem:[%s5 + $0x10] sm:$0xff]
    %v49 = vld [vmem:[%s5 + $0x18] sm:$0xff]
    %v50 = vld [vmem:[%s5 + $0x20] sm:$0xff]
    %v51 = vld [vmem:[%s5 + $0x28] sm:$0xff]
    %v52 = vld [vmem:[%s5 + $0x30] sm:$0xff]
    %v53 = vld [vmem:[%s5 + $0x38] sm:$0xff]
    %v54 = vld [vmem:[%s6] sm:$0xf]
    %vm55 = vcmask 130048
    %v57 = vsel %vm55, %v30, 0
    %59 = vmatprep.subr.mxu0 0.0
    %v60 = vand.u32 %v31, 4294901760
    %61 = vmatpush1.msra.mxu0 %v60
    %62 = vmatprep.subr.mxu0 0.0
    %v63 = vand.u32 %v32, 4294901760
    %64 = vmatpush1.msra.mxu0 %v63
    %65 = vmatprep.subr.mxu0 0.0
    %66 = vmatpush1.msra.mxu0 0.0
    %67 = vmatprep.subr.mxu0 0.0
    %68 = vmatpush1.msra.mxu0 0.0
    %69 = vmatprep.subr.mxu0 0.0
    %70 = vmatpush1.msra.mxu0 0.0
    %71 = vmatprep.subr.mxu0 0.0
    %72 = vmatpush1.msra.mxu0 0.0
    %73 = vmatprep.subr.mxu0 0.0
    %74 = vmatpush1.msra.mxu0 0.0
    %75 = vmatprep.subr.mxu0 0.0
    %76 = vmatpush1.msra.mxu0 0.0
    %77 = vmatprep.subr.mxu0 0.0
    %78 = vmatpush1.msra.mxu0 0.0
    %79 = vmatprep.subr.mxu0 0.0
    %80 = vmatpush1.msra.mxu0 0.0
    %81 = vmatprep.subr.mxu0 0.0
    %82 = vmatpush1.msra.mxu0 0.0
    %83 = vmatprep.subr.mxu0 0.0
    %84 = vmatpush1.msra.mxu0 0.0
    %85 = vmatprep.subr.mxu0 0.0
    %86 = vmatpush1.msra.mxu0 0.0
    %87 = vmatprep.subr.mxu0 0.0
    %88 = vmatpush1.msra.mxu0 0.0
    %89 = vmatprep.subr.mxu0 0.0
    %90 = vmatpush1.msra.mxu0 0.0
    %91 = vmatprep.subr.mxu0 0.0
    %92 = vmatpush1.msra.mxu0 0.0
    %93 = vmatprep.subr.mxu0 0.0
    %94 = vmatpush1.msra.mxu0 0.0
    %95 = vmatprep.subr.mxu0 0.0
    %96 = vmatpush1.msra.mxu0 0.0
    %97 = vmatprep.subr.mxu0 0.0
    %98 = vmatpush1.msra.mxu0 0.0
    %99 = vmatprep.subr.mxu0 0.0
    %100 = vmatpush1.msra.mxu0 0.0
    %101 = vmatprep.subr.mxu0 0.0
    %102 = vmatpush1.msra.mxu0 0.0
    %103 = vmatprep.subr.mxu0 0.0
    %104 = vmatpush1.msra.mxu0 0.0
    %105 = vmatprep.subr.mxu0 0.0
    %106 = vmatpush1.msra.mxu0 0.0
    %107 = vmatprep.subr.mxu0 0.0
    %108 = vmatpush1.msra.mxu0 0.0
    %109 = vmatprep.subr.mxu0 0.0
    %110 = vmatpush1.msra.mxu0 0.0
    %111 = vmatprep.subr.mxu0 0.0
    %112 = vmatpush1.msra.mxu0 0.0
    %113 = vmatprep.subr.mxu0 0.0
    %114 = vmatpush1.msra.mxu0 0.0
    %115 = vmatprep.subr.mxu0 0.0
    %116 = vmatpush1.msra.mxu0 0.0
    %117 = vmatprep.subr.mxu0 0.0
    %118 = vmatpush1.msra.mxu0 0.0
    %119 = vmatprep.subr.mxu0 0.0
    %120 = vmatpush1.msra.mxu0 0.0
    %121 = vmatprep.subr.mxu0 0.0
    %122 = vmatpush1.msra.mxu0 0.0
    %123 = vmatprep.subr.mxu0 0.0
    %124 = vmatpush1.msra.mxu0 0.0
    %125 = vmatprep.mubr.f32.mxu0 0.0
    %v126 = vand.u32 %v57, 4294901760
    %v127 = vsub.f32 %v57, %v126
    %v128 = vand.u32 %v127, 4294901760
    %v129 = vsub.f32 %v127, %v128
    %v130 = vand.u32 %v129, 4294901760
    %131 = vmatmul.mubr.f32.gmra.mrb[0].mxu0 %v130
    %v132 = vpop.f32.mrb[0].mxu0
    %v133 = vadd.f32 0.0, %v132
    %v134 = vpop.f32.mrb[0].mxu0
    %135 = vdwg.mxu0
    %136 = vmatprep.subr.mxu0 0.0
    %v137 = vand.u32 %v31, 4294901760
    %v138 = vsub.f32 %v31, %v137
    %v139 = vand.u32 %v138, 4294901760
    %v140 = vsub.f32 %v138, %v139
    %v141 = vand.u32 %v140, 4294901760
    %142 = vmatpush1.msra.mxu0 %v141
    %143 = vmatprep.subr.mxu0 0.0
    %v144 = vand.u32 %v32, 4294901760
    %v145 = vsub.f32 %v32, %v144
    %v146 = vand.u32 %v145, 4294901760
    %v147 = vsub.f32 %v145, %v146
    %v148 = vand.u32 %v147, 4294901760
    %149 = vmatpush1.msra.mxu0 %v148
    %150 = vmatprep.subr.mxu0 0.0
    %151 = vmatpush1.msra.mxu0 0.0
    %152 = vmatprep.subr.mxu0 0.0
    %153 = vmatpush1.msra.mxu0 0.0
    %154 = vmatprep.subr.mxu0 0.0
    %155 = vmatpush1.msra.mxu0 0.0
    %156 = vmatprep.subr.mxu0 0.0
    %157 = vmatpush1.msra.mxu0 0.0
    %158 = vmatprep.subr.mxu0 0.0
    %159 = vmatpush1.msra.mxu0 0.0
    %160 = vmatprep.subr.mxu0 0.0
    %161 = vmatpush1.msra.mxu0 0.0
    %162 = vmatprep.subr.mxu0 0.0
    %163 = vmatpush1.msra.mxu0 0.0
    %164 = vmatprep.subr.mxu0 0.0
    %165 = vmatpush1.msra.mxu0 0.0
    %166 = vmatprep.subr.mxu0 0.0
    %167 = vmatpush1.msra.mxu0 0.0
    %168 = vmatprep.subr.mxu0 0.0
    %169 = vmatpush1.msra.mxu0 0.0
    %170 = vmatprep.subr.mxu0 0.0
    %171 = vmatpush1.msra.mxu0 0.0
    %172 = vmatprep.subr.mxu0 0.0
    %173 = vmatpush1.msra.mxu0 0.0
    %174 = vmatprep.subr.mxu0 0.0
    %175 = vmatpush1.msra.mxu0 0.0
    %176 = vmatprep.subr.mxu0 0.0
    %177 = vmatpush1.msra.mxu0 0.0
    %178 = vmatprep.subr.mxu0 0.0
    %179 = vmatpush1.msra.mxu0 0.0
    %180 = vmatprep.subr.mxu0 0.0
    %181 = vmatpush1.msra.mxu0 0.0
    %182 = vmatprep.subr.mxu0 0.0
    %183 = vmatpush1.msra.mxu0 0.0
    %184 = vmatprep.subr.mxu0 0.0
    %185 = vmatpush1.msra.mxu0 0.0
    %186 = vmatprep.subr.mxu0 0.0
    %187 = vmatpush1.msra.mxu0 0.0
    %188 = vmatprep.subr.mxu0 0.0
    %189 = vmatpush1.msra.mxu0 0.0
    %190 = vmatprep.subr.mxu0 0.0
    %191 = vmatpush1.msra.mxu0 0.0
    %192 = vmatprep.subr.mxu0 0.0
    %193 = vmatpush1.msra.mxu0 0.0
    %194 = vmatprep.subr.mxu0 0.0
    %195 = vmatpush1.msra.mxu0 0.0
    %196 = vmatprep.subr.mxu0 0.0
    %197 = vmatpush1.msra.mxu0 0.0
    %198 = vmatprep.subr.mxu0 0.0
    %199 = vmatpush1.msra.mxu0 0.0
    %200 = vmatprep.subr.mxu0 0.0
    %201 = vmatpush1.msra.mxu0 0.0
    %202 = vmatprep.subr.mxu0 0.0
    %203 = vmatpush1.msra.mxu0 0.0
    %204 = vmatprep.subr.mxu0 0.0
    %205 = vmatpush1.msra.mxu0 0.0
    %206 = vmatprep.subr.mxu0 0.0
    %207 = vmatpush1.msra.mxu0 0.0
    %208 = vmatprep.subr.mxu0 0.0
    %209 = vmatpush1.msra.mxu0 0.0
    %210 = vmatprep.mubr.f32.mxu0 0.0
    %v211 = vand.u32 %v57, 4294901760
    %212 = vmatmul.mubr.f32.gmra.mrb[0].mxu0 %v211
    %v213 = vpop.f32.mrb[0].mxu0
    %v214 = vadd.f32 %v133, %v213
    %v215 = vpop.f32.mrb[0].mxu0
    %216 = vdwg.mxu0
    %217 = vmatprep.subr.mxu0 0.0
    %v218 = vand.u32 %v31, 4294901760
    %v219 = vsub.f32 %v31, %v218
    %220 = vmatpush1.msra.mxu0 %v219
    %221 = vmatprep.subr.mxu0 0.0
    %v222 = vand.u32 %v32, 4294901760
    %v223 = vsub.f32 %v32, %v222
    %224 = vmatpush1.msra.mxu0 %v223
    %225 = vmatprep.subr.mxu0 0.0
    %226 = vmatpush1.msra.mxu0 0.0
    %227 = vmatprep.subr.mxu0 0.0
    %228 = vmatpush1.msra.mxu0 0.0
    %229 = vmatprep.subr.mxu0 0.0
    %230 = vmatpush1.msra.mxu0 0.0
    %231 = vmatprep.subr.mxu0 0.0
    %232 = vmatpush1.msra.mxu0 0.0
    %233 = vmatprep.subr.mxu0 0.0
    %234 = vmatpush1.msra.mxu0 0.0
    %235 = vmatprep.subr.mxu0 0.0
    %236 = vmatpush1.msra.mxu0 0.0
    %237 = vmatprep.subr.mxu0 0.0
    %238 = vmatpush1.msra.mxu0 0.0
    %239 = vmatprep.subr.mxu0 0.0
    %240 = vmatpush1.msra.mxu0 0.0
    %241 = vmatprep.subr.mxu0 0.0
    %242 = vmatpush1.msra.mxu0 0.0
    %243 = vmatprep.subr.mxu0 0.0
    %244 = vmatpush1.msra.mxu0 0.0
    %245 = vmatprep.subr.mxu0 0.0
    %246 = vmatpush1.msra.mxu0 0.0
    %247 = vmatprep.subr.mxu0 0.0
    %248 = vmatpush1.msra.mxu0 0.0
    %249 = vmatprep.subr.mxu0 0.0
    %250 = vmatpush1.msra.mxu0 0.0
    %251 = vmatprep.subr.mxu0 0.0
    %252 = vmatpush1.msra.mxu0 0.0
    %253 = vmatprep.subr.mxu0 0.0
    %254 = vmatpush1.msra.mxu0 0.0
    %255 = vmatprep.subr.mxu0 0.0
    %256 = vmatpush1.msra.mxu0 0.0
    %257 = vmatprep.subr.mxu0 0.0
    %258 = vmatpush1.msra.mxu0 0.0
    %259 = vmatprep.subr.mxu0 0.0
    %260 = vmatpush1.msra.mxu0 0.0
    %261 = vmatprep.subr.mxu0 0.0
    %262 = vmatpush1.msra.mxu0 0.0
    %263 = vmatprep.subr.mxu0 0.0
    %264 = vmatpush1.msra.mxu0 0.0
    %265 = vmatprep.subr.mxu0 0.0
    %266 = vmatpush1.msra.mxu0 0.0
    %267 = vmatprep.subr.mxu0 0.0
    %268 = vmatpush1.msra.mxu0 0.0
    %269 = vmatprep.subr.mxu0 0.0
    %270 = vmatpush1.msra.mxu0 0.0
    %271 = vmatprep.subr.mxu0 0.0
    %272 = vmatpush1.msra.mxu0 0.0
    %273 = vmatprep.subr.mxu0 0.0
    %274 = vmatpush1.msra.mxu0 0.0
    %275 = vmatprep.subr.mxu0 0.0
    %276 = vmatpush1.msra.mxu0 0.0
    %277 = vmatprep.subr.mxu0 0.0
    %278 = vmatpush1.msra.mxu0 0.0
    %279 = vmatprep.subr.mxu0 0.0
    %280 = vmatpush1.msra.mxu0 0.0
    %281 = vmatprep.subr.mxu0 0.0
    %282 = vmatpush1.msra.mxu0 0.0
    %283 = vmatprep.subr.mxu0 0.0
    %284 = vmatpush1.msra.mxu0 0.0
    %285 = vmatprep.mubr.f32.mxu0 0.0
    %v286 = vand.u32 %v57, 4294901760
    %v287 = vsub.f32 %v57, %v286
    %288 = vmatmul.mubr.f32.gmra.mrb[0].mxu0 %v287
    %v289 = vpop.f32.mrb[0].mxu0
    %v290 = vadd.f32 %v214, %v289
    %v291 = vpop.f32.mrb[0].mxu0
    %292 = vdwg.mxu0
    %293 = vmatprep.subr.mxu0 0.0
    %v294 = vand.u32 %v31, 4294901760
    %295 = vmatpush1.msra.mxu0 %v294
    %296 = vmatprep.subr.mxu0 0.0
    %v297 = vand.u32 %v32, 4294901760
    %298 = vmatpush1.msra.mxu0 %v297
    %299 = vmatprep.subr.mxu0 0.0
    %300 = vmatpush1.msra.mxu0 0.0
    %301 = vmatprep.subr.mxu0 0.0
    %302 = vmatpush1.msra.mxu0 0.0
    %303 = vmatprep.subr.mxu0 0.0
    %304 = vmatpush1.msra.mxu0 0.0
    %305 = vmatprep.subr.mxu0 0.0
    %306 = vmatpush1.msra.mxu0 0.0
    %307 = vmatprep.subr.mxu0 0.0
    %308 = vmatpush1.msra.mxu0 0.0
    %309 = vmatprep.subr.mxu0 0.0
    %310 = vmatpush1.msra.mxu0 0.0
    %311 = vmatprep.subr.mxu0 0.0
    %312 = vmatpush1.msra.mxu0 0.0
    %313 = vmatprep.subr.mxu0 0.0
    %314 = vmatpush1.msra.mxu0 0.0
    %315 = vmatprep.subr.mxu0 0.0
    %316 = vmatpush1.msra.mxu0 0.0
    %317 = vmatprep.subr.mxu0 0.0
    %318 = vmatpush1.msra.mxu0 0.0
    %319 = vmatprep.subr.mxu0 0.0
    %320 = vmatpush1.msra.mxu0 0.0
    %321 = vmatprep.subr.mxu0 0.0
    %322 = vmatpush1.msra.mxu0 0.0
    %323 = vmatprep.subr.mxu0 0.0
    %324 = vmatpush1.msra.mxu0 0.0
    %325 = vmatprep.subr.mxu0 0.0
    %326 = vmatpush1.msra.mxu0 0.0
    %327 = vmatprep.subr.mxu0 0.0
    %328 = vmatpush1.msra.mxu0 0.0
    %329 = vmatprep.subr.mxu0 0.0
    %330 = vmatpush1.msra.mxu0 0.0
    %331 = vmatprep.subr.mxu0 0.0
    %332 = vmatpush1.msra.mxu0 0.0
    %333 = vmatprep.subr.mxu0 0.0
    %334 = vmatpush1.msra.mxu0 0.0
    %335 = vmatprep.subr.mxu0 0.0
    %336 = vmatpush1.msra.mxu0 0.0
    %337 = vmatprep.subr.mxu0 0.0
    %338 = vmatpush1.msra.mxu0 0.0
    %339 = vmatprep.subr.mxu0 0.0
    %340 = vmatpush1.msra.mxu0 0.0
    %341 = vmatprep.subr.mxu0 0.0
    %342 = vmatpush1.msra.mxu0 0.0
    %343 = vmatprep.subr.mxu0 0.0
    %344 = vmatpush1.msra.mxu0 0.0
    %345 = vmatprep.subr.mxu0 0.0
    %346 = vmatpush1.msra.mxu0 0.0
    %347 = vmatprep.subr.mxu0 0.0
    %348 = vmatpush1.msra.mxu0 0.0
    %349 = vmatprep.subr.mxu0 0.0
    %350 = vmatpush1.msra.mxu0 0.0
    %351 = vmatprep.subr.mxu0 0.0
    %352 = vmatpush1.msra.mxu0 0.0
    %353 = vmatprep.subr.mxu0 0.0
    %354 = vmatpush1.msra.mxu0 0.0
    %355 = vmatprep.subr.mxu0 0.0
    %356 = vmatpush1.msra.mxu0 0.0
    %357 = vmatprep.subr.mxu0 0.0
    %358 = vmatpush1.msra.mxu0 0.0
    %359 = vmatprep.mubr.f32.mxu0 0.0
    %v360 = vand.u32 %v57, 4294901760
    %v361 = vsub.f32 %v57, %v360
    %v362 = vand.u32 %v361, 4294901760
    %363 = vmatmul.mubr.f32.gmra.mrb[0].mxu0 %v362
    %v364 = vpop.f32.mrb[0].mxu0
    %v365 = vadd.f32 %v290, %v364
    %v366 = vpop.f32.mrb[0].mxu0
    %367 = vdwg.mxu0
    %368 = vmatprep.subr.mxu0 0.0
    %v369 = vand.u32 %v31, 4294901760
    %v370 = vsub.f32 %v31, %v369
    %v371 = vand.u32 %v370, 4294901760
    %372 = vmatpush1.msra.mxu0 %v371
    %373 = vmatprep.subr.mxu0 0.0
    %v374 = vand.u32 %v32, 4294901760
    %v375 = vsub.f32 %v32, %v374
    %v376 = vand.u32 %v375, 4294901760
    %377 = vmatpush1.msra.mxu0 %v376
    %378 = vmatprep.subr.mxu0 0.0
    %379 = vmatpush1.msra.mxu0 0.0
    %380 = vmatprep.subr.mxu0 0.0
    %381 = vmatpush1.msra.mxu0 0.0
    %382 = vmatprep.subr.mxu0 0.0
    %383 = vmatpush1.msra.mxu0 0.0
    %384 = vmatprep.subr.mxu0 0.0
    %385 = vmatpush1.msra.mxu0 0.0
    %386 = vmatprep.subr.mxu0 0.0
    %387 = vmatpush1.msra.mxu0 0.0
    %388 = vmatprep.subr.mxu0 0.0
    %389 = vmatpush1.msra.mxu0 0.0
    %390 = vmatprep.subr.mxu0 0.0
    %391 = vmatpush1.msra.mxu0 0.0
    %392 = vmatprep.subr.mxu0 0.0
    %393 = vmatpush1.msra.mxu0 0.0
    %394 = vmatprep.subr.mxu0 0.0
    %395 = vmatpush1.msra.mxu0 0.0
    %396 = vmatprep.subr.mxu0 0.0
    %397 = vmatpush1.msra.mxu0 0.0
    %398 = vmatprep.subr.mxu0 0.0
    %399 = vmatpush1.msra.mxu0 0.0
    %400 = vmatprep.subr.mxu0 0.0
    %401 = vmatpush1.msra.mxu0 0.0
    %402 = vmatprep.subr.mxu0 0.0
    %403 = vmatpush1.msra.mxu0 0.0
    %404 = vmatprep.subr.mxu0 0.0
    %405 = vmatpush1.msra.mxu0 0.0
    %406 = vmatprep.subr.mxu0 0.0
    %407 = vmatpush1.msra.mxu0 0.0
    %408 = vmatprep.subr.mxu0 0.0
    %409 = vmatpush1.msra.mxu0 0.0
    %410 = vmatprep.subr.mxu0 0.0
    %411 = vmatpush1.msra.mxu0 0.0
    %412 = vmatprep.subr.mxu0 0.0
    %413 = vmatpush1.msra.mxu0 0.0
    %414 = vmatprep.subr.mxu0 0.0
    %415 = vmatpush1.msra.mxu0 0.0
    %416 = vmatprep.subr.mxu0 0.0
    %417 = vmatpush1.msra.mxu0 0.0
    %418 = vmatprep.subr.mxu0 0.0
    %419 = vmatpush1.msra.mxu0 0.0
    %420 = vmatprep.subr.mxu0 0.0
    %421 = vmatpush1.msra.mxu0 0.0
    %422 = vmatprep.subr.mxu0 0.0
    %423 = vmatpush1.msra.mxu0 0.0
    %424 = vmatprep.subr.mxu0 0.0
    %425 = vmatpush1.msra.mxu0 0.0
    %426 = vmatprep.subr.mxu0 0.0
    %427 = vmatpush1.msra.mxu0 0.0
    %428 = vmatprep.subr.mxu0 0.0
    %429 = vmatpush1.msra.mxu0 0.0
    %430 = vmatprep.subr.mxu0 0.0
    %431 = vmatpush1.msra.mxu0 0.0
    %432 = vmatprep.subr.mxu0 0.0
    %433 = vmatpush1.msra.mxu0 0.0
    %434 = vmatprep.subr.mxu0 0.0
    %435 = vmatpush1.msra.mxu0 0.0
    %436 = vmatprep.subr.mxu0 0.0
    %437 = vmatpush1.msra.mxu0 0.0
    %438 = vmatprep.mubr.f32.mxu0 0.0
    %v439 = vand.u32 %v57, 4294901760
    %440 = vmatmul.mubr.f32.gmra.mrb[0].mxu0 %v439
    %v441 = vpop.f32.mrb[0].mxu0
    %v442 = vadd.f32 %v365, %v441
    %v443 = vpop.f32.mrb[0].mxu0
    %444 = vdwg.mxu0
    %445 = vmatprep.subr.mxu0 0.0
    %v446 = vand.u32 %v31, 4294901760
    %447 = vmatpush1.msra.mxu0 %v446
    %448 = vmatprep.subr.mxu0 0.0
    %v449 = vand.u32 %v32, 4294901760
    %450 = vmatpush1.msra.mxu0 %v449
    %451 = vmatprep.subr.mxu0 0.0
    %452 = vmatpush1.msra.mxu0 0.0
    %453 = vmatprep.subr.mxu0 0.0
    %454 = vmatpush1.msra.mxu0 0.0
    %455 = vmatprep.subr.mxu0 0.0
    %456 = vmatpush1.msra.mxu0 0.0
    %457 = vmatprep.subr.mxu0 0.0
    %458 = vmatpush1.msra.mxu0 0.0
    %459 = vmatprep.subr.mxu0 0.0
    %460 = vmatpush1.msra.mxu0 0.0
    %461 = vmatprep.subr.mxu0 0.0
    %462 = vmatpush1.msra.mxu0 0.0
    %463 = vmatprep.subr.mxu0 0.0
    %464 = vmatpush1.msra.mxu0 0.0
    %465 = vmatprep.subr.mxu0 0.0
    %466 = vmatpush1.msra.mxu0 0.0
    %467 = vmatprep.subr.mxu0 0.0
    %468 = vmatpush1.msra.mxu0 0.0
    %469 = vmatprep.subr.mxu0 0.0
    %470 = vmatpush1.msra.mxu0 0.0
    %471 = vmatprep.subr.mxu0 0.0
    %472 = vmatpush1.msra.mxu0 0.0
    %473 = vmatprep.subr.mxu0 0.0
    %474 = vmatpush1.msra.mxu0 0.0
    %475 = vmatprep.subr.mxu0 0.0
    %476 = vmatpush1.msra.mxu0 0.0
    %477 = vmatprep.subr.mxu0 0.0
    %478 = vmatpush1.msra.mxu0 0.0
    %479 = vmatprep.subr.mxu0 0.0
    %480 = vmatpush1.msra.mxu0 0.0
    %481 = vmatprep.subr.mxu0 0.0
    %482 = vmatpush1.msra.mxu0 0.0
    %483 = vmatprep.subr.mxu0 0.0
    %484 = vmatpush1.msra.mxu0 0.0
    %485 = vmatprep.subr.mxu0 0.0
    %486 = vmatpush1.msra.mxu0 0.0
    %487 = vmatprep.subr.mxu0 0.0
    %488 = vmatpush1.msra.mxu0 0.0
    %489 = vmatprep.subr.mxu0 0.0
    %490 = vmatpush1.msra.mxu0 0.0
    %491 = vmatprep.subr.mxu0 0.0
    %492 = vmatpush1.msra.mxu0 0.0
    %493 = vmatprep.subr.mxu0 0.0
    %494 = vmatpush1.msra.mxu0 0.0
    %495 = vmatprep.subr.mxu0 0.0
    %496 = vmatpush1.msra.mxu0 0.0
    %497 = vmatprep.subr.mxu0 0.0
    %498 = vmatpush1.msra.mxu0 0.0
    %499 = vmatprep.subr.mxu0 0.0
    %500 = vmatpush1.msra.mxu0 0.0
    %501 = vmatprep.subr.mxu0 0.0
    %502 = vmatpush1.msra.mxu0 0.0
    %503 = vmatprep.subr.mxu0 0.0
    %504 = vmatpush1.msra.mxu0 0.0
    %505 = vmatprep.subr.mxu0 0.0
    %506 = vmatpush1.msra.mxu0 0.0
    %507 = vmatprep.subr.mxu0 0.0
    %508 = vmatpush1.msra.mxu0 0.0
    %509 = vmatprep.subr.mxu0 0.0
    %510 = vmatpush1.msra.mxu0 0.0
    %511 = vmatprep.mubr.f32.mxu0 0.0
    %v512 = vand.u32 %v57, 4294901760
    %513 = vmatmul.mubr.f32.gmra.mrb[0].mxu0 %v512
    %v514 = vpop.f32.mrb[0].mxu0
    %v515 = vadd.f32 %v442, %v514
    %v516 = vpop.f32.mrb[0].mxu0
    %517 = vdwg.mxu0
    %v518 = vmul.f32 %v515, %v515
    %vm519 = vcmask 523264
    %v521 = vsel %vm519, %v518, 0
    %523 = vmatprep.subr.mxu0 0.0
    %v524 = vand.u32 %v33, 4294901760
    %525 = vmatpush1.msra.mxu0 %v524
    %526 = vmatprep.subr.mxu0 0.0
    %v527 = vand.u32 %v34, 4294901760
    %528 = vmatpush1.msra.mxu0 %v527
    %529 = vmatprep.subr.mxu0 0.0
    %v530 = vand.u32 %v35, 4294901760
    %531 = vmatpush1.msra.mxu0 %v530
    %532 = vmatprep.subr.mxu0 0.0
    %v533 = vand.u32 %v36, 4294901760
    %534 = vmatpush1.msra.mxu0 %v533
    %535 = vmatprep.subr.mxu0 0.0
    %v536 = vand.u32 %v37, 4294901760
    %537 = vmatpush1.msra.mxu0 %v536
    %538 = vmatprep.subr.mxu0 0.0
    %v539 = vand.u32 %v38, 4294901760
    %540 = vmatpush1.msra.mxu0 %v539
    %541 = vmatprep.subr.mxu0 0.0
    %v542 = vand.u32 %v39, 4294901760
    %543 = vmatpush1.msra.mxu0 %v542
    %544 = vmatprep.subr.mxu0 0.0
    %v545 = vand.u32 %v40, 4294901760
    %546 = vmatpush1.msra.mxu0 %v545
    %547 = vmatprep.subr.mxu0 0.0
    %548 = vmatpush1.msra.mxu0 0.0
    %549 = vmatprep.subr.mxu0 0.0
    %550 = vmatpush1.msra.mxu0 0.0
    %551 = vmatprep.subr.mxu0 0.0
    %552 = vmatpush1.msra.mxu0 0.0
    %553 = vmatprep.subr.mxu0 0.0
    %554 = vmatpush1.msra.mxu0 0.0
    %555 = vmatprep.subr.mxu0 0.0
    %556 = vmatpush1.msra.mxu0 0.0
    %557 = vmatprep.subr.mxu0 0.0
    %558 = vmatpush1.msra.mxu0 0.0
    %559 = vmatprep.subr.mxu0 0.0
    %560 = vmatpush1.msra.mxu0 0.0
    %561 = vmatprep.subr.mxu0 0.0
    %562 = vmatpush1.msra.mxu0 0.0
    %563 = vmatprep.subr.mxu0 0.0
    %564 = vmatpush1.msra.mxu0 0.0
    %565 = vmatprep.subr.mxu0 0.0
    %566 = vmatpush1.msra.mxu0 0.0
    %567 = vmatprep.subr.mxu0 0.0
    %568 = vmatpush1.msra.mxu0 0.0
    %569 = vmatprep.subr.mxu0 0.0
    %570 = vmatpush1.msra.mxu0 0.0
    %571 = vmatprep.subr.mxu0 0.0
    %572 = vmatpush1.msra.mxu0 0.0
    %573 = vmatprep.subr.mxu0 0.0
    %574 = vmatpush1.msra.mxu0 0.0
    %575 = vmatprep.subr.mxu0 0.0
    %576 = vmatpush1.msra.mxu0 0.0
    %577 = vmatprep.subr.mxu0 0.0
    %578 = vmatpush1.msra.mxu0 0.0
    %579 = vmatprep.subr.mxu0 0.0
    %580 = vmatpush1.msra.mxu0 0.0
    %581 = vmatprep.subr.mxu0 0.0
    %582 = vmatpush1.msra.mxu0 0.0
    %583 = vmatprep.subr.mxu0 0.0
    %584 = vmatpush1.msra.mxu0 0.0
    %585 = vmatprep.subr.mxu0 0.0
    %586 = vmatpush1.msra.mxu0 0.0
    %587 = vmatprep.subr.mxu0 0.0
    %588 = vmatpush1.msra.mxu0 0.0
    %589 = vmatprep.subr.mxu0 0.0
    %590 = vmatpush1.msra.mxu0 0.0
    %591 = vmatprep.subr.mxu0 0.0
    %592 = vmatpush1.msra.mxu0 0.0
    %593 = vmatprep.subr.mxu0 0.0
    %594 = vmatpush1.msra.mxu0 0.0
    %595 = vmatprep.mubr.f32.mxu0 0.0
    %v596 = vand.u32 %v521, 4294901760
    %v597 = vsub.f32 %v521, %v596
    %v598 = vand.u32 %v597, 4294901760
    %v599 = vsub.f32 %v597, %v598
    %v600 = vand.u32 %v599, 4294901760
    %601 = vmatmul.mubr.f32.gmra.mrb[0].mxu0 %v600
    %v602 = vpop.f32.mrb[0].mxu0
    %v603 = vadd.f32 0.0, %v602
    %v604 = vpop.f32.mrb[0].mxu0
    %605 = vdwg.mxu0
    %606 = vmatprep.subr.mxu0 0.0
    %v607 = vand.u32 %v33, 4294901760
    %v608 = vsub.f32 %v33, %v607
    %v609 = vand.u32 %v608, 4294901760
    %v610 = vsub.f32 %v608, %v609
    %v611 = vand.u32 %v610, 4294901760
    %612 = vmatpush1.msra.mxu0 %v611
    %613 = vmatprep.subr.mxu0 0.0
    %v614 = vand.u32 %v34, 4294901760
    %v615 = vsub.f32 %v34, %v614
    %v616 = vand.u32 %v615, 4294901760
    %v617 = vsub.f32 %v615, %v616
    %v618 = vand.u32 %v617, 4294901760
    %619 = vmatpush1.msra.mxu0 %v618
    %620 = vmatprep.subr.mxu0 0.0
    %v621 = vand.u32 %v35, 4294901760
    %v622 = vsub.f32 %v35, %v621
    %v623 = vand.u32 %v622, 4294901760
    %v624 = vsub.f32 %v622, %v623
    %v625 = vand.u32 %v624, 4294901760
    %626 = vmatpush1.msra.mxu0 %v625
    %627 = vmatprep.subr.mxu0 0.0
    %v628 = vand.u32 %v36, 4294901760
    %v629 = vsub.f32 %v36, %v628
    %v630 = vand.u32 %v629, 4294901760
    %v631 = vsub.f32 %v629, %v630
    %v632 = vand.u32 %v631, 4294901760
    %633 = vmatpush1.msra.mxu0 %v632
    %634 = vmatprep.subr.mxu0 0.0
    %v635 = vand.u32 %v37, 4294901760
    %v636 = vsub.f32 %v37, %v635
    %v637 = vand.u32 %v636, 4294901760
    %v638 = vsub.f32 %v636, %v637
    %v639 = vand.u32 %v638, 4294901760
    %640 = vmatpush1.msra.mxu0 %v639
    %641 = vmatprep.subr.mxu0 0.0
    %v642 = vand.u32 %v38, 4294901760
    %v643 = vsub.f32 %v38, %v642
    %v644 = vand.u32 %v643, 4294901760
    %v645 = vsub.f32 %v643, %v644
    %v646 = vand.u32 %v645, 4294901760
    %647 = vmatpush1.msra.mxu0 %v646
    %648 = vmatprep.subr.mxu0 0.0
    %v649 = vand.u32 %v39, 4294901760
    %v650 = vsub.f32 %v39, %v649
    %v651 = vand.u32 %v650, 4294901760
    %v652 = vsub.f32 %v650, %v651
    %v653 = vand.u32 %v652, 4294901760
    %654 = vmatpush1.msra.mxu0 %v653
    %655 = vmatprep.subr.mxu0 0.0
    %v656 = vand.u32 %v40, 4294901760
    %v657 = vsub.f32 %v40, %v656
    %v658 = vand.u32 %v657, 4294901760
    %v659 = vsub.f32 %v657, %v658
    %v660 = vand.u32 %v659, 4294901760
    %661 = vmatpush1.msra.mxu0 %v660
    %662 = vmatprep.subr.mxu0 0.0
    %663 = vmatpush1.msra.mxu0 0.0
    %664 = vmatprep.subr.mxu0 0.0
    %665 = vmatpush1.msra.mxu0 0.0
    %666 = vmatprep.subr.mxu0 0.0
    %667 = vmatpush1.msra.mxu0 0.0
    %668 = vmatprep.subr.mxu0 0.0
    %669 = vmatpush1.msra.mxu0 0.0
    %670 = vmatprep.subr.mxu0 0.0
    %671 = vmatpush1.msra.mxu0 0.0
    %672 = vmatprep.subr.mxu0 0.0
    %673 = vmatpush1.msra.mxu0 0.0
    %674 = vmatprep.subr.mxu0 0.0
    %675 = vmatpush1.msra.mxu0 0.0
    %676 = vmatprep.subr.mxu0 0.0
    %677 = vmatpush1.msra.mxu0 0.0
    %678 = vmatprep.subr.mxu0 0.0
    %679 = vmatpush1.msra.mxu0 0.0
    %680 = vmatprep.subr.mxu0 0.0
    %681 = vmatpush1.msra.mxu0 0.0
    %682 = vmatprep.subr.mxu0 0.0
    %683 = vmatpush1.msra.mxu0 0.0
    %684 = vmatprep.subr.mxu0 0.0
    %685 = vmatpush1.msra.mxu0 0.0
    %686 = vmatprep.subr.mxu0 0.0
    %687 = vmatpush1.msra.mxu0 0.0
    %688 = vmatprep.subr.mxu0 0.0
    %689 = vmatpush1.msra.mxu0 0.0
    %690 = vmatprep.subr.mxu0 0.0
    %691 = vmatpush1.msra.mxu0 0.0
    %692 = vmatprep.subr.mxu0 0.0
    %693 = vmatpush1.msra.mxu0 0.0
    %694 = vmatprep.subr.mxu0 0.0
    %695 = vmatpush1.msra.mxu0 0.0
    %696 = vmatprep.subr.mxu0 0.0
    %697 = vmatpush1.msra.mxu0 0.0
    %698 = vmatprep.subr.mxu0 0.0
    %699 = vmatpush1.msra.mxu0 0.0
    %700 = vmatprep.subr.mxu0 0.0
    %701 = vmatpush1.msra.mxu0 0.0
    %702 = vmatprep.subr.mxu0 0.0
    %703 = vmatpush1.msra.mxu0 0.0
    %704 = vmatprep.subr.mxu0 0.0
    %705 = vmatpush1.msra.mxu0 0.0
    %706 = vmatprep.subr.mxu0 0.0
    %707 = vmatpush1.msra.mxu0 0.0
    %708 = vmatprep.subr.mxu0 0.0
    %709 = vmatpush1.msra.mxu0 0.0
    %710 = vmatprep.mubr.f32.mxu0 0.0
    %v711 = vand.u32 %v521, 4294901760
    %712 = vmatmul.mubr.f32.gmra.mrb[0].mxu0 %v711
    %v713 = vpop.f32.mrb[0].mxu0
    %v714 = vadd.f32 %v603, %v713
    %v715 = vpop.f32.mrb[0].mxu0
    %716 = vdwg.mxu0
    %717 = vmatprep.subr.mxu0 0.0
    %v718 = vand.u32 %v33, 4294901760
    %v719 = vsub.f32 %v33, %v718
    %720 = vmatpush1.msra.mxu0 %v719
    %721 = vmatprep.subr.mxu0 0.0
    %v722 = vand.u32 %v34, 4294901760
    %v723 = vsub.f32 %v34, %v722
    %724 = vmatpush1.msra.mxu0 %v723
    %725 = vmatprep.subr.mxu0 0.0
    %v726 = vand.u32 %v35, 4294901760
    %v727 = vsub.f32 %v35, %v726
    %728 = vmatpush1.msra.mxu0 %v727
    %729 = vmatprep.subr.mxu0 0.0
    %v730 = vand.u32 %v36, 4294901760
    %v731 = vsub.f32 %v36, %v730
    %732 = vmatpush1.msra.mxu0 %v731
    %733 = vmatprep.subr.mxu0 0.0
    %v734 = vand.u32 %v37, 4294901760
    %v735 = vsub.f32 %v37, %v734
    %736 = vmatpush1.msra.mxu0 %v735
    %737 = vmatprep.subr.mxu0 0.0
    %v738 = vand.u32 %v38, 4294901760
    %v739 = vsub.f32 %v38, %v738
    %740 = vmatpush1.msra.mxu0 %v739
    %741 = vmatprep.subr.mxu0 0.0
    %v742 = vand.u32 %v39, 4294901760
    %v743 = vsub.f32 %v39, %v742
    %744 = vmatpush1.msra.mxu0 %v743
    %745 = vmatprep.subr.mxu0 0.0
    %v746 = vand.u32 %v40, 4294901760
    %v747 = vsub.f32 %v40, %v746
    %748 = vmatpush1.msra.mxu0 %v747
    %749 = vmatprep.subr.mxu0 0.0
    %750 = vmatpush1.msra.mxu0 0.0
    %751 = vmatprep.subr.mxu0 0.0
    %752 = vmatpush1.msra.mxu0 0.0
    %753 = vmatprep.subr.mxu0 0.0
    %754 = vmatpush1.msra.mxu0 0.0
    %755 = vmatprep.subr.mxu0 0.0
    %756 = vmatpush1.msra.mxu0 0.0
    %757 = vmatprep.subr.mxu0 0.0
    %758 = vmatpush1.msra.mxu0 0.0
    %759 = vmatprep.subr.mxu0 0.0
    %760 = vmatpush1.msra.mxu0 0.0
    %761 = vmatprep.subr.mxu0 0.0
    %762 = vmatpush1.msra.mxu0 0.0
    %763 = vmatprep.subr.mxu0 0.0
    %764 = vmatpush1.msra.mxu0 0.0
    %765 = vmatprep.subr.mxu0 0.0
    %766 = vmatpush1.msra.mxu0 0.0
    %767 = vmatprep.subr.mxu0 0.0
    %768 = vmatpush1.msra.mxu0 0.0
    %769 = vmatprep.subr.mxu0 0.0
    %770 = vmatpush1.msra.mxu0 0.0
    %771 = vmatprep.subr.mxu0 0.0
    %772 = vmatpush1.msra.mxu0 0.0
    %773 = vmatprep.subr.mxu0 0.0
    %774 = vmatpush1.msra.mxu0 0.0
    %775 = vmatprep.subr.mxu0 0.0
    %776 = vmatpush1.msra.mxu0 0.0
    %777 = vmatprep.subr.mxu0 0.0
    %778 = vmatpush1.msra.mxu0 0.0
    %779 = vmatprep.subr.mxu0 0.0
    %780 = vmatpush1.msra.mxu0 0.0
    %781 = vmatprep.subr.mxu0 0.0
    %782 = vmatpush1.msra.mxu0 0.0
    %783 = vmatprep.subr.mxu0 0.0
    %784 = vmatpush1.msra.mxu0 0.0
    %785 = vmatprep.subr.mxu0 0.0
    %786 = vmatpush1.msra.mxu0 0.0
    %787 = vmatprep.subr.mxu0 0.0
    %788 = vmatpush1.msra.mxu0 0.0
    %789 = vmatprep.subr.mxu0 0.0
    %790 = vmatpush1.msra.mxu0 0.0
    %791 = vmatprep.subr.mxu0 0.0
    %792 = vmatpush1.msra.mxu0 0.0
    %793 = vmatprep.subr.mxu0 0.0
    %794 = vmatpush1.msra.mxu0 0.0
    %795 = vmatprep.subr.mxu0 0.0
    %796 = vmatpush1.msra.mxu0 0.0
    %797 = vmatprep.mubr.f32.mxu0 0.0
    %v798 = vand.u32 %v521, 4294901760
    %v799 = vsub.f32 %v521, %v798
    %800 = vmatmul.mubr.f32.gmra.mrb[0].mxu0 %v799
    %v801 = vpop.f32.mrb[0].mxu0
    %v802 = vadd.f32 %v714, %v801
    %v803 = vpop.f32.mrb[0].mxu0
    %804 = vdwg.mxu0
    %805 = vmatprep.subr.mxu0 0.0
    %v806 = vand.u32 %v33, 4294901760
    %807 = vmatpush1.msra.mxu0 %v806
    %808 = vmatprep.subr.mxu0 0.0
    %v809 = vand.u32 %v34, 4294901760
    %810 = vmatpush1.msra.mxu0 %v809
    %811 = vmatprep.subr.mxu0 0.0
    %v812 = vand.u32 %v35, 4294901760
    %813 = vmatpush1.msra.mxu0 %v812
    %814 = vmatprep.subr.mxu0 0.0
    %v815 = vand.u32 %v36, 4294901760
    %816 = vmatpush1.msra.mxu0 %v815
    %817 = vmatprep.subr.mxu0 0.0
    %v818 = vand.u32 %v37, 4294901760
    %819 = vmatpush1.msra.mxu0 %v818
    %820 = vmatprep.subr.mxu0 0.0
    %v821 = vand.u32 %v38, 4294901760
    %822 = vmatpush1.msra.mxu0 %v821
    %823 = vmatprep.subr.mxu0 0.0
    %v824 = vand.u32 %v39, 4294901760
    %825 = vmatpush1.msra.mxu0 %v824
    %826 = vmatprep.subr.mxu0 0.0
    %v827 = vand.u32 %v40, 4294901760
    %828 = vmatpush1.msra.mxu0 %v827
    %829 = vmatprep.subr.mxu0 0.0
    %830 = vmatpush1.msra.mxu0 0.0
    %831 = vmatprep.subr.mxu0 0.0
    %832 = vmatpush1.msra.mxu0 0.0
    %833 = vmatprep.subr.mxu0 0.0
    %834 = vmatpush1.msra.mxu0 0.0
    %835 = vmatprep.subr.mxu0 0.0
    %836 = vmatpush1.msra.mxu0 0.0
    %837 = vmatprep.subr.mxu0 0.0
    %838 = vmatpush1.msra.mxu0 0.0
    %839 = vmatprep.subr.mxu0 0.0
    %840 = vmatpush1.msra.mxu0 0.0
    %841 = vmatprep.subr.mxu0 0.0
    %842 = vmatpush1.msra.mxu0 0.0
    %843 = vmatprep.subr.mxu0 0.0
    %844 = vmatpush1.msra.mxu0 0.0
    %845 = vmatprep.subr.mxu0 0.0
    %846 = vmatpush1.msra.mxu0 0.0
    %847 = vmatprep.subr.mxu0 0.0
    %848 = vmatpush1.msra.mxu0 0.0
    %849 = vmatprep.subr.mxu0 0.0
    %850 = vmatpush1.msra.mxu0 0.0
    %851 = vmatprep.subr.mxu0 0.0
    %852 = vmatpush1.msra.mxu0 0.0
    %853 = vmatprep.subr.mxu0 0.0
    %854 = vmatpush1.msra.mxu0 0.0
    %855 = vmatprep.subr.mxu0 0.0
    %856 = vmatpush1.msra.mxu0 0.0
    %857 = vmatprep.subr.mxu0 0.0
    %858 = vmatpush1.msra.mxu0 0.0
    %859 = vmatprep.subr.mxu0 0.0
    %860 = vmatpush1.msra.mxu0 0.0
    %861 = vmatprep.subr.mxu0 0.0
    %862 = vmatpush1.msra.mxu0 0.0
    %863 = vmatprep.subr.mxu0 0.0
    %864 = vmatpush1.msra.mxu0 0.0
    %865 = vmatprep.subr.mxu0 0.0
    %866 = vmatpush1.msra.mxu0 0.0
    %867 = vmatprep.subr.mxu0 0.0
    %868 = vmatpush1.msra.mxu0 0.0
    %869 = vmatprep.subr.mxu0 0.0
    %870 = vmatpush1.msra.mxu0 0.0
    %871 = vmatprep.subr.mxu0 0.0
    %872 = vmatpush1.msra.mxu0 0.0
    %873 = vmatprep.subr.mxu0 0.0
    %874 = vmatpush1.msra.mxu0 0.0
    %875 = vmatprep.subr.mxu0 0.0
    %876 = vmatpush1.msra.mxu0 0.0
    %877 = vmatprep.mubr.f32.mxu0 0.0
    %v878 = vand.u32 %v521, 4294901760
    %v879 = vsub.f32 %v521, %v878
    %v880 = vand.u32 %v879, 4294901760
    %881 = vmatmul.mubr.f32.gmra.mrb[0].mxu0 %v880
    %v882 = vpop.f32.mrb[0].mxu0
    %v883 = vadd.f32 %v802, %v882
    %v884 = vpop.f32.mrb[0].mxu0
    %885 = vdwg.mxu0
    %886 = vmatprep.subr.mxu0 0.0
    %v887 = vand.u32 %v33, 4294901760
    %v888 = vsub.f32 %v33, %v887
    %v889 = vand.u32 %v888, 4294901760
    %890 = vmatpush1.msra.mxu0 %v889
    %891 = vmatprep.subr.mxu0 0.0
    %v892 = vand.u32 %v34, 4294901760
    %v893 = vsub.f32 %v34, %v892
    %v894 = vand.u32 %v893, 4294901760
    %895 = vmatpush1.msra.mxu0 %v894
    %896 = vmatprep.subr.mxu0 0.0
    %v897 = vand.u32 %v35, 4294901760
    %v898 = vsub.f32 %v35, %v897
    %v899 = vand.u32 %v898, 4294901760
    %900 = vmatpush1.msra.mxu0 %v899
    %901 = vmatprep.subr.mxu0 0.0
    %v902 = vand.u32 %v36, 4294901760
    %v903 = vsub.f32 %v36, %v902
    %v904 = vand.u32 %v903, 4294901760
    %905 = vmatpush1.msra.mxu0 %v904
    %906 = vmatprep.subr.mxu0 0.0
    %v907 = vand.u32 %v37, 4294901760
    %v908 = vsub.f32 %v37, %v907
    %v909 = vand.u32 %v908, 4294901760
    %910 = vmatpush1.msra.mxu0 %v909
    %911 = vmatprep.subr.mxu0 0.0
    %v912 = vand.u32 %v38, 4294901760
    %v913 = vsub.f32 %v38, %v912
    %v914 = vand.u32 %v913, 4294901760
    %915 = vmatpush1.msra.mxu0 %v914
    %916 = vmatprep.subr.mxu0 0.0
    %v917 = vand.u32 %v39, 4294901760
    %v918 = vsub.f32 %v39, %v917
    %v919 = vand.u32 %v918, 4294901760
    %920 = vmatpush1.msra.mxu0 %v919
    %921 = vmatprep.subr.mxu0 0.0
    %v922 = vand.u32 %v40, 4294901760
    %v923 = vsub.f32 %v40, %v922
    %v924 = vand.u32 %v923, 4294901760
    %925 = vmatpush1.msra.mxu0 %v924
    %926 = vmatprep.subr.mxu0 0.0
    %927 = vmatpush1.msra.mxu0 0.0
    %928 = vmatprep.subr.mxu0 0.0
    %929 = vmatpush1.msra.mxu0 0.0
    %930 = vmatprep.subr.mxu0 0.0
    %931 = vmatpush1.msra.mxu0 0.0
    %932 = vmatprep.subr.mxu0 0.0
    %933 = vmatpush1.msra.mxu0 0.0
    %934 = vmatprep.subr.mxu0 0.0
    %935 = vmatpush1.msra.mxu0 0.0
    %936 = vmatprep.subr.mxu0 0.0
    %937 = vmatpush1.msra.mxu0 0.0
    %938 = vmatprep.subr.mxu0 0.0
    %939 = vmatpush1.msra.mxu0 0.0
    %940 = vmatprep.subr.mxu0 0.0
    %941 = vmatpush1.msra.mxu0 0.0
    %942 = vmatprep.subr.mxu0 0.0
    %943 = vmatpush1.msra.mxu0 0.0
    %944 = vmatprep.subr.mxu0 0.0
    %945 = vmatpush1.msra.mxu0 0.0
    %946 = vmatprep.subr.mxu0 0.0
    %947 = vmatpush1.msra.mxu0 0.0
    %948 = vmatprep.subr.mxu0 0.0
    %949 = vmatpush1.msra.mxu0 0.0
    %950 = vmatprep.subr.mxu0 0.0
    %951 = vmatpush1.msra.mxu0 0.0
    %952 = vmatprep.subr.mxu0 0.0
    %953 = vmatpush1.msra.mxu0 0.0
    %954 = vmatprep.subr.mxu0 0.0
    %955 = vmatpush1.msra.mxu0 0.0
    %956 = vmatprep.subr.mxu0 0.0
    %957 = vmatpush1.msra.mxu0 0.0
    %958 = vmatprep.subr.mxu0 0.0
    %959 = vmatpush1.msra.mxu0 0.0
    %960 = vmatprep.subr.mxu0 0.0
    %961 = vmatpush1.msra.mxu0 0.0
    %962 = vmatprep.subr.mxu0 0.0
    %963 = vmatpush1.msra.mxu0 0.0
    %964 = vmatprep.subr.mxu0 0.0
    %965 = vmatpush1.msra.mxu0 0.0
    %966 = vmatprep.subr.mxu0 0.0
    %967 = vmatpush1.msra.mxu0 0.0
    %968 = vmatprep.subr.mxu0 0.0
    %969 = vmatpush1.msra.mxu0 0.0
    %970 = vmatprep.subr.mxu0 0.0
    %971 = vmatpush1.msra.mxu0 0.0
    %972 = vmatprep.subr.mxu0 0.0
    %973 = vmatpush1.msra.mxu0 0.0
    %974 = vmatprep.mubr.f32.mxu0 0.0
    %v975 = vand.u32 %v521, 4294901760
    %976 = vmatmul.mubr.f32.gmra.mrb[0].mxu0 %v975
    %v977 = vpop.f32.mrb[0].mxu0
    %v978 = vadd.f32 %v883, %v977
    %v979 = vpop.f32.mrb[0].mxu0
    %980 = vdwg.mxu0
    %981 = vmatprep.subr.mxu0 0.0
    %v982 = vand.u32 %v33, 4294901760
    %983 = vmatpush1.msra.mxu0 %v982
    %984 = vmatprep.subr.mxu0 0.0
    %v985 = vand.u32 %v34, 4294901760
    %986 = vmatpush1.msra.mxu0 %v985
    %987 = vmatprep.subr.mxu0 0.0
    %v988 = vand.u32 %v35, 4294901760
    %989 = vmatpush1.msra.mxu0 %v988
    %990 = vmatprep.subr.mxu0 0.0
    %v991 = vand.u32 %v36, 4294901760
    %992 = vmatpush1.msra.mxu0 %v991
    %993 = vmatprep.subr.mxu0 0.0
    %v994 = vand.u32 %v37, 4294901760
    %995 = vmatpush1.msra.mxu0 %v994
    %996 = vmatprep.subr.mxu0 0.0
    %v997 = vand.u32 %v38, 4294901760
    %998 = vmatpush1.msra.mxu0 %v997
    %999 = vmatprep.subr.mxu0 0.0
    %v1000 = vand.u32 %v39, 4294901760
    %1001 = vmatpush1.msra.mxu0 %v1000
    %1002 = vmatprep.subr.mxu0 0.0
    %v1003 = vand.u32 %v40, 4294901760
    %1004 = vmatpush1.msra.mxu0 %v1003
    %1005 = vmatprep.subr.mxu0 0.0
    %1006 = vmatpush1.msra.mxu0 0.0
    %1007 = vmatprep.subr.mxu0 0.0
    %1008 = vmatpush1.msra.mxu0 0.0
    %1009 = vmatprep.subr.mxu0 0.0
    %1010 = vmatpush1.msra.mxu0 0.0
    %1011 = vmatprep.subr.mxu0 0.0
    %1012 = vmatpush1.msra.mxu0 0.0
    %1013 = vmatprep.subr.mxu0 0.0
    %1014 = vmatpush1.msra.mxu0 0.0
    %1015 = vmatprep.subr.mxu0 0.0
    %1016 = vmatpush1.msra.mxu0 0.0
    %1017 = vmatprep.subr.mxu0 0.0
    %1018 = vmatpush1.msra.mxu0 0.0
    %1019 = vmatprep.subr.mxu0 0.0
    %1020 = vmatpush1.msra.mxu0 0.0
    %1021 = vmatprep.subr.mxu0 0.0
    %1022 = vmatpush1.msra.mxu0 0.0
    %1023 = vmatprep.subr.mxu0 0.0
    %1024 = vmatpush1.msra.mxu0 0.0
    %1025 = vmatprep.subr.mxu0 0.0
    %1026 = vmatpush1.msra.mxu0 0.0
    %1027 = vmatprep.subr.mxu0 0.0
    %1028 = vmatpush1.msra.mxu0 0.0
    %1029 = vmatprep.subr.mxu0 0.0
    %1030 = vmatpush1.msra.mxu0 0.0
    %1031 = vmatprep.subr.mxu0 0.0
    %1032 = vmatpush1.msra.mxu0 0.0
    %1033 = vmatprep.subr.mxu0 0.0
    %1034 = vmatpush1.msra.mxu0 0.0
    %1035 = vmatprep.subr.mxu0 0.0
    %1036 = vmatpush1.msra.mxu0 0.0
    %1037 = vmatprep.subr.mxu0 0.0
    %1038 = vmatpush1.msra.mxu0 0.0
    %1039 = vmatprep.subr.mxu0 0.0
    %1040 = vmatpush1.msra.mxu0 0.0
    %1041 = vmatprep.subr.mxu0 0.0
    %1042 = vmatpush1.msra.mxu0 0.0
    %1043 = vmatprep.subr.mxu0 0.0
    %1044 = vmatpush1.msra.mxu0 0.0
    %1045 = vmatprep.subr.mxu0 0.0
    %1046 = vmatpush1.msra.mxu0 0.0
    %1047 = vmatprep.subr.mxu0 0.0
    %1048 = vmatpush1.msra.mxu0 0.0
    %1049 = vmatprep.subr.mxu0 0.0
    %1050 = vmatpush1.msra.mxu0 0.0
    %1051 = vmatprep.subr.mxu0 0.0
    %1052 = vmatpush1.msra.mxu0 0.0
    %1053 = vmatprep.mubr.f32.mxu0 0.0
    %v1054 = vand.u32 %v521, 4294901760
    %1055 = vmatmul.mubr.f32.gmra.mrb[0].mxu0 %v1054
    %v1056 = vpop.f32.mrb[0].mxu0
    %v1057 = vadd.f32 %v978, %v1056
    %v1058 = vpop.f32.mrb[0].mxu0
    %1059 = vdwg.mxu0
    %vm1060 = vcmask 31744
    %v1062 = vsel %vm1060, %v1057, 0
    %vm1064 = vcmask 1043456
    %v1066 = vsel %vm1064, %v41, 0
    %1068 = vmatprep.subr.mxu0 0.0
    %v1069 = vand.u32 %v1066, 4294901760
    %1070 = vmatpush1.msra.mxu0 %v1069
    %1071 = vmatprep.subr.mxu0 0.0
    %1072 = vmatpush1.msra.mxu0 0.0
    %1073 = vmatprep.subr.mxu0 0.0
    %1074 = vmatpush1.msra.mxu0 0.0
    %1075 = vmatprep.subr.mxu0 0.0
    %1076 = vmatpush1.msra.mxu0 0.0
    %1077 = vmatprep.subr.mxu0 0.0
    %1078 = vmatpush1.msra.mxu0 0.0
    %1079 = vmatprep.subr.mxu0 0.0
    %1080 = vmatpush1.msra.mxu0 0.0
    %1081 = vmatprep.subr.mxu0 0.0
    %1082 = vmatpush1.msra.mxu0 0.0
    %1083 = vmatprep.subr.mxu0 0.0
    %1084 = vmatpush1.msra.mxu0 0.0
    %1085 = vmatprep.subr.mxu0 0.0
    %1086 = vmatpush1.msra.mxu0 0.0
    %1087 = vmatprep.subr.mxu0 0.0
    %1088 = vmatpush1.msra.mxu0 0.0
    %1089 = vmatprep.subr.mxu0 0.0
    %1090 = vmatpush1.msra.mxu0 0.0
    %1091 = vmatprep.subr.mxu0 0.0
    %1092 = vmatpush1.msra.mxu0 0.0
    %1093 = vmatprep.subr.mxu0 0.0
    %1094 = vmatpush1.msra.mxu0 0.0
    %1095 = vmatprep.subr.mxu0 0.0
    %1096 = vmatpush1.msra.mxu0 0.0
    %1097 = vmatprep.subr.mxu0 0.0
    %1098 = vmatpush1.msra.mxu0 0.0
    %1099 = vmatprep.subr.mxu0 0.0
    %1100 = vmatpush1.msra.mxu0 0.0
    %1101 = vmatprep.subr.mxu0 0.0
    %1102 = vmatpush1.msra.mxu0 0.0
    %1103 = vmatprep.subr.mxu0 0.0
    %1104 = vmatpush1.msra.mxu0 0.0
    %1105 = vmatprep.subr.mxu0 0.0
    %1106 = vmatpush1.msra.mxu0 0.0
    %1107 = vmatprep.subr.mxu0 0.0
    %1108 = vmatpush1.msra.mxu0 0.0
    %1109 = vmatprep.subr.mxu0 0.0
    %1110 = vmatpush1.msra.mxu0 0.0
    %1111 = vmatprep.subr.mxu0 0.0
    %1112 = vmatpush1.msra.mxu0 0.0
    %1113 = vmatprep.subr.mxu0 0.0
    %1114 = vmatpush1.msra.mxu0 0.0
    %1115 = vmatprep.subr.mxu0 0.0
    %1116 = vmatpush1.msra.mxu0 0.0
    %1117 = vmatprep.subr.mxu0 0.0
    %1118 = vmatpush1.msra.mxu0 0.0
    %1119 = vmatprep.subr.mxu0 0.0
    %1120 = vmatpush1.msra.mxu0 0.0
    %1121 = vmatprep.subr.mxu0 0.0
    %1122 = vmatpush1.msra.mxu0 0.0
    %1123 = vmatprep.subr.mxu0 0.0
    %1124 = vmatpush1.msra.mxu0 0.0
    %1125 = vmatprep.subr.mxu0 0.0
    %1126 = vmatpush1.msra.mxu0 0.0
    %1127 = vmatprep.subr.mxu0 0.0
    %1128 = vmatpush1.msra.mxu0 0.0
    %1129 = vmatprep.subr.mxu0 0.0
    %1130 = vmatpush1.msra.mxu0 0.0
    %1131 = vmatprep.subr.mxu0 0.0
    %1132 = vmatpush1.msra.mxu0 0.0
    %1133 = vmatprep.mubr.f32.mxu0 0.0
    %v1134 = vand.u32 %v1062, 4294901760
    %v1135 = vsub.f32 %v1062, %v1134
    %v1136 = vand.u32 %v1135, 4294901760
    %v1137 = vsub.f32 %v1135, %v1136
    %v1138 = vand.u32 %v1137, 4294901760
    %1139 = vmatmul.mubr.f32.gmra.mrb[0].mxu0 %v1138
    %v1140 = vpop.f32.mrb[0].mxu0
    %v1141 = vadd.f32 0.0, %v1140
    %v1142 = vpop.f32.mrb[0].mxu0
    %1143 = vdwg.mxu0
    %1144 = vmatprep.subr.mxu0 0.0
    %v1145 = vand.u32 %v1066, 4294901760
    %v1146 = vsub.f32 %v1066, %v1145
    %v1147 = vand.u32 %v1146, 4294901760
    %v1148 = vsub.f32 %v1146, %v1147
    %v1149 = vand.u32 %v1148, 4294901760
    %1150 = vmatpush1.msra.mxu0 %v1149
    %1151 = vmatprep.subr.mxu0 0.0
    %1152 = vmatpush1.msra.mxu0 0.0
    %1153 = vmatprep.subr.mxu0 0.0
    %1154 = vmatpush1.msra.mxu0 0.0
    %1155 = vmatprep.subr.mxu0 0.0
    %1156 = vmatpush1.msra.mxu0 0.0
    %1157 = vmatprep.subr.mxu0 0.0
    %1158 = vmatpush1.msra.mxu0 0.0
    %1159 = vmatprep.subr.mxu0 0.0
    %1160 = vmatpush1.msra.mxu0 0.0
    %1161 = vmatprep.subr.mxu0 0.0
    %1162 = vmatpush1.msra.mxu0 0.0
    %1163 = vmatprep.subr.mxu0 0.0
    %1164 = vmatpush1.msra.mxu0 0.0
    %1165 = vmatprep.subr.mxu0 0.0
    %1166 = vmatpush1.msra.mxu0 0.0
    %1167 = vmatprep.subr.mxu0 0.0
    %1168 = vmatpush1.msra.mxu0 0.0
    %1169 = vmatprep.subr.mxu0 0.0
    %1170 = vmatpush1.msra.mxu0 0.0
    %1171 = vmatprep.subr.mxu0 0.0
    %1172 = vmatpush1.msra.mxu0 0.0
    %1173 = vmatprep.subr.mxu0 0.0
    %1174 = vmatpush1.msra.mxu0 0.0
    %1175 = vmatprep.subr.mxu0 0.0
    %1176 = vmatpush1.msra.mxu0 0.0
    %1177 = vmatprep.subr.mxu0 0.0
    %1178 = vmatpush1.msra.mxu0 0.0
    %1179 = vmatprep.subr.mxu0 0.0
    %1180 = vmatpush1.msra.mxu0 0.0
    %1181 = vmatprep.subr.mxu0 0.0
    %1182 = vmatpush1.msra.mxu0 0.0
    %1183 = vmatprep.subr.mxu0 0.0
    %1184 = vmatpush1.msra.mxu0 0.0
    %1185 = vmatprep.subr.mxu0 0.0
    %1186 = vmatpush1.msra.mxu0 0.0
    %1187 = vmatprep.subr.mxu0 0.0
    %1188 = vmatpush1.msra.mxu0 0.0
    %1189 = vmatprep.subr.mxu0 0.0
    %1190 = vmatpush1.msra.mxu0 0.0
    %1191 = vmatprep.subr.mxu0 0.0
    %1192 = vmatpush1.msra.mxu0 0.0
    %1193 = vmatprep.subr.mxu0 0.0
    %1194 = vmatpush1.msra.mxu0 0.0
    %1195 = vmatprep.subr.mxu0 0.0
    %1196 = vmatpush1.msra.mxu0 0.0
    %1197 = vmatprep.subr.mxu0 0.0
    %1198 = vmatpush1.msra.mxu0 0.0
    %1199 = vmatprep.subr.mxu0 0.0
    %1200 = vmatpush1.msra.mxu0 0.0
    %1201 = vmatprep.subr.mxu0 0.0
    %1202 = vmatpush1.msra.mxu0 0.0
    %1203 = vmatprep.subr.mxu0 0.0
    %1204 = vmatpush1.msra.mxu0 0.0
    %1205 = vmatprep.subr.mxu0 0.0
    %1206 = vmatpush1.msra.mxu0 0.0
    %1207 = vmatprep.subr.mxu0 0.0
    %1208 = vmatpush1.msra.mxu0 0.0
    %1209 = vmatprep.subr.mxu0 0.0
    %1210 = vmatpush1.msra.mxu0 0.0
    %1211 = vmatprep.subr.mxu0 0.0
    %1212 = vmatpush1.msra.mxu0 0.0
    %1213 = vmatprep.mubr.f32.mxu0 0.0
    %v1214 = vand.u32 %v1062, 4294901760
    %1215 = vmatmul.mubr.f32.gmra.mrb[0].mxu0 %v1214
    %v1216 = vpop.f32.mrb[0].mxu0
    %v1217 = vadd.f32 %v1141, %v1216
    %v1218 = vpop.f32.mrb[0].mxu0
    %1219 = vdwg.mxu0
    %1220 = vmatprep.subr.mxu0 0.0
    %v1221 = vand.u32 %v1066, 4294901760
    %v1222 = vsub.f32 %v1066, %v1221
    %1223 = vmatpush1.msra.mxu0 %v1222
    %1224 = vmatprep.subr.mxu0 0.0
    %1225 = vmatpush1.msra.mxu0 0.0
    %1226 = vmatprep.subr.mxu0 0.0
    %1227 = vmatpush1.msra.mxu0 0.0
    %1228 = vmatprep.subr.mxu0 0.0
    %1229 = vmatpush1.msra.mxu0 0.0
    %1230 = vmatprep.subr.mxu0 0.0
    %1231 = vmatpush1.msra.mxu0 0.0
    %1232 = vmatprep.subr.mxu0 0.0
    %1233 = vmatpush1.msra.mxu0 0.0
    %1234 = vmatprep.subr.mxu0 0.0
    %1235 = vmatpush1.msra.mxu0 0.0
    %1236 = vmatprep.subr.mxu0 0.0
    %1237 = vmatpush1.msra.mxu0 0.0
    %1238 = vmatprep.subr.mxu0 0.0
    %1239 = vmatpush1.msra.mxu0 0.0
    %1240 = vmatprep.subr.mxu0 0.0
    %1241 = vmatpush1.msra.mxu0 0.0
    %1242 = vmatprep.subr.mxu0 0.0
    %1243 = vmatpush1.msra.mxu0 0.0
    %1244 = vmatprep.subr.mxu0 0.0
    %1245 = vmatpush1.msra.mxu0 0.0
    %1246 = vmatprep.subr.mxu0 0.0
    %1247 = vmatpush1.msra.mxu0 0.0
    %1248 = vmatprep.subr.mxu0 0.0
    %1249 = vmatpush1.msra.mxu0 0.0
    %1250 = vmatprep.subr.mxu0 0.0
    %1251 = vmatpush1.msra.mxu0 0.0
    %1252 = vmatprep.subr.mxu0 0.0
    %1253 = vmatpush1.msra.mxu0 0.0
    %1254 = vmatprep.subr.mxu0 0.0
    %1255 = vmatpush1.msra.mxu0 0.0
    %1256 = vmatprep.subr.mxu0 0.0
    %1257 = vmatpush1.msra.mxu0 0.0
    %1258 = vmatprep.subr.mxu0 0.0
    %1259 = vmatpush1.msra.mxu0 0.0
    %1260 = vmatprep.subr.mxu0 0.0
    %1261 = vmatpush1.msra.mxu0 0.0
    %1262 = vmatprep.subr.mxu0 0.0
    %1263 = vmatpush1.msra.mxu0 0.0
    %1264 = vmatprep.subr.mxu0 0.0
    %1265 = vmatpush1.msra.mxu0 0.0
    %1266 = vmatprep.subr.mxu0 0.0
    %1267 = vmatpush1.msra.mxu0 0.0
    %1268 = vmatprep.subr.mxu0 0.0
    %1269 = vmatpush1.msra.mxu0 0.0
    %1270 = vmatprep.subr.mxu0 0.0
    %1271 = vmatpush1.msra.mxu0 0.0
    %1272 = vmatprep.subr.mxu0 0.0
    %1273 = vmatpush1.msra.mxu0 0.0
    %1274 = vmatprep.subr.mxu0 0.0
    %1275 = vmatpush1.msra.mxu0 0.0
    %1276 = vmatprep.subr.mxu0 0.0
    %1277 = vmatpush1.msra.mxu0 0.0
    %1278 = vmatprep.subr.mxu0 0.0
    %1279 = vmatpush1.msra.mxu0 0.0
    %1280 = vmatprep.subr.mxu0 0.0
    %1281 = vmatpush1.msra.mxu0 0.0
    %1282 = vmatprep.subr.mxu0 0.0
    %1283 = vmatpush1.msra.mxu0 0.0
    %1284 = vmatprep.subr.mxu0 0.0
    %1285 = vmatpush1.msra.mxu0 0.0
    %1286 = vmatprep.mubr.f32.mxu0 0.0
    %v1287 = vand.u32 %v1062, 4294901760
    %v1288 = vsub.f32 %v1062, %v1287
    %1289 = vmatmul.mubr.f32.gmra.mrb[0].mxu0 %v1288
    %v1290 = vpop.f32.mrb[0].mxu0
    %v1291 = vadd.f32 %v1217, %v1290
    %v1292 = vpop.f32.mrb[0].mxu0
    %1293 = vdwg.mxu0
    %1294 = vmatprep.subr.mxu0 0.0
    %v1295 = vand.u32 %v1066, 4294901760
    %1296 = vmatpush1.msra.mxu0 %v1295
    %1297 = vmatprep.subr.mxu0 0.0
    %1298 = vmatpush1.msra.mxu0 0.0
    %1299 = vmatprep.subr.mxu0 0.0
    %1300 = vmatpush1.msra.mxu0 0.0
    %1301 = vmatprep.subr.mxu0 0.0
    %1302 = vmatpush1.msra.mxu0 0.0
    %1303 = vmatprep.subr.mxu0 0.0
    %1304 = vmatpush1.msra.mxu0 0.0
    %1305 = vmatprep.subr.mxu0 0.0
    %1306 = vmatpush1.msra.mxu0 0.0
    %1307 = vmatprep.subr.mxu0 0.0
    %1308 = vmatpush1.msra.mxu0 0.0
    %1309 = vmatprep.subr.mxu0 0.0
    %1310 = vmatpush1.msra.mxu0 0.0
    %1311 = vmatprep.subr.mxu0 0.0
    %1312 = vmatpush1.msra.mxu0 0.0
    %1313 = vmatprep.subr.mxu0 0.0
    %1314 = vmatpush1.msra.mxu0 0.0
    %1315 = vmatprep.subr.mxu0 0.0
    %1316 = vmatpush1.msra.mxu0 0.0
    %1317 = vmatprep.subr.mxu0 0.0
    %1318 = vmatpush1.msra.mxu0 0.0
    %1319 = vmatprep.subr.mxu0 0.0
    %1320 = vmatpush1.msra.mxu0 0.0
    %1321 = vmatprep.subr.mxu0 0.0
    %1322 = vmatpush1.msra.mxu0 0.0
    %1323 = vmatprep.subr.mxu0 0.0
    %1324 = vmatpush1.msra.mxu0 0.0
    %1325 = vmatprep.subr.mxu0 0.0
    %1326 = vmatpush1.msra.mxu0 0.0
    %1327 = vmatprep.subr.mxu0 0.0
    %1328 = vmatpush1.msra.mxu0 0.0
    %1329 = vmatprep.subr.mxu0 0.0
    %1330 = vmatpush1.msra.mxu0 0.0
    %1331 = vmatprep.subr.mxu0 0.0
    %1332 = vmatpush1.msra.mxu0 0.0
    %1333 = vmatprep.subr.mxu0 0.0
    %1334 = vmatpush1.msra.mxu0 0.0
    %1335 = vmatprep.subr.mxu0 0.0
    %1336 = vmatpush1.msra.mxu0 0.0
    %1337 = vmatprep.subr.mxu0 0.0
    %1338 = vmatpush1.msra.mxu0 0.0
    %1339 = vmatprep.subr.mxu0 0.0
    %1340 = vmatpush1.msra.mxu0 0.0
    %1341 = vmatprep.subr.mxu0 0.0
    %1342 = vmatpush1.msra.mxu0 0.0
    %1343 = vmatprep.subr.mxu0 0.0
    %1344 = vmatpush1.msra.mxu0 0.0
    %1345 = vmatprep.subr.mxu0 0.0
    %1346 = vmatpush1.msra.mxu0 0.0
    %1347 = vmatprep.subr.mxu0 0.0
    %1348 = vmatpush1.msra.mxu0 0.0
    %1349 = vmatprep.subr.mxu0 0.0
    %1350 = vmatpush1.msra.mxu0 0.0
    %1351 = vmatprep.subr.mxu0 0.0
    %1352 = vmatpush1.msra.mxu0 0.0
    %1353 = vmatprep.subr.mxu0 0.0
    %1354 = vmatpush1.msra.mxu0 0.0
    %1355 = vmatprep.subr.mxu0 0.0
    %1356 = vmatpush1.msra.mxu0 0.0
    %1357 = vmatprep.subr.mxu0 0.0
    %1358 = vmatpush1.msra.mxu0 0.0
    %1359 = vmatprep.mubr.f32.mxu0 0.0
    %v1360 = vand.u32 %v1062, 4294901760
    %v1361 = vsub.f32 %v1062, %v1360
    %v1362 = vand.u32 %v1361, 4294901760
    %1363 = vmatmul.mubr.f32.gmra.mrb[0].mxu0 %v1362
    %v1364 = vpop.f32.mrb[0].mxu0
    %v1365 = vadd.f32 %v1291, %v1364
    %v1366 = vpop.f32.mrb[0].mxu0
    %1367 = vdwg.mxu0
    %1368 = vmatprep.subr.mxu0 0.0
    %v1369 = vand.u32 %v1066, 4294901760
    %v1370 = vsub.f32 %v1066, %v1369
    %v1371 = vand.u32 %v1370, 4294901760
    %1372 = vmatpush1.msra.mxu0 %v1371
    %1373 = vmatprep.subr.mxu0 0.0
    %1374 = vmatpush1.msra.mxu0 0.0
    %1375 = vmatprep.subr.mxu0 0.0
    %1376 = vmatpush1.msra.mxu0 0.0
    %1377 = vmatprep.subr.mxu0 0.0
    %1378 = vmatpush1.msra.mxu0 0.0
    %1379 = vmatprep.subr.mxu0 0.0
    %1380 = vmatpush1.msra.mxu0 0.0
    %1381 = vmatprep.subr.mxu0 0.0
    %1382 = vmatpush1.msra.mxu0 0.0
    %1383 = vmatprep.subr.mxu0 0.0
    %1384 = vmatpush1.msra.mxu0 0.0
    %1385 = vmatprep.subr.mxu0 0.0
    %1386 = vmatpush1.msra.mxu0 0.0
    %1387 = vmatprep.subr.mxu0 0.0
    %1388 = vmatpush1.msra.mxu0 0.0
    %1389 = vmatprep.subr.mxu0 0.0
    %1390 = vmatpush1.msra.mxu0 0.0
    %1391 = vmatprep.subr.mxu0 0.0
    %1392 = vmatpush1.msra.mxu0 0.0
    %1393 = vmatprep.subr.mxu0 0.0
    %1394 = vmatpush1.msra.mxu0 0.0
    %1395 = vmatprep.subr.mxu0 0.0
    %1396 = vmatpush1.msra.mxu0 0.0
    %1397 = vmatprep.subr.mxu0 0.0
    %1398 = vmatpush1.msra.mxu0 0.0
    %1399 = vmatprep.subr.mxu0 0.0
    %1400 = vmatpush1.msra.mxu0 0.0
    %1401 = vmatprep.subr.mxu0 0.0
    %1402 = vmatpush1.msra.mxu0 0.0
    %1403 = vmatprep.subr.mxu0 0.0
    %1404 = vmatpush1.msra.mxu0 0.0
    %1405 = vmatprep.subr.mxu0 0.0
    %1406 = vmatpush1.msra.mxu0 0.0
    %1407 = vmatprep.subr.mxu0 0.0
    %1408 = vmatpush1.msra.mxu0 0.0
    %1409 = vmatprep.subr.mxu0 0.0
    %1410 = vmatpush1.msra.mxu0 0.0
    %1411 = vmatprep.subr.mxu0 0.0
    %1412 = vmatpush1.msra.mxu0 0.0
    %1413 = vmatprep.subr.mxu0 0.0
    %1414 = vmatpush1.msra.mxu0 0.0
    %1415 = vmatprep.subr.mxu0 0.0
    %1416 = vmatpush1.msra.mxu0 0.0
    %1417 = vmatprep.subr.mxu0 0.0
    %1418 = vmatpush1.msra.mxu0 0.0
    %1419 = vmatprep.subr.mxu0 0.0
    %1420 = vmatpush1.msra.mxu0 0.0
    %1421 = vmatprep.subr.mxu0 0.0
    %1422 = vmatpush1.msra.mxu0 0.0
    %1423 = vmatprep.subr.mxu0 0.0
    %1424 = vmatpush1.msra.mxu0 0.0
    %1425 = vmatprep.subr.mxu0 0.0
    %1426 = vmatpush1.msra.mxu0 0.0
    %1427 = vmatprep.subr.mxu0 0.0
    %1428 = vmatpush1.msra.mxu0 0.0
    %1429 = vmatprep.subr.mxu0 0.0
    %1430 = vmatpush1.msra.mxu0 0.0
    %1431 = vmatprep.subr.mxu0 0.0
    %1432 = vmatpush1.msra.mxu0 0.0
    %1433 = vmatprep.subr.mxu0 0.0
    %1434 = vmatpush1.msra.mxu0 0.0
    %1435 = vmatprep.mubr.f32.mxu0 0.0
    %v1436 = vand.u32 %v1062, 4294901760
    %1437 = vmatmul.mubr.f32.gmra.mrb[0].mxu0 %v1436
    %v1438 = vpop.f32.mrb[0].mxu0
    %v1439 = vadd.f32 %v1365, %v1438
    %v1440 = vpop.f32.mrb[0].mxu0
    %1441 = vdwg.mxu0
    %1442 = vmatprep.subr.mxu0 0.0
    %v1443 = vand.u32 %v1066, 4294901760
    %1444 = vmatpush1.msra.mxu0 %v1443
    %1445 = vmatprep.subr.mxu0 0.0
    %1446 = vmatpush1.msra.mxu0 0.0
    %1447 = vmatprep.subr.mxu0 0.0
    %1448 = vmatpush1.msra.mxu0 0.0
    %1449 = vmatprep.subr.mxu0 0.0
    %1450 = vmatpush1.msra.mxu0 0.0
    %1451 = vmatprep.subr.mxu0 0.0
    %1452 = vmatpush1.msra.mxu0 0.0
    %1453 = vmatprep.subr.mxu0 0.0
    %1454 = vmatpush1.msra.mxu0 0.0
    %1455 = vmatprep.subr.mxu0 0.0
    %1456 = vmatpush1.msra.mxu0 0.0
    %1457 = vmatprep.subr.mxu0 0.0
    %1458 = vmatpush1.msra.mxu0 0.0
    %1459 = vmatprep.subr.mxu0 0.0
    %1460 = vmatpush1.msra.mxu0 0.0
    %1461 = vmatprep.subr.mxu0 0.0
    %1462 = vmatpush1.msra.mxu0 0.0
    %1463 = vmatprep.subr.mxu0 0.0
    %1464 = vmatpush1.msra.mxu0 0.0
    %1465 = vmatprep.subr.mxu0 0.0
    %1466 = vmatpush1.msra.mxu0 0.0
    %1467 = vmatprep.subr.mxu0 0.0
    %1468 = vmatpush1.msra.mxu0 0.0
    %1469 = vmatprep.subr.mxu0 0.0
    %1470 = vmatpush1.msra.mxu0 0.0
    %1471 = vmatprep.subr.mxu0 0.0
    %1472 = vmatpush1.msra.mxu0 0.0
    %1473 = vmatprep.subr.mxu0 0.0
    %1474 = vmatpush1.msra.mxu0 0.0
    %1475 = vmatprep.subr.mxu0 0.0
    %1476 = vmatpush1.msra.mxu0 0.0
    %1477 = vmatprep.subr.mxu0 0.0
    %1478 = vmatpush1.msra.mxu0 0.0
    %1479 = vmatprep.subr.mxu0 0.0
    %1480 = vmatpush1.msra.mxu0 0.0
    %1481 = vmatprep.subr.mxu0 0.0
    %1482 = vmatpush1.msra.mxu0 0.0
    %1483 = vmatprep.subr.mxu0 0.0
    %1484 = vmatpush1.msra.mxu0 0.0
    %1485 = vmatprep.subr.mxu0 0.0
    %1486 = vmatpush1.msra.mxu0 0.0
    %1487 = vmatprep.subr.mxu0 0.0
    %1488 = vmatpush1.msra.mxu0 0.0
    %1489 = vmatprep.subr.mxu0 0.0
    %1490 = vmatpush1.msra.mxu0 0.0
    %1491 = vmatprep.subr.mxu0 0.0
    %1492 = vmatpush1.msra.mxu0 0.0
    %1493 = vmatprep.subr.mxu0 0.0
    %1494 = vmatpush1.msra.mxu0 0.0
    %1495 = vmatprep.subr.mxu0 0.0
    %1496 = vmatpush1.msra.mxu0 0.0
    %1497 = vmatprep.subr.mxu0 0.0
    %1498 = vmatpush1.msra.mxu0 0.0
    %1499 = vmatprep.subr.mxu0 0.0
    %1500 = vmatpush1.msra.mxu0 0.0
    %1501 = vmatprep.subr.mxu0 0.0
    %1502 = vmatpush1.msra.mxu0 0.0
    %1503 = vmatprep.subr.mxu0 0.0
    %1504 = vmatpush1.msra.mxu0 0.0
    %1505 = vmatprep.subr.mxu0 0.0
    %1506 = vmatpush1.msra.mxu0 0.0
    %1507 = vmatprep.mubr.f32.mxu0 0.0
    %v1508 = vand.u32 %v1062, 4294901760
    %1509 = vmatmul.mubr.f32.gmra.mrb[0].mxu0 %v1508
    %v1510 = vpop.f32.mrb[0].mxu0
    %v1511 = vadd.f32 %v1439, %v1510
    %v1512 = vpop.f32.mrb[0].mxu0
    %1513 = vdwg.mxu0
    %v1514 = vmul.f32 %v1511, %v1511
    %vm1515 = vcmask 261120
    %v1517 = vsel %vm1515, %v1514, 0
    %1519 = vmatprep.subr.mxu0 0.0
    %v1520 = vand.u32 %v42, 4294901760
    %1521 = vmatpush1.msra.mxu0 %v1520
    %1522 = vmatprep.subr.mxu0 0.0
    %v1523 = vand.u32 %v43, 4294901760
    %1524 = vmatpush1.msra.mxu0 %v1523
    %1525 = vmatprep.subr.mxu0 0.0
    %v1526 = vand.u32 %v44, 4294901760
    %1527 = vmatpush1.msra.mxu0 %v1526
    %1528 = vmatprep.subr.mxu0 0.0
    %v1529 = vand.u32 %v45, 4294901760
    %1530 = vmatpush1.msra.mxu0 %v1529
    %1531 = vmatprep.subr.mxu0 0.0
    %1532 = vmatpush1.msra.mxu0 0.0
    %1533 = vmatprep.subr.mxu0 0.0
    %1534 = vmatpush1.msra.mxu0 0.0
    %1535 = vmatprep.subr.mxu0 0.0
    %1536 = vmatpush1.msra.mxu0 0.0
    %1537 = vmatprep.subr.mxu0 0.0
    %1538 = vmatpush1.msra.mxu0 0.0
    %1539 = vmatprep.subr.mxu0 0.0
    %1540 = vmatpush1.msra.mxu0 0.0
    %1541 = vmatprep.subr.mxu0 0.0
    %1542 = vmatpush1.msra.mxu0 0.0
    %1543 = vmatprep.subr.mxu0 0.0
    %1544 = vmatpush1.msra.mxu0 0.0
    %1545 = vmatprep.subr.mxu0 0.0
    %1546 = vmatpush1.msra.mxu0 0.0
    %1547 = vmatprep.subr.mxu0 0.0
    %1548 = vmatpush1.msra.mxu0 0.0
    %1549 = vmatprep.subr.mxu0 0.0
    %1550 = vmatpush1.msra.mxu0 0.0
    %1551 = vmatprep.subr.mxu0 0.0
    %1552 = vmatpush1.msra.mxu0 0.0
    %1553 = vmatprep.subr.mxu0 0.0
    %1554 = vmatpush1.msra.mxu0 0.0
    %1555 = vmatprep.subr.mxu0 0.0
    %1556 = vmatpush1.msra.mxu0 0.0
    %1557 = vmatprep.subr.mxu0 0.0
    %1558 = vmatpush1.msra.mxu0 0.0
    %1559 = vmatprep.subr.mxu0 0.0
    %1560 = vmatpush1.msra.mxu0 0.0
    %1561 = vmatprep.subr.mxu0 0.0
    %1562 = vmatpush1.msra.mxu0 0.0
    %1563 = vmatprep.subr.mxu0 0.0
    %1564 = vmatpush1.msra.mxu0 0.0
    %1565 = vmatprep.subr.mxu0 0.0
    %1566 = vmatpush1.msra.mxu0 0.0
    %1567 = vmatprep.subr.mxu0 0.0
    %1568 = vmatpush1.msra.mxu0 0.0
    %1569 = vmatprep.subr.mxu0 0.0
    %1570 = vmatpush1.msra.mxu0 0.0
    %1571 = vmatprep.subr.mxu0 0.0
    %1572 = vmatpush1.msra.mxu0 0.0
    %1573 = vmatprep.subr.mxu0 0.0
    %1574 = vmatpush1.msra.mxu0 0.0
    %1575 = vmatprep.subr.mxu0 0.0
    %1576 = vmatpush1.msra.mxu0 0.0
    %1577 = vmatprep.subr.mxu0 0.0
    %1578 = vmatpush1.msra.mxu0 0.0
    %1579 = vmatprep.subr.mxu0 0.0
    %1580 = vmatpush1.msra.mxu0 0.0
    %1581 = vmatprep.subr.mxu0 0.0
    %1582 = vmatpush1.msra.mxu0 0.0
    %1583 = vmatprep.subr.mxu0 0.0
    %1584 = vmatpush1.msra.mxu0 0.0
    %1585 = vmatprep.subr.mxu0 0.0
    %1586 = vmatpush1.msra.mxu0 0.0
    %1587 = vmatprep.mubr.f32.mxu0 0.0
    %v1588 = vand.u32 %v1517, 4294901760
    %v1589 = vsub.f32 %v1517, %v1588
    %v1590 = vand.u32 %v1589, 4294901760
    %v1591 = vsub.f32 %v1589, %v1590
    %v1592 = vand.u32 %v1591, 4294901760
    %1593 = vmatmul.mubr.f32.gmra.mrb[0].mxu0 %v1592
    %v1594 = vpop.f32.mrb[0].mxu0
    %v1595 = vadd.f32 0.0, %v1594
    %v1596 = vpop.f32.mrb[0].mxu0
    %1597 = vdwg.mxu0
    %1598 = vmatprep.subr.mxu0 0.0
    %v1599 = vand.u32 %v42, 4294901760
    %v1600 = vsub.f32 %v42, %v1599
    %v1601 = vand.u32 %v1600, 4294901760
    %v1602 = vsub.f32 %v1600, %v1601
    %v1603 = vand.u32 %v1602, 4294901760
    %1604 = vmatpush1.msra.mxu0 %v1603
    %1605 = vmatprep.subr.mxu0 0.0
    %v1606 = vand.u32 %v43, 4294901760
    %v1607 = vsub.f32 %v43, %v1606
    %v1608 = vand.u32 %v1607, 4294901760
    %v1609 = vsub.f32 %v1607, %v1608
    %v1610 = vand.u32 %v1609, 4294901760
    %1611 = vmatpush1.msra.mxu0 %v1610
    %1612 = vmatprep.subr.mxu0 0.0
    %v1613 = vand.u32 %v44, 4294901760
    %v1614 = vsub.f32 %v44, %v1613
    %v1615 = vand.u32 %v1614, 4294901760
    %v1616 = vsub.f32 %v1614, %v1615
    %v1617 = vand.u32 %v1616, 4294901760
    %1618 = vmatpush1.msra.mxu0 %v1617
    %1619 = vmatprep.subr.mxu0 0.0
    %v1620 = vand.u32 %v45, 4294901760
    %v1621 = vsub.f32 %v45, %v1620
    %v1622 = vand.u32 %v1621, 4294901760
    %v1623 = vsub.f32 %v1621, %v1622
    %v1624 = vand.u32 %v1623, 4294901760
    %1625 = vmatpush1.msra.mxu0 %v1624
    %1626 = vmatprep.subr.mxu0 0.0
    %1627 = vmatpush1.msra.mxu0 0.0
    %1628 = vmatprep.subr.mxu0 0.0
    %1629 = vmatpush1.msra.mxu0 0.0
    %1630 = vmatprep.subr.mxu0 0.0
    %1631 = vmatpush1.msra.mxu0 0.0
    %1632 = vmatprep.subr.mxu0 0.0
    %1633 = vmatpush1.msra.mxu0 0.0
    %1634 = vmatprep.subr.mxu0 0.0
    %1635 = vmatpush1.msra.mxu0 0.0
    %1636 = vmatprep.subr.mxu0 0.0
    %1637 = vmatpush1.msra.mxu0 0.0
    %1638 = vmatprep.subr.mxu0 0.0
    %1639 = vmatpush1.msra.mxu0 0.0
    %1640 = vmatprep.subr.mxu0 0.0
    %1641 = vmatpush1.msra.mxu0 0.0
    %1642 = vmatprep.subr.mxu0 0.0
    %1643 = vmatpush1.msra.mxu0 0.0
    %1644 = vmatprep.subr.mxu0 0.0
    %1645 = vmatpush1.msra.mxu0 0.0
    %1646 = vmatprep.subr.mxu0 0.0
    %1647 = vmatpush1.msra.mxu0 0.0
    %1648 = vmatprep.subr.mxu0 0.0
    %1649 = vmatpush1.msra.mxu0 0.0
    %1650 = vmatprep.subr.mxu0 0.0
    %1651 = vmatpush1.msra.mxu0 0.0
    %1652 = vmatprep.subr.mxu0 0.0
    %1653 = vmatpush1.msra.mxu0 0.0
    %1654 = vmatprep.subr.mxu0 0.0
    %1655 = vmatpush1.msra.mxu0 0.0
    %1656 = vmatprep.subr.mxu0 0.0
    %1657 = vmatpush1.msra.mxu0 0.0
    %1658 = vmatprep.subr.mxu0 0.0
    %1659 = vmatpush1.msra.mxu0 0.0
    %1660 = vmatprep.subr.mxu0 0.0
    %1661 = vmatpush1.msra.mxu0 0.0
    %1662 = vmatprep.subr.mxu0 0.0
    %1663 = vmatpush1.msra.mxu0 0.0
    %1664 = vmatprep.subr.mxu0 0.0
    %1665 = vmatpush1.msra.mxu0 0.0
    %1666 = vmatprep.subr.mxu0 0.0
    %1667 = vmatpush1.msra.mxu0 0.0
    %1668 = vmatprep.subr.mxu0 0.0
    %1669 = vmatpush1.msra.mxu0 0.0
    %1670 = vmatprep.subr.mxu0 0.0
    %1671 = vmatpush1.msra.mxu0 0.0
    %1672 = vmatprep.subr.mxu0 0.0
    %1673 = vmatpush1.msra.mxu0 0.0
    %1674 = vmatprep.subr.mxu0 0.0
    %1675 = vmatpush1.msra.mxu0 0.0
    %1676 = vmatprep.subr.mxu0 0.0
    %1677 = vmatpush1.msra.mxu0 0.0
    %1678 = vmatprep.subr.mxu0 0.0
    %1679 = vmatpush1.msra.mxu0 0.0
    %1680 = vmatprep.subr.mxu0 0.0
    %1681 = vmatpush1.msra.mxu0 0.0
    %1682 = vmatprep.mubr.f32.mxu0 0.0
    %v1683 = vand.u32 %v1517, 4294901760
    %1684 = vmatmul.mubr.f32.gmra.mrb[0].mxu0 %v1683
    %v1685 = vpop.f32.mrb[0].mxu0
    %v1686 = vadd.f32 %v1595, %v1685
    %v1687 = vpop.f32.mrb[0].mxu0
    %1688 = vdwg.mxu0
    %1689 = vmatprep.subr.mxu0 0.0
    %v1690 = vand.u32 %v42, 4294901760
    %v1691 = vsub.f32 %v42, %v1690
    %1692 = vmatpush1.msra.mxu0 %v1691
    %1693 = vmatprep.subr.mxu0 0.0
    %v1694 = vand.u32 %v43, 4294901760
    %v1695 = vsub.f32 %v43, %v1694
    %1696 = vmatpush1.msra.mxu0 %v1695
    %1697 = vmatprep.subr.mxu0 0.0
    %v1698 = vand.u32 %v44, 4294901760
    %v1699 = vsub.f32 %v44, %v1698
    %1700 = vmatpush1.msra.mxu0 %v1699
    %1701 = vmatprep.subr.mxu0 0.0
    %v1702 = vand.u32 %v45, 4294901760
    %v1703 = vsub.f32 %v45, %v1702
    %1704 = vmatpush1.msra.mxu0 %v1703
    %1705 = vmatprep.subr.mxu0 0.0
    %1706 = vmatpush1.msra.mxu0 0.0
    %1707 = vmatprep.subr.mxu0 0.0
    %1708 = vmatpush1.msra.mxu0 0.0
    %1709 = vmatprep.subr.mxu0 0.0
    %1710 = vmatpush1.msra.mxu0 0.0
    %1711 = vmatprep.subr.mxu0 0.0
    %1712 = vmatpush1.msra.mxu0 0.0
    %1713 = vmatprep.subr.mxu0 0.0
    %1714 = vmatpush1.msra.mxu0 0.0
    %1715 = vmatprep.subr.mxu0 0.0
    %1716 = vmatpush1.msra.mxu0 0.0
    %1717 = vmatprep.subr.mxu0 0.0
    %1718 = vmatpush1.msra.mxu0 0.0
    %1719 = vmatprep.subr.mxu0 0.0
    %1720 = vmatpush1.msra.mxu0 0.0
    %1721 = vmatprep.subr.mxu0 0.0
    %1722 = vmatpush1.msra.mxu0 0.0
    %1723 = vmatprep.subr.mxu0 0.0
    %1724 = vmatpush1.msra.mxu0 0.0
    %1725 = vmatprep.subr.mxu0 0.0
    %1726 = vmatpush1.msra.mxu0 0.0
    %1727 = vmatprep.subr.mxu0 0.0
    %1728 = vmatpush1.msra.mxu0 0.0
    %1729 = vmatprep.subr.mxu0 0.0
    %1730 = vmatpush1.msra.mxu0 0.0
    %1731 = vmatprep.subr.mxu0 0.0
    %1732 = vmatpush1.msra.mxu0 0.0
    %1733 = vmatprep.subr.mxu0 0.0
    %1734 = vmatpush1.msra.mxu0 0.0
    %1735 = vmatprep.subr.mxu0 0.0
    %1736 = vmatpush1.msra.mxu0 0.0
    %1737 = vmatprep.subr.mxu0 0.0
    %1738 = vmatpush1.msra.mxu0 0.0
    %1739 = vmatprep.subr.mxu0 0.0
    %1740 = vmatpush1.msra.mxu0 0.0
    %1741 = vmatprep.subr.mxu0 0.0
    %1742 = vmatpush1.msra.mxu0 0.0
    %1743 = vmatprep.subr.mxu0 0.0
    %1744 = vmatpush1.msra.mxu0 0.0
    %1745 = vmatprep.subr.mxu0 0.0
    %1746 = vmatpush1.msra.mxu0 0.0
    %1747 = vmatprep.subr.mxu0 0.0
    %1748 = vmatpush1.msra.mxu0 0.0
    %1749 = vmatprep.subr.mxu0 0.0
    %1750 = vmatpush1.msra.mxu0 0.0
    %1751 = vmatprep.subr.mxu0 0.0
    %1752 = vmatpush1.msra.mxu0 0.0
    %1753 = vmatprep.subr.mxu0 0.0
    %1754 = vmatpush1.msra.mxu0 0.0
    %1755 = vmatprep.subr.mxu0 0.0
    %1756 = vmatpush1.msra.mxu0 0.0
    %1757 = vmatprep.subr.mxu0 0.0
    %1758 = vmatpush1.msra.mxu0 0.0
    %1759 = vmatprep.subr.mxu0 0.0
    %1760 = vmatpush1.msra.mxu0 0.0
    %1761 = vmatprep.mubr.f32.mxu0 0.0
    %v1762 = vand.u32 %v1517, 4294901760
    %v1763 = vsub.f32 %v1517, %v1762
    %1764 = vmatmul.mubr.f32.gmra.mrb[0].mxu0 %v1763
    %v1765 = vpop.f32.mrb[0].mxu0
    %v1766 = vadd.f32 %v1686, %v1765
    %v1767 = vpop.f32.mrb[0].mxu0
    %1768 = vdwg.mxu0
    %1769 = vmatprep.subr.mxu0 0.0
    %v1770 = vand.u32 %v42, 4294901760
    %1771 = vmatpush1.msra.mxu0 %v1770
    %1772 = vmatprep.subr.mxu0 0.0
    %v1773 = vand.u32 %v43, 4294901760
    %1774 = vmatpush1.msra.mxu0 %v1773
    %1775 = vmatprep.subr.mxu0 0.0
    %v1776 = vand.u32 %v44, 4294901760
    %1777 = vmatpush1.msra.mxu0 %v1776
    %1778 = vmatprep.subr.mxu0 0.0
    %v1779 = vand.u32 %v45, 4294901760
    %1780 = vmatpush1.msra.mxu0 %v1779
    %1781 = vmatprep.subr.mxu0 0.0
    %1782 = vmatpush1.msra.mxu0 0.0
    %1783 = vmatprep.subr.mxu0 0.0
    %1784 = vmatpush1.msra.mxu0 0.0
    %1785 = vmatprep.subr.mxu0 0.0
    %1786 = vmatpush1.msra.mxu0 0.0
    %1787 = vmatprep.subr.mxu0 0.0
    %1788 = vmatpush1.msra.mxu0 0.0
    %1789 = vmatprep.subr.mxu0 0.0
    %1790 = vmatpush1.msra.mxu0 0.0
    %1791 = vmatprep.subr.mxu0 0.0
    %1792 = vmatpush1.msra.mxu0 0.0
    %1793 = vmatprep.subr.mxu0 0.0
    %1794 = vmatpush1.msra.mxu0 0.0
    %1795 = vmatprep.subr.mxu0 0.0
    %1796 = vmatpush1.msra.mxu0 0.0
    %1797 = vmatprep.subr.mxu0 0.0
    %1798 = vmatpush1.msra.mxu0 0.0
    %1799 = vmatprep.subr.mxu0 0.0
    %1800 = vmatpush1.msra.mxu0 0.0
    %1801 = vmatprep.subr.mxu0 0.0
    %1802 = vmatpush1.msra.mxu0 0.0
    %1803 = vmatprep.subr.mxu0 0.0
    %1804 = vmatpush1.msra.mxu0 0.0
    %1805 = vmatprep.subr.mxu0 0.0
    %1806 = vmatpush1.msra.mxu0 0.0
    %1807 = vmatprep.subr.mxu0 0.0
    %1808 = vmatpush1.msra.mxu0 0.0
    %1809 = vmatprep.subr.mxu0 0.0
    %1810 = vmatpush1.msra.mxu0 0.0
    %1811 = vmatprep.subr.mxu0 0.0
    %1812 = vmatpush1.msra.mxu0 0.0
    %1813 = vmatprep.subr.mxu0 0.0
    %1814 = vmatpush1.msra.mxu0 0.0
    %1815 = vmatprep.subr.mxu0 0.0
    %1816 = vmatpush1.msra.mxu0 0.0
    %1817 = vmatprep.subr.mxu0 0.0
    %1818 = vmatpush1.msra.mxu0 0.0
    %1819 = vmatprep.subr.mxu0 0.0
    %1820 = vmatpush1.msra.mxu0 0.0
    %1821 = vmatprep.subr.mxu0 0.0
    %1822 = vmatpush1.msra.mxu0 0.0
    %1823 = vmatprep.subr.mxu0 0.0
    %1824 = vmatpush1.msra.mxu0 0.0
    %1825 = vmatprep.subr.mxu0 0.0
    %1826 = vmatpush1.msra.mxu0 0.0
    %1827 = vmatprep.subr.mxu0 0.0
    %1828 = vmatpush1.msra.mxu0 0.0
    %1829 = vmatprep.subr.mxu0 0.0
    %1830 = vmatpush1.msra.mxu0 0.0
    %1831 = vmatprep.subr.mxu0 0.0
    %1832 = vmatpush1.msra.mxu0 0.0
    %1833 = vmatprep.subr.mxu0 0.0
    %1834 = vmatpush1.msra.mxu0 0.0
    %1835 = vmatprep.subr.mxu0 0.0
    %1836 = vmatpush1.msra.mxu0 0.0
    %1837 = vmatprep.mubr.f32.mxu0 0.0
    %v1838 = vand.u32 %v1517, 4294901760
    %v1839 = vsub.f32 %v1517, %v1838
    %v1840 = vand.u32 %v1839, 4294901760
    %1841 = vmatmul.mubr.f32.gmra.mrb[0].mxu0 %v1840
    %v1842 = vpop.f32.mrb[0].mxu0
    %v1843 = vadd.f32 %v1766, %v1842
    %v1844 = vpop.f32.mrb[0].mxu0
    %1845 = vdwg.mxu0
    %1846 = vmatprep.subr.mxu0 0.0
    %v1847 = vand.u32 %v42, 4294901760
    %v1848 = vsub.f32 %v42, %v1847
    %v1849 = vand.u32 %v1848, 4294901760
    %1850 = vmatpush1.msra.mxu0 %v1849
    %1851 = vmatprep.subr.mxu0 0.0
    %v1852 = vand.u32 %v43, 4294901760
    %v1853 = vsub.f32 %v43, %v1852
    %v1854 = vand.u32 %v1853, 4294901760
    %1855 = vmatpush1.msra.mxu0 %v1854
    %1856 = vmatprep.subr.mxu0 0.0
    %v1857 = vand.u32 %v44, 4294901760
    %v1858 = vsub.f32 %v44, %v1857
    %v1859 = vand.u32 %v1858, 4294901760
    %1860 = vmatpush1.msra.mxu0 %v1859
    %1861 = vmatprep.subr.mxu0 0.0
    %v1862 = vand.u32 %v45, 4294901760
    %v1863 = vsub.f32 %v45, %v1862
    %v1864 = vand.u32 %v1863, 4294901760
    %1865 = vmatpush1.msra.mxu0 %v1864
    %1866 = vmatprep.subr.mxu0 0.0
    %1867 = vmatpush1.msra.mxu0 0.0
    %1868 = vmatprep.subr.mxu0 0.0
    %1869 = vmatpush1.msra.mxu0 0.0
    %1870 = vmatprep.subr.mxu0 0.0
    %1871 = vmatpush1.msra.mxu0 0.0
    %1872 = vmatprep.subr.mxu0 0.0
    %1873 = vmatpush1.msra.mxu0 0.0
    %1874 = vmatprep.subr.mxu0 0.0
    %1875 = vmatpush1.msra.mxu0 0.0
    %1876 = vmatprep.subr.mxu0 0.0
    %1877 = vmatpush1.msra.mxu0 0.0
    %1878 = vmatprep.subr.mxu0 0.0
    %1879 = vmatpush1.msra.mxu0 0.0
    %1880 = vmatprep.subr.mxu0 0.0
    %1881 = vmatpush1.msra.mxu0 0.0
    %1882 = vmatprep.subr.mxu0 0.0
    %1883 = vmatpush1.msra.mxu0 0.0
    %1884 = vmatprep.subr.mxu0 0.0
    %1885 = vmatpush1.msra.mxu0 0.0
    %1886 = vmatprep.subr.mxu0 0.0
    %1887 = vmatpush1.msra.mxu0 0.0
    %1888 = vmatprep.subr.mxu0 0.0
    %1889 = vmatpush1.msra.mxu0 0.0
    %1890 = vmatprep.subr.mxu0 0.0
    %1891 = vmatpush1.msra.mxu0 0.0
    %1892 = vmatprep.subr.mxu0 0.0
    %1893 = vmatpush1.msra.mxu0 0.0
    %1894 = vmatprep.subr.mxu0 0.0
    %1895 = vmatpush1.msra.mxu0 0.0
    %1896 = vmatprep.subr.mxu0 0.0
    %1897 = vmatpush1.msra.mxu0 0.0
    %1898 = vmatprep.subr.mxu0 0.0
    %1899 = vmatpush1.msra.mxu0 0.0
    %1900 = vmatprep.subr.mxu0 0.0
    %1901 = vmatpush1.msra.mxu0 0.0
    %1902 = vmatprep.subr.mxu0 0.0
    %1903 = vmatpush1.msra.mxu0 0.0
    %1904 = vmatprep.subr.mxu0 0.0
    %1905 = vmatpush1.msra.mxu0 0.0
    %1906 = vmatprep.subr.mxu0 0.0
    %1907 = vmatpush1.msra.mxu0 0.0
    %1908 = vmatprep.subr.mxu0 0.0
    %1909 = vmatpush1.msra.mxu0 0.0
    %1910 = vmatprep.subr.mxu0 0.0
    %1911 = vmatpush1.msra.mxu0 0.0
    %1912 = vmatprep.subr.mxu0 0.0
    %1913 = vmatpush1.msra.mxu0 0.0
    %1914 = vmatprep.subr.mxu0 0.0
    %1915 = vmatpush1.msra.mxu0 0.0
    %1916 = vmatprep.subr.mxu0 0.0
    %1917 = vmatpush1.msra.mxu0 0.0
    %1918 = vmatprep.subr.mxu0 0.0
    %1919 = vmatpush1.msra.mxu0 0.0
    %1920 = vmatprep.subr.mxu0 0.0
    %1921 = vmatpush1.msra.mxu0 0.0
    %1922 = vmatprep.mubr.f32.mxu0 0.0
    %v1923 = vand.u32 %v1517, 4294901760
    %1924 = vmatmul.mubr.f32.gmra.mrb[0].mxu0 %v1923
    %v1925 = vpop.f32.mrb[0].mxu0
    %v1926 = vadd.f32 %v1843, %v1925
    %v1927 = vpop.f32.mrb[0].mxu0
    %1928 = vdwg.mxu0
    %1929 = vmatprep.subr.mxu0 0.0
    %v1930 = vand.u32 %v42, 4294901760
    %1931 = vmatpush1.msra.mxu0 %v1930
    %1932 = vmatprep.subr.mxu0 0.0
    %v1933 = vand.u32 %v43, 4294901760
    %1934 = vmatpush1.msra.mxu0 %v1933
    %1935 = vmatprep.subr.mxu0 0.0
    %v1936 = vand.u32 %v44, 4294901760
    %1937 = vmatpush1.msra.mxu0 %v1936
    %1938 = vmatprep.subr.mxu0 0.0
    %v1939 = vand.u32 %v45, 4294901760
    %1940 = vmatpush1.msra.mxu0 %v1939
    %1941 = vmatprep.subr.mxu0 0.0
    %1942 = vmatpush1.msra.mxu0 0.0
    %1943 = vmatprep.subr.mxu0 0.0
    %1944 = vmatpush1.msra.mxu0 0.0
    %1945 = vmatprep.subr.mxu0 0.0
    %1946 = vmatpush1.msra.mxu0 0.0
    %1947 = vmatprep.subr.mxu0 0.0
    %1948 = vmatpush1.msra.mxu0 0.0
    %1949 = vmatprep.subr.mxu0 0.0
    %1950 = vmatpush1.msra.mxu0 0.0
    %1951 = vmatprep.subr.mxu0 0.0
    %1952 = vmatpush1.msra.mxu0 0.0
    %1953 = vmatprep.subr.mxu0 0.0
    %1954 = vmatpush1.msra.mxu0 0.0
    %1955 = vmatprep.subr.mxu0 0.0
    %1956 = vmatpush1.msra.mxu0 0.0
    %1957 = vmatprep.subr.mxu0 0.0
    %1958 = vmatpush1.msra.mxu0 0.0
    %1959 = vmatprep.subr.mxu0 0.0
    %1960 = vmatpush1.msra.mxu0 0.0
    %1961 = vmatprep.subr.mxu0 0.0
    %1962 = vmatpush1.msra.mxu0 0.0
    %1963 = vmatprep.subr.mxu0 0.0
    %1964 = vmatpush1.msra.mxu0 0.0
    %1965 = vmatprep.subr.mxu0 0.0
    %1966 = vmatpush1.msra.mxu0 0.0
    %1967 = vmatprep.subr.mxu0 0.0
    %1968 = vmatpush1.msra.mxu0 0.0
    %1969 = vmatprep.subr.mxu0 0.0
    %1970 = vmatpush1.msra.mxu0 0.0
    %1971 = vmatprep.subr.mxu0 0.0
    %1972 = vmatpush1.msra.mxu0 0.0
    %1973 = vmatprep.subr.mxu0 0.0
    %1974 = vmatpush1.msra.mxu0 0.0
    %1975 = vmatprep.subr.mxu0 0.0
    %1976 = vmatpush1.msra.mxu0 0.0
    %1977 = vmatprep.subr.mxu0 0.0
    %1978 = vmatpush1.msra.mxu0 0.0
    %1979 = vmatprep.subr.mxu0 0.0
    %1980 = vmatpush1.msra.mxu0 0.0
    %1981 = vmatprep.subr.mxu0 0.0
    %1982 = vmatpush1.msra.mxu0 0.0
    %1983 = vmatprep.subr.mxu0 0.0
    %1984 = vmatpush1.msra.mxu0 0.0
    %1985 = vmatprep.subr.mxu0 0.0
    %1986 = vmatpush1.msra.mxu0 0.0
    %1987 = vmatprep.subr.mxu0 0.0
    %1988 = vmatpush1.msra.mxu0 0.0
    %1989 = vmatprep.subr.mxu0 0.0
    %1990 = vmatpush1.msra.mxu0 0.0
    %1991 = vmatprep.subr.mxu0 0.0
    %1992 = vmatpush1.msra.mxu0 0.0
    %1993 = vmatprep.subr.mxu0 0.0
    %1994 = vmatpush1.msra.mxu0 0.0
    %1995 = vmatprep.subr.mxu0 0.0
    %1996 = vmatpush1.msra.mxu0 0.0
    %1997 = vmatprep.mubr.f32.mxu0 0.0
    %v1998 = vand.u32 %v1517, 4294901760
    %1999 = vmatmul.mubr.f32.gmra.mrb[0].mxu0 %v1998
    %v2000 = vpop.f32.mrb[0].mxu0
    %v2001 = vadd.f32 %v1926, %v2000
    %v2002 = vpop.f32.mrb[0].mxu0
    %2003 = vdwg.mxu0
    %vm2004 = vcmask 64512
    %2005 = vst.msk [vmem:[#allocation2] sm:$0xff] %vm2004, %v2001
    %2007 = vset.pattern.permute.xlu0 0
    %2008 = vperm.xlu0 %2007, %v46
    %v2009 = vpop.permute.xlu0 %2008
    %2012 = vset.pattern.permute.xlu0 0
    %2013 = vperm.xlu0 %2012, %v47
    %v2014 = vpop.permute.xlu0 %2013
    %2017 = vset.pattern.permute.xlu0 0
    %2018 = vperm.xlu0 %2017, %v48
    %v2019 = vpop.permute.xlu0 %2018
    %2022 = vset.pattern.permute.xlu0 0
    %2023 = vperm.xlu0 %2022, %v49
    %v2024 = vpop.permute.xlu0 %2023
    %2027 = vset.pattern.permute.xlu0 0
    %2028 = vperm.xlu0 %2027, %v50
    %v2029 = vpop.permute.xlu0 %2028
    %2032 = vset.pattern.permute.xlu0 0
    %2033 = vperm.xlu0 %2032, %v51
    %v2034 = vpop.permute.xlu0 %2033
    %2037 = vset.pattern.permute.xlu0 0
    %2038 = vperm.xlu0 %2037, %v52
    %v2039 = vpop.permute.xlu0 %2038
    %2042 = vset.pattern.permute.xlu0 0
    %2043 = vperm.xlu0 %2042, %v53
    %v2044 = vpop.permute.xlu0 %2043
    %v2046 = vmul.f32 %v46, %v2009
    %v2047 = vmul.f32 %v47, %v2014
    %v2048 = vmul.f32 %v48, %v2019
    %v2049 = vmul.f32 %v49, %v2024
    %v2050 = vmul.f32 %v50, %v2029
    %v2051 = vmul.f32 %v51, %v2034
    %v2052 = vmul.f32 %v52, %v2039
    %v2053 = vmul.f32 %v53, %v2044
    %2054 = vset.pattern.permute.xlu0 1
    %2055 = vperm.xlu0 %2054, %v46
    %v2056 = vpop.permute.xlu0 %2055
    %2058 = vset.pattern.permute.xlu0 1
    %2059 = vperm.xlu0 %2058, %v47
    %v2060 = vpop.permute.xlu0 %2059
    %2062 = vset.pattern.permute.xlu0 1
    %2063 = vperm.xlu0 %2062, %v48
    %v2064 = vpop.permute.xlu0 %2063
    %2066 = vset.pattern.permute.xlu0 1
    %2067 = vperm.xlu0 %2066, %v49
    %v2068 = vpop.permute.xlu0 %2067
    %2070 = vset.pattern.permute.xlu0 1
    %2071 = vperm.xlu0 %2070, %v50
    %v2072 = vpop.permute.xlu0 %2071
    %2074 = vset.pattern.permute.xlu0 1
    %2075 = vperm.xlu0 %2074, %v51
    %v2076 = vpop.permute.xlu0 %2075
    %2078 = vset.pattern.permute.xlu0 1
    %2079 = vperm.xlu0 %2078, %v52
    %v2080 = vpop.permute.xlu0 %2079
    %2082 = vset.pattern.permute.xlu0 1
    %2083 = vperm.xlu0 %2082, %v53
    %v2084 = vpop.permute.xlu0 %2083
    %v2086 = vmul.f32 %v46, %v2056
    %v2087 = vmul.f32 %v47, %v2060
    %v2088 = vmul.f32 %v48, %v2064
    %v2089 = vmul.f32 %v49, %v2068
    %v2090 = vmul.f32 %v50, %v2072
    %v2091 = vmul.f32 %v51, %v2076
    %v2092 = vmul.f32 %v52, %v2080
    %v2093 = vmul.f32 %v53, %v2084
    %2094 = vset.pattern.permute.xlu0 2
    %2095 = vperm.xlu0 %2094, %v46
    %v2096 = vpop.permute.xlu0 %2095
    %2098 = vset.pattern.permute.xlu0 2
    %2099 = vperm.xlu0 %2098, %v47
    %v2100 = vpop.permute.xlu0 %2099
    %2102 = vset.pattern.permute.xlu0 2
    %2103 = vperm.xlu0 %2102, %v48
    %v2104 = vpop.permute.xlu0 %2103
    %2106 = vset.pattern.permute.xlu0 2
    %2107 = vperm.xlu0 %2106, %v49
    %v2108 = vpop.permute.xlu0 %2107
    %2110 = vset.pattern.permute.xlu0 2
    %2111 = vperm.xlu0 %2110, %v50
    %v2112 = vpop.permute.xlu0 %2111
    %2114 = vset.pattern.permute.xlu0 2
    %2115 = vperm.xlu0 %2114, %v51
    %v2116 = vpop.permute.xlu0 %2115
    %2118 = vset.pattern.permute.xlu0 2
    %2119 = vperm.xlu0 %2118, %v52
    %v2120 = vpop.permute.xlu0 %2119
    %2122 = vset.pattern.permute.xlu0 2
    %2123 = vperm.xlu0 %2122, %v53
    %v2124 = vpop.permute.xlu0 %2123
    %v2126 = vmul.f32 %v46, %v2096
    %v2127 = vmul.f32 %v47, %v2100
    %v2128 = vmul.f32 %v48, %v2104
    %v2129 = vmul.f32 %v49, %v2108
    %v2130 = vmul.f32 %v50, %v2112
    %v2131 = vmul.f32 %v51, %v2116
    %v2132 = vmul.f32 %v52, %v2120
    %v2133 = vmul.f32 %v53, %v2124
    %2134 = vset.pattern.permute.xlu0 3
    %2135 = vperm.xlu0 %2134, %v46
    %v2136 = vpop.permute.xlu0 %2135
    %2138 = vset.pattern.permute.xlu0 3
    %2139 = vperm.xlu0 %2138, %v47
    %v2140 = vpop.permute.xlu0 %2139
    %2142 = vset.pattern.permute.xlu0 3
    %2143 = vperm.xlu0 %2142, %v48
    %v2144 = vpop.permute.xlu0 %2143
    %2146 = vset.pattern.permute.xlu0 3
    %2147 = vperm.xlu0 %2146, %v49
    %v2148 = vpop.permute.xlu0 %2147
    %2150 = vset.pattern.permute.xlu0 3
    %2151 = vperm.xlu0 %2150, %v50
    %v2152 = vpop.permute.xlu0 %2151
    %2154 = vset.pattern.permute.xlu0 3
    %2155 = vperm.xlu0 %2154, %v51
    %v2156 = vpop.permute.xlu0 %2155
    %2158 = vset.pattern.permute.xlu0 3
    %2159 = vperm.xlu0 %2158, %v52
    %v2160 = vpop.permute.xlu0 %2159
    %2162 = vset.pattern.permute.xlu0 3
    %2163 = vperm.xlu0 %2162, %v53
    %v2164 = vpop.permute.xlu0 %2163
    %v2166 = vmul.f32 %v46, %v2136
    %v2167 = vmul.f32 %v47, %v2140
    %v2168 = vmul.f32 %v48, %v2144
    %v2169 = vmul.f32 %v49, %v2148
    %v2170 = vmul.f32 %v50, %v2152
    %v2171 = vmul.f32 %v51, %v2156
    %v2172 = vmul.f32 %v52, %v2160
    %v2173 = vmul.f32 %v53, %v2164
    %2174 = vset.pattern.permute.xlu0 4
    %2175 = vperm.xlu0 %2174, %v46
    %v2176 = vpop.permute.xlu0 %2175
    %2178 = vset.pattern.permute.xlu0 4
    %2179 = vperm.xlu0 %2178, %v47
    %v2180 = vpop.permute.xlu0 %2179
    %2182 = vset.pattern.permute.xlu0 4
    %2183 = vperm.xlu0 %2182, %v48
    %v2184 = vpop.permute.xlu0 %2183
    %2186 = vset.pattern.permute.xlu0 4
    %2187 = vperm.xlu0 %2186, %v49
    %v2188 = vpop.permute.xlu0 %2187
    %2190 = vset.pattern.permute.xlu0 4
    %2191 = vperm.xlu0 %2190, %v50
    %v2192 = vpop.permute.xlu0 %2191
    %2194 = vset.pattern.permute.xlu0 4
    %2195 = vperm.xlu0 %2194, %v51
    %v2196 = vpop.permute.xlu0 %2195
    %2198 = vset.pattern.permute.xlu0 4
    %2199 = vperm.xlu0 %2198, %v52
    %v2200 = vpop.permute.xlu0 %2199
    %2202 = vset.pattern.permute.xlu0 4
    %2203 = vperm.xlu0 %2202, %v53
    %v2204 = vpop.permute.xlu0 %2203
    %v2206 = vmul.f32 %v46, %v2176
    %v2207 = vmul.f32 %v47, %v2180
    %v2208 = vmul.f32 %v48, %v2184
    %v2209 = vmul.f32 %v49, %v2188
    %v2210 = vmul.f32 %v50, %v2192
    %v2211 = vmul.f32 %v51, %v2196
    %v2212 = vmul.f32 %v52, %v2200
    %v2213 = vmul.f32 %v53, %v2204
    %2214 = vset.pattern.permute.xlu0 5
    %2215 = vperm.xlu0 %2214, %v46
    %v2216 = vpop.permute.xlu0 %2215
    %2218 = vset.pattern.permute.xlu0 5
    %2219 = vperm.xlu0 %2218, %v47
    %v2220 = vpop.permute.xlu0 %2219
    %2222 = vset.pattern.permute.xlu0 5
    %2223 = vperm.xlu0 %2222, %v48
    %v2224 = vpop.permute.xlu0 %2223
    %2226 = vset.pattern.permute.xlu0 5
    %2227 = vperm.xlu0 %2226, %v49
    %v2228 = vpop.permute.xlu0 %2227
    %2230 = vset.pattern.permute.xlu0 5
    %2231 = vperm.xlu0 %2230, %v50
    %v2232 = vpop.permute.xlu0 %2231
    %2234 = vset.pattern.permute.xlu0 5
    %2235 = vperm.xlu0 %2234, %v51
    %v2236 = vpop.permute.xlu0 %2235
    %2238 = vset.pattern.permute.xlu0 5
    %2239 = vperm.xlu0 %2238, %v52
    %v2240 = vpop.permute.xlu0 %2239
    %2242 = vset.pattern.permute.xlu0 5
    %2243 = vperm.xlu0 %2242, %v53
    %v2244 = vpop.permute.xlu0 %2243
    %v2246 = vmul.f32 %v46, %v2216
    %v2247 = vmul.f32 %v47, %v2220
    %v2248 = vmul.f32 %v48, %v2224
    %v2249 = vmul.f32 %v49, %v2228
    %v2250 = vmul.f32 %v50, %v2232
    %v2251 = vmul.f32 %v51, %v2236
    %v2252 = vmul.f32 %v52, %v2240
    %v2253 = vmul.f32 %v53, %v2244
    %2254 = vset.pattern.permute.xlu0 6
    %2255 = vperm.xlu0 %2254, %v46
    %v2256 = vpop.permute.xlu0 %2255
    %2258 = vset.pattern.permute.xlu0 6
    %2259 = vperm.xlu0 %2258, %v47
    %v2260 = vpop.permute.xlu0 %2259
    %2262 = vset.pattern.permute.xlu0 6
    %2263 = vperm.xlu0 %2262, %v48
    %v2264 = vpop.permute.xlu0 %2263
    %2266 = vset.pattern.permute.xlu0 6
    %2267 = vperm.xlu0 %2266, %v49
    %v2268 = vpop.permute.xlu0 %2267
    %2270 = vset.pattern.permute.xlu0 6
    %2271 = vperm.xlu0 %2270, %v50
    %v2272 = vpop.permute.xlu0 %2271
    %2274 = vset.pattern.permute.xlu0 6
    %2275 = vperm.xlu0 %2274, %v51
    %v2276 = vpop.permute.xlu0 %2275
    %2278 = vset.pattern.permute.xlu0 6
    %2279 = vperm.xlu0 %2278, %v52
    %v2280 = vpop.permute.xlu0 %2279
    %2282 = vset.pattern.permute.xlu0 6
    %2283 = vperm.xlu0 %2282, %v53
    %v2284 = vpop.permute.xlu0 %2283
    %v2286 = vmul.f32 %v46, %v2256
    %v2287 = vmul.f32 %v47, %v2260
    %v2288 = vmul.f32 %v48, %v2264
    %v2289 = vmul.f32 %v49, %v2268
    %v2290 = vmul.f32 %v50, %v2272
    %v2291 = vmul.f32 %v51, %v2276
    %v2292 = vmul.f32 %v52, %v2280
    %v2293 = vmul.f32 %v53, %v2284
    %2294 = vset.pattern.permute.xlu0 7
    %2295 = vperm.xlu0 %2294, %v46
    %v2296 = vpop.permute.xlu0 %2295
    %2298 = vset.pattern.permute.xlu0 7
    %2299 = vperm.xlu0 %2298, %v47
    %v2300 = vpop.permute.xlu0 %2299
    %2302 = vset.pattern.permute.xlu0 7
    %2303 = vperm.xlu0 %2302, %v48
    %v2304 = vpop.permute.xlu0 %2303
    %2306 = vset.pattern.permute.xlu0 7
    %2307 = vperm.xlu0 %2306, %v49
    %v2308 = vpop.permute.xlu0 %2307
    %2310 = vset.pattern.permute.xlu0 7
    %2311 = vperm.xlu0 %2310, %v50
    %v2312 = vpop.permute.xlu0 %2311
    %2314 = vset.pattern.permute.xlu0 7
    %2315 = vperm.xlu0 %2314, %v51
    %v2316 = vpop.permute.xlu0 %2315
    %2318 = vset.pattern.permute.xlu0 7
    %2319 = vperm.xlu0 %2318, %v52
    %v2320 = vpop.permute.xlu0 %2319
    %2322 = vset.pattern.permute.xlu0 7
    %2323 = vperm.xlu0 %2322, %v53
    %v2324 = vpop.permute.xlu0 %2323
    %v2326 = vmul.f32 %v46, %v2296
    %v2327 = vmul.f32 %v47, %v2300
    %v2328 = vmul.f32 %v48, %v2304
    %v2329 = vmul.f32 %v49, %v2308
    %v2330 = vmul.f32 %v50, %v2312
    %v2331 = vmul.f32 %v51, %v2316
    %v2332 = vmul.f32 %v52, %v2320
    %v2333 = vmul.f32 %v53, %v2324
    %2334 = vset.pattern.permute.xlu0 8
    %2335 = vperm.xlu0 %2334, %v46
    %v2336 = vpop.permute.xlu0 %2335
    %2338 = vset.pattern.permute.xlu0 8
    %2339 = vperm.xlu0 %2338, %v47
    %v2340 = vpop.permute.xlu0 %2339
    %2342 = vset.pattern.permute.xlu0 8
    %2343 = vperm.xlu0 %2342, %v48
    %v2344 = vpop.permute.xlu0 %2343
    %2346 = vset.pattern.permute.xlu0 8
    %2347 = vperm.xlu0 %2346, %v49
    %v2348 = vpop.permute.xlu0 %2347
    %2350 = vset.pattern.permute.xlu0 8
    %2351 = vperm.xlu0 %2350, %v50
    %v2352 = vpop.permute.xlu0 %2351
    %2354 = vset.pattern.permute.xlu0 8
    %2355 = vperm.xlu0 %2354, %v51
    %v2356 = vpop.permute.xlu0 %2355
    %2358 = vset.pattern.permute.xlu0 8
    %2359 = vperm.xlu0 %2358, %v52
    %v2360 = vpop.permute.xlu0 %2359
    %2362 = vset.pattern.permute.xlu0 8
    %2363 = vperm.xlu0 %2362, %v53
    %v2364 = vpop.permute.xlu0 %2363
    %v2366 = vmul.f32 %v46, %v2336
    %v2367 = vmul.f32 %v47, %v2340
    %v2368 = vmul.f32 %v48, %v2344
    %v2369 = vmul.f32 %v49, %v2348
    %v2370 = vmul.f32 %v50, %v2352
    %v2371 = vmul.f32 %v51, %v2356
    %v2372 = vmul.f32 %v52, %v2360
    %v2373 = vmul.f32 %v53, %v2364
    %2374 = vset.pattern.permute.xlu0 9
    %2375 = vperm.xlu0 %2374, %v46
    %v2376 = vpop.permute.xlu0 %2375
    %2378 = vset.pattern.permute.xlu0 9
    %2379 = vperm.xlu0 %2378, %v47
    %v2380 = vpop.permute.xlu0 %2379
    %2382 = vset.pattern.permute.xlu0 9
    %2383 = vperm.xlu0 %2382, %v48
    %v2384 = vpop.permute.xlu0 %2383
    %2386 = vset.pattern.permute.xlu0 9
    %2387 = vperm.xlu0 %2386, %v49
    %v2388 = vpop.permute.xlu0 %2387
    %2390 = vset.pattern.permute.xlu0 9
    %2391 = vperm.xlu0 %2390, %v50
    %v2392 = vpop.permute.xlu0 %2391
    %2394 = vset.pattern.permute.xlu0 9
    %2395 = vperm.xlu0 %2394, %v51
    %v2396 = vpop.permute.xlu0 %2395
    %2398 = vset.pattern.permute.xlu0 9
    %2399 = vperm.xlu0 %2398, %v52
    %v2400 = vpop.permute.xlu0 %2399
    %2402 = vset.pattern.permute.xlu0 9
    %2403 = vperm.xlu0 %2402, %v53
    %v2404 = vpop.permute.xlu0 %2403
    %v2406 = vmul.f32 %v46, %v2376
    %v2407 = vmul.f32 %v47, %v2380
    %v2408 = vmul.f32 %v48, %v2384
    %v2409 = vmul.f32 %v49, %v2388
    %v2410 = vmul.f32 %v50, %v2392
    %v2411 = vmul.f32 %v51, %v2396
    %v2412 = vmul.f32 %v52, %v2400
    %v2413 = vmul.f32 %v53, %v2404
    %2414 = vset.pattern.permute.xlu0 10
    %2415 = vperm.xlu0 %2414, %v46
    %v2416 = vpop.permute.xlu0 %2415
    %2418 = vset.pattern.permute.xlu0 10
    %2419 = vperm.xlu0 %2418, %v47
    %v2420 = vpop.permute.xlu0 %2419
    %2422 = vset.pattern.permute.xlu0 10
    %2423 = vperm.xlu0 %2422, %v48
    %v2424 = vpop.permute.xlu0 %2423
    %2426 = vset.pattern.permute.xlu0 10
    %2427 = vperm.xlu0 %2426, %v49
    %v2428 = vpop.permute.xlu0 %2427
    %2430 = vset.pattern.permute.xlu0 10
    %2431 = vperm.xlu0 %2430, %v50
    %v2432 = vpop.permute.xlu0 %2431
    %2434 = vset.pattern.permute.xlu0 10
    %2435 = vperm.xlu0 %2434, %v51
    %v2436 = vpop.permute.xlu0 %2435
    %2438 = vset.pattern.permute.xlu0 10
    %2439 = vperm.xlu0 %2438, %v52
    %v2440 = vpop.permute.xlu0 %2439
    %2442 = vset.pattern.permute.xlu0 10
    %2443 = vperm.xlu0 %2442, %v53
    %v2444 = vpop.permute.xlu0 %2443
    %v2446 = vmul.f32 %v46, %v2416
    %v2447 = vmul.f32 %v47, %v2420
    %v2448 = vmul.f32 %v48, %v2424
    %v2449 = vmul.f32 %v49, %v2428
    %v2450 = vmul.f32 %v50, %v2432
    %v2451 = vmul.f32 %v51, %v2436
    %v2452 = vmul.f32 %v52, %v2440
    %v2453 = vmul.f32 %v53, %v2444
    %2454 = vset.pattern.permute.xlu0 11
    %2455 = vperm.xlu0 %2454, %v46
    %v2456 = vpop.permute.xlu0 %2455
    %2458 = vset.pattern.permute.xlu0 11
    %2459 = vperm.xlu0 %2458, %v47
    %v2460 = vpop.permute.xlu0 %2459
    %2462 = vset.pattern.permute.xlu0 11
    %2463 = vperm.xlu0 %2462, %v48
    %v2464 = vpop.permute.xlu0 %2463
    %2466 = vset.pattern.permute.xlu0 11
    %2467 = vperm.xlu0 %2466, %v49
    %v2468 = vpop.permute.xlu0 %2467
    %2470 = vset.pattern.permute.xlu0 11
    %2471 = vperm.xlu0 %2470, %v50
    %v2472 = vpop.permute.xlu0 %2471
    %2474 = vset.pattern.permute.xlu0 11
    %2475 = vperm.xlu0 %2474, %v51
    %v2476 = vpop.permute.xlu0 %2475
    %2478 = vset.pattern.permute.xlu0 11
    %2479 = vperm.xlu0 %2478, %v52
    %v2480 = vpop.permute.xlu0 %2479
    %2482 = vset.pattern.permute.xlu0 11
    %2483 = vperm.xlu0 %2482, %v53
    %v2484 = vpop.permute.xlu0 %2483
    %v2486 = vmul.f32 %v46, %v2456
    %v2487 = vmul.f32 %v47, %v2460
    %v2488 = vmul.f32 %v48, %v2464
    %v2489 = vmul.f32 %v49, %v2468
    %v2490 = vmul.f32 %v50, %v2472
    %v2491 = vmul.f32 %v51, %v2476
    %v2492 = vmul.f32 %v52, %v2480
    %v2493 = vmul.f32 %v53, %v2484
    %2494 = vset.pattern.permute.xlu0 12
    %2495 = vperm.xlu0 %2494, %v46
    %v2496 = vpop.permute.xlu0 %2495
    %2498 = vset.pattern.permute.xlu0 12
    %2499 = vperm.xlu0 %2498, %v47
    %v2500 = vpop.permute.xlu0 %2499
    %2502 = vset.pattern.permute.xlu0 12
    %2503 = vperm.xlu0 %2502, %v48
    %v2504 = vpop.permute.xlu0 %2503
    %2506 = vset.pattern.permute.xlu0 12
    %2507 = vperm.xlu0 %2506, %v49
    %v2508 = vpop.permute.xlu0 %2507
    %2510 = vset.pattern.permute.xlu0 12
    %2511 = vperm.xlu0 %2510, %v50
    %v2512 = vpop.permute.xlu0 %2511
    %2514 = vset.pattern.permute.xlu0 12
    %2515 = vperm.xlu0 %2514, %v51
    %v2516 = vpop.permute.xlu0 %2515
    %2518 = vset.pattern.permute.xlu0 12
    %2519 = vperm.xlu0 %2518, %v52
    %v2520 = vpop.permute.xlu0 %2519
    %2522 = vset.pattern.permute.xlu0 12
    %2523 = vperm.xlu0 %2522, %v53
    %v2524 = vpop.permute.xlu0 %2523
    %v2526 = vmul.f32 %v46, %v2496
    %v2527 = vmul.f32 %v47, %v2500
    %v2528 = vmul.f32 %v48, %v2504
    %v2529 = vmul.f32 %v49, %v2508
    %v2530 = vmul.f32 %v50, %v2512
    %v2531 = vmul.f32 %v51, %v2516
    %v2532 = vmul.f32 %v52, %v2520
    %v2533 = vmul.f32 %v53, %v2524
    %2534 = vset.pattern.permute.xlu0 13
    %2535 = vperm.xlu0 %2534, %v46
    %v2536 = vpop.permute.xlu0 %2535
    %2538 = vset.pattern.permute.xlu0 13
    %2539 = vperm.xlu0 %2538, %v47
    %v2540 = vpop.permute.xlu0 %2539
    %2542 = vset.pattern.permute.xlu0 13
    %2543 = vperm.xlu0 %2542, %v48
    %v2544 = vpop.permute.xlu0 %2543
    %2546 = vset.pattern.permute.xlu0 13
    %2547 = vperm.xlu0 %2546, %v49
    %v2548 = vpop.permute.xlu0 %2547
    %2550 = vset.pattern.permute.xlu0 13
    %2551 = vperm.xlu0 %2550, %v50
    %v2552 = vpop.permute.xlu0 %2551
    %2554 = vset.pattern.permute.xlu0 13
    %2555 = vperm.xlu0 %2554, %v51
    %v2556 = vpop.permute.xlu0 %2555
    %2558 = vset.pattern.permute.xlu0 13
    %2559 = vperm.xlu0 %2558, %v52
    %v2560 = vpop.permute.xlu0 %2559
    %2562 = vset.pattern.permute.xlu0 13
    %2563 = vperm.xlu0 %2562, %v53
    %v2564 = vpop.permute.xlu0 %2563
    %v2566 = vmul.f32 %v46, %v2536
    %v2567 = vmul.f32 %v47, %v2540
    %v2568 = vmul.f32 %v48, %v2544
    %v2569 = vmul.f32 %v49, %v2548
    %v2570 = vmul.f32 %v50, %v2552
    %v2571 = vmul.f32 %v51, %v2556
    %v2572 = vmul.f32 %v52, %v2560
    %v2573 = vmul.f32 %v53, %v2564
    %2574 = vset.pattern.permute.xlu0 14
    %2575 = vperm.xlu0 %2574, %v46
    %v2576 = vpop.permute.xlu0 %2575
    %2578 = vset.pattern.permute.xlu0 14
    %2579 = vperm.xlu0 %2578, %v47
    %v2580 = vpop.permute.xlu0 %2579
    %2582 = vset.pattern.permute.xlu0 14
    %2583 = vperm.xlu0 %2582, %v48
    %v2584 = vpop.permute.xlu0 %2583
    %2586 = vset.pattern.permute.xlu0 14
    %2587 = vperm.xlu0 %2586, %v49
    %v2588 = vpop.permute.xlu0 %2587
    %2590 = vset.pattern.permute.xlu0 14
    %2591 = vperm.xlu0 %2590, %v50
    %v2592 = vpop.permute.xlu0 %2591
    %2594 = vset.pattern.permute.xlu0 14
    %2595 = vperm.xlu0 %2594, %v51
    %v2596 = vpop.permute.xlu0 %2595
    %2598 = vset.pattern.permute.xlu0 14
    %2599 = vperm.xlu0 %2598, %v52
    %v2600 = vpop.permute.xlu0 %2599
    %2602 = vset.pattern.permute.xlu0 14
    %2603 = vperm.xlu0 %2602, %v53
    %v2604 = vpop.permute.xlu0 %2603
    %v2606 = vmul.f32 %v46, %v2576
    %v2607 = vmul.f32 %v47, %v2580
    %v2608 = vmul.f32 %v48, %v2584
    %v2609 = vmul.f32 %v49, %v2588
    %v2610 = vmul.f32 %v50, %v2592
    %v2611 = vmul.f32 %v51, %v2596
    %v2612 = vmul.f32 %v52, %v2600
    %v2613 = vmul.f32 %v53, %v2604
    %2614 = vset.pattern.permute.xlu0 15
    %2615 = vperm.xlu0 %2614, %v46
    %v2616 = vpop.permute.xlu0 %2615
    %2618 = vset.pattern.permute.xlu0 15
    %2619 = vperm.xlu0 %2618, %v47
    %v2620 = vpop.permute.xlu0 %2619
    %2622 = vset.pattern.permute.xlu0 15
    %2623 = vperm.xlu0 %2622, %v48
    %v2624 = vpop.permute.xlu0 %2623
    %2626 = vset.pattern.permute.xlu0 15
    %2627 = vperm.xlu0 %2626, %v49
    %v2628 = vpop.permute.xlu0 %2627
    %2630 = vset.pattern.permute.xlu0 15
    %2631 = vperm.xlu0 %2630, %v50
    %v2632 = vpop.permute.xlu0 %2631
    %2634 = vset.pattern.permute.xlu0 15
    %2635 = vperm.xlu0 %2634, %v51
    %v2636 = vpop.permute.xlu0 %2635
    %2638 = vset.pattern.permute.xlu0 15
    %2639 = vperm.xlu0 %2638, %v52
    %v2640 = vpop.permute.xlu0 %2639
    %2642 = vset.pattern.permute.xlu0 15
    %2643 = vperm.xlu0 %2642, %v53
    %v2644 = vpop.permute.xlu0 %2643
    %v2646 = vmul.f32 %v46, %v2616
    %v2647 = vmul.f32 %v47, %v2620
    %v2648 = vmul.f32 %v48, %v2624
    %v2649 = vmul.f32 %v49, %v2628
    %v2650 = vmul.f32 %v50, %v2632
    %v2651 = vmul.f32 %v51, %v2636
    %v2652 = vmul.f32 %v52, %v2640
    %v2653 = vmul.f32 %v53, %v2644
    %2662 = vrot.lane.b32.xlu0 %v2086, 16
    %v2663 = vpop.permute.xlu0 %2662
    %2664 = vrot.lane.b32.xlu0 %v2087, 16
    %v2665 = vpop.permute.xlu0 %2664
    %2666 = vrot.lane.b32.xlu0 %v2088, 16
    %v2667 = vpop.permute.xlu0 %2666
    %2668 = vrot.lane.b32.xlu0 %v2089, 16
    %v2669 = vpop.permute.xlu0 %2668
    %2670 = vrot.lane.b32.xlu0 %v2090, 16
    %v2671 = vpop.permute.xlu0 %2670
    %2672 = vrot.lane.b32.xlu0 %v2091, 16
    %v2673 = vpop.permute.xlu0 %2672
    %2674 = vrot.lane.b32.xlu0 %v2092, 16
    %v2675 = vpop.permute.xlu0 %2674
    %2676 = vrot.lane.b32.xlu0 %v2093, 16
    %v2677 = vpop.permute.xlu0 %2676
    %2694 = vrot.lane.b32.xlu0 %v2126, 32
    %v2695 = vpop.permute.xlu0 %2694
    %2696 = vrot.lane.b32.xlu0 %v2127, 32
    %v2697 = vpop.permute.xlu0 %2696
    %2698 = vrot.lane.b32.xlu0 %v2128, 32
    %v2699 = vpop.permute.xlu0 %2698
    %2700 = vrot.lane.b32.xlu0 %v2129, 32
    %v2701 = vpop.permute.xlu0 %2700
    %2702 = vrot.lane.b32.xlu0 %v2130, 32
    %v2703 = vpop.permute.xlu0 %2702
    %2704 = vrot.lane.b32.xlu0 %v2131, 32
    %v2705 = vpop.permute.xlu0 %2704
    %2706 = vrot.lane.b32.xlu0 %v2132, 32
    %v2707 = vpop.permute.xlu0 %2706
    %2708 = vrot.lane.b32.xlu0 %v2133, 32
    %v2709 = vpop.permute.xlu0 %2708
    %2726 = vrot.lane.b32.xlu0 %v2166, 48
    %v2727 = vpop.permute.xlu0 %2726
    %2728 = vrot.lane.b32.xlu0 %v2167, 48
    %v2729 = vpop.permute.xlu0 %2728
    %2730 = vrot.lane.b32.xlu0 %v2168, 48
    %v2731 = vpop.permute.xlu0 %2730
    %2732 = vrot.lane.b32.xlu0 %v2169, 48
    %v2733 = vpop.permute.xlu0 %2732
    %2734 = vrot.lane.b32.xlu0 %v2170, 48
    %v2735 = vpop.permute.xlu0 %2734
    %2736 = vrot.lane.b32.xlu0 %v2171, 48
    %v2737 = vpop.permute.xlu0 %2736
    %2738 = vrot.lane.b32.xlu0 %v2172, 48
    %v2739 = vpop.permute.xlu0 %2738
    %2740 = vrot.lane.b32.xlu0 %v2173, 48
    %v2741 = vpop.permute.xlu0 %2740
    %2758 = vrot.lane.b32.xlu0 %v2206, 64
    %v2759 = vpop.permute.xlu0 %2758
    %2760 = vrot.lane.b32.xlu0 %v2207, 64
    %v2761 = vpop.permute.xlu0 %2760
    %2762 = vrot.lane.b32.xlu0 %v2208, 64
    %v2763 = vpop.permute.xlu0 %2762
    %2764 = vrot.lane.b32.xlu0 %v2209, 64
    %v2765 = vpop.permute.xlu0 %2764
    %2766 = vrot.lane.b32.xlu0 %v2210, 64
    %v2767 = vpop.permute.xlu0 %2766
    %2768 = vrot.lane.b32.xlu0 %v2211, 64
    %v2769 = vpop.permute.xlu0 %2768
    %2770 = vrot.lane.b32.xlu0 %v2212, 64
    %v2771 = vpop.permute.xlu0 %2770
    %2772 = vrot.lane.b32.xlu0 %v2213, 64
    %v2773 = vpop.permute.xlu0 %2772
    %2790 = vrot.lane.b32.xlu0 %v2246, 80
    %v2791 = vpop.permute.xlu0 %2790
    %2792 = vrot.lane.b32.xlu0 %v2247, 80
    %v2793 = vpop.permute.xlu0 %2792
    %2794 = vrot.lane.b32.xlu0 %v2248, 80
    %v2795 = vpop.permute.xlu0 %2794
    %2796 = vrot.lane.b32.xlu0 %v2249, 80
    %v2797 = vpop.permute.xlu0 %2796
    %2798 = vrot.lane.b32.xlu0 %v2250, 80
    %v2799 = vpop.permute.xlu0 %2798
    %2800 = vrot.lane.b32.xlu0 %v2251, 80
    %v2801 = vpop.permute.xlu0 %2800
    %2802 = vrot.lane.b32.xlu0 %v2252, 80
    %v2803 = vpop.permute.xlu0 %2802
    %2804 = vrot.lane.b32.xlu0 %v2253, 80
    %v2805 = vpop.permute.xlu0 %2804
    %2822 = vrot.lane.b32.xlu0 %v2286, 96
    %v2823 = vpop.permute.xlu0 %2822
    %2824 = vrot.lane.b32.xlu0 %v2287, 96
    %v2825 = vpop.permute.xlu0 %2824
    %2826 = vrot.lane.b32.xlu0 %v2288, 96
    %v2827 = vpop.permute.xlu0 %2826
    %2828 = vrot.lane.b32.xlu0 %v2289, 96
    %v2829 = vpop.permute.xlu0 %2828
    %2830 = vrot.lane.b32.xlu0 %v2290, 96
    %v2831 = vpop.permute.xlu0 %2830
    %2832 = vrot.lane.b32.xlu0 %v2291, 96
    %v2833 = vpop.permute.xlu0 %2832
    %2834 = vrot.lane.b32.xlu0 %v2292, 96
    %v2835 = vpop.permute.xlu0 %2834
    %2836 = vrot.lane.b32.xlu0 %v2293, 96
    %v2837 = vpop.permute.xlu0 %2836
    %2854 = vrot.lane.b32.xlu0 %v2326, 112
    %v2855 = vpop.permute.xlu0 %2854
    %2856 = vrot.lane.b32.xlu0 %v2327, 112
    %v2857 = vpop.permute.xlu0 %2856
    %2858 = vrot.lane.b32.xlu0 %v2328, 112
    %v2859 = vpop.permute.xlu0 %2858
    %2860 = vrot.lane.b32.xlu0 %v2329, 112
    %v2861 = vpop.permute.xlu0 %2860
    %2862 = vrot.lane.b32.xlu0 %v2330, 112
    %v2863 = vpop.permute.xlu0 %2862
    %2864 = vrot.lane.b32.xlu0 %v2331, 112
    %v2865 = vpop.permute.xlu0 %2864
    %2866 = vrot.lane.b32.xlu0 %v2332, 112
    %v2867 = vpop.permute.xlu0 %2866
    %2868 = vrot.lane.b32.xlu0 %v2333, 112
    %v2869 = vpop.permute.xlu0 %2868
    %2886 = vrot.lane.b32.xlu0 %v2406, 16
    %v2887 = vpop.permute.xlu0 %2886
    %2888 = vrot.lane.b32.xlu0 %v2407, 16
    %v2889 = vpop.permute.xlu0 %2888
    %2890 = vrot.lane.b32.xlu0 %v2408, 16
    %v2891 = vpop.permute.xlu0 %2890
    %2892 = vrot.lane.b32.xlu0 %v2409, 16
    %v2893 = vpop.permute.xlu0 %2892
    %2894 = vrot.lane.b32.xlu0 %v2410, 16
    %v2895 = vpop.permute.xlu0 %2894
    %2896 = vrot.lane.b32.xlu0 %v2411, 16
    %v2897 = vpop.permute.xlu0 %2896
    %2898 = vrot.lane.b32.xlu0 %v2412, 16
    %v2899 = vpop.permute.xlu0 %2898
    %2900 = vrot.lane.b32.xlu0 %v2413, 16
    %v2901 = vpop.permute.xlu0 %2900
    %2918 = vrot.lane.b32.xlu0 %v2446, 32
    %v2919 = vpop.permute.xlu0 %2918
    %2920 = vrot.lane.b32.xlu0 %v2447, 32
    %v2921 = vpop.permute.xlu0 %2920
    %2922 = vrot.lane.b32.xlu0 %v2448, 32
    %v2923 = vpop.permute.xlu0 %2922
    %2924 = vrot.lane.b32.xlu0 %v2449, 32
    %v2925 = vpop.permute.xlu0 %2924
    %2926 = vrot.lane.b32.xlu0 %v2450, 32
    %v2927 = vpop.permute.xlu0 %2926
    %2928 = vrot.lane.b32.xlu0 %v2451, 32
    %v2929 = vpop.permute.xlu0 %2928
    %2930 = vrot.lane.b32.xlu0 %v2452, 32
    %v2931 = vpop.permute.xlu0 %2930
    %2932 = vrot.lane.b32.xlu0 %v2453, 32
    %v2933 = vpop.permute.xlu0 %2932
    %2950 = vrot.lane.b32.xlu0 %v2486, 48
    %v2951 = vpop.permute.xlu0 %2950
    %2952 = vrot.lane.b32.xlu0 %v2487, 48
    %v2953 = vpop.permute.xlu0 %2952
    %2954 = vrot.lane.b32.xlu0 %v2488, 48
    %v2955 = vpop.permute.xlu0 %2954
    %2956 = vrot.lane.b32.xlu0 %v2489, 48
    %v2957 = vpop.permute.xlu0 %2956
    %2958 = vrot.lane.b32.xlu0 %v2490, 48
    %v2959 = vpop.permute.xlu0 %2958
    %2960 = vrot.lane.b32.xlu0 %v2491, 48
    %v2961 = vpop.permute.xlu0 %2960
    %2962 = vrot.lane.b32.xlu0 %v2492, 48
    %v2963 = vpop.permute.xlu0 %2962
    %2964 = vrot.lane.b32.xlu0 %v2493, 48
    %v2965 = vpop.permute.xlu0 %2964
    %2982 = vrot.lane.b32.xlu0 %v2526, 64
    %v2983 = vpop.permute.xlu0 %2982
    %2984 = vrot.lane.b32.xlu0 %v2527, 64
    %v2985 = vpop.permute.xlu0 %2984
    %2986 = vrot.lane.b32.xlu0 %v2528, 64
    %v2987 = vpop.permute.xlu0 %2986
    %2988 = vrot.lane.b32.xlu0 %v2529, 64
    %v2989 = vpop.permute.xlu0 %2988
    %2990 = vrot.lane.b32.xlu0 %v2530, 64
    %v2991 = vpop.permute.xlu0 %2990
    %2992 = vrot.lane.b32.xlu0 %v2531, 64
    %v2993 = vpop.permute.xlu0 %2992
    %2994 = vrot.lane.b32.xlu0 %v2532, 64
    %v2995 = vpop.permute.xlu0 %2994
    %2996 = vrot.lane.b32.xlu0 %v2533, 64
    %v2997 = vpop.permute.xlu0 %2996
    %3014 = vrot.lane.b32.xlu0 %v2566, 80
    %v3015 = vpop.permute.xlu0 %3014
    %3016 = vrot.lane.b32.xlu0 %v2567, 80
    %v3017 = vpop.permute.xlu0 %3016
    %3018 = vrot.lane.b32.xlu0 %v2568, 80
    %v3019 = vpop.permute.xlu0 %3018
    %3020 = vrot.lane.b32.xlu0 %v2569, 80
    %v3021 = vpop.permute.xlu0 %3020
    %3022 = vrot.lane.b32.xlu0 %v2570, 80
    %v3023 = vpop.permute.xlu0 %3022
    %3024 = vrot.lane.b32.xlu0 %v2571, 80
    %v3025 = vpop.permute.xlu0 %3024
    %3026 = vrot.lane.b32.xlu0 %v2572, 80
    %v3027 = vpop.permute.xlu0 %3026
    %3028 = vrot.lane.b32.xlu0 %v2573, 80
    %v3029 = vpop.permute.xlu0 %3028
    %3046 = vrot.lane.b32.xlu0 %v2606, 96
    %v3047 = vpop.permute.xlu0 %3046
    %3048 = vrot.lane.b32.xlu0 %v2607, 96
    %v3049 = vpop.permute.xlu0 %3048
    %3050 = vrot.lane.b32.xlu0 %v2608, 96
    %v3051 = vpop.permute.xlu0 %3050
    %3052 = vrot.lane.b32.xlu0 %v2609, 96
    %v3053 = vpop.permute.xlu0 %3052
    %3054 = vrot.lane.b32.xlu0 %v2610, 96
    %v3055 = vpop.permute.xlu0 %3054
    %3056 = vrot.lane.b32.xlu0 %v2611, 96
    %v3057 = vpop.permute.xlu0 %3056
    %3058 = vrot.lane.b32.xlu0 %v2612, 96
    %v3059 = vpop.permute.xlu0 %3058
    %3060 = vrot.lane.b32.xlu0 %v2613, 96
    %v3061 = vpop.permute.xlu0 %3060
    %3078 = vrot.lane.b32.xlu0 %v2646, 112
    %v3079 = vpop.permute.xlu0 %3078
    %3080 = vrot.lane.b32.xlu0 %v2647, 112
    %v3081 = vpop.permute.xlu0 %3080
    %3082 = vrot.lane.b32.xlu0 %v2648, 112
    %v3083 = vpop.permute.xlu0 %3082
    %3084 = vrot.lane.b32.xlu0 %v2649, 112
    %v3085 = vpop.permute.xlu0 %3084
    %3086 = vrot.lane.b32.xlu0 %v2650, 112
    %v3087 = vpop.permute.xlu0 %3086
    %3088 = vrot.lane.b32.xlu0 %v2651, 112
    %v3089 = vpop.permute.xlu0 %3088
    %3090 = vrot.lane.b32.xlu0 %v2652, 112
    %v3091 = vpop.permute.xlu0 %3090
    %3092 = vrot.lane.b32.xlu0 %v2653, 112
    %v3093 = vpop.permute.xlu0 %3092
    %v3102 = vsel %vm55, %v2046, %v2663
    %v3103 = vsel %vm55, %v2047, %v2665
    %v3104 = vsel %vm55, %v2048, %v2667
    %v3105 = vsel %vm55, %v2049, %v2669
    %v3106 = vsel %vm55, %v2050, %v2671
    %v3107 = vsel %vm55, %v2051, %v2673
    %v3108 = vsel %vm55, %v2052, %v2675
    %v3109 = vsel %vm55, %v2053, %v2677
    %v3110 = vsel %vm1515, %v3102, %v2695
    %v3111 = vsel %vm1515, %v3103, %v2697
    %v3112 = vsel %vm1515, %v3104, %v2699
    %v3113 = vsel %vm1515, %v3105, %v2701
    %v3114 = vsel %vm1515, %v3106, %v2703
    %v3115 = vsel %vm1515, %v3107, %v2705
    %v3116 = vsel %vm1515, %v3108, %v2707
    %v3117 = vsel %vm1515, %v3109, %v2709
    %vm3118 = vcmask 392192
    %v3119 = vsel %vm3118, %v3110, %v2727
    %v3120 = vsel %vm3118, %v3111, %v2729
    %v3121 = vsel %vm3118, %v3112, %v2731
    %v3122 = vsel %vm3118, %v3113, %v2733
    %v3123 = vsel %vm3118, %v3114, %v2735
    %v3124 = vsel %vm3118, %v3115, %v2737
    %v3125 = vsel %vm3118, %v3116, %v2739
    %v3126 = vsel %vm3118, %v3117, %v2741
    %v3127 = vsel %vm519, %v3119, %v2759
    %v3128 = vsel %vm519, %v3120, %v2761
    %v3129 = vsel %vm519, %v3121, %v2763
    %v3130 = vsel %vm519, %v3122, %v2765
    %v3131 = vsel %vm519, %v3123, %v2767
    %v3132 = vsel %vm519, %v3124, %v2769
    %v3133 = vsel %vm519, %v3125, %v2771
    %v3134 = vsel %vm519, %v3126, %v2773
    %vm3135 = vcmask 654336
    %v3136 = vsel %vm3135, %v3127, %v2791
    %v3137 = vsel %vm3135, %v3128, %v2793
    %v3138 = vsel %vm3135, %v3129, %v2795
    %v3139 = vsel %vm3135, %v3130, %v2797
    %v3140 = vsel %vm3135, %v3131, %v2799
    %v3141 = vsel %vm3135, %v3132, %v2801
    %v3142 = vsel %vm3135, %v3133, %v2803
    %v3143 = vsel %vm3135, %v3134, %v2805
    %vm3144 = vcmask 785408
    %v3145 = vsel %vm3144, %v3136, %v2823
    %v3146 = vsel %vm3144, %v3137, %v2825
    %v3147 = vsel %vm3144, %v3138, %v2827
    %v3148 = vsel %vm3144, %v3139, %v2829
    %v3149 = vsel %vm3144, %v3140, %v2831
    %v3150 = vsel %vm3144, %v3141, %v2833
    %v3151 = vsel %vm3144, %v3142, %v2835
    %v3152 = vsel %vm3144, %v3143, %v2837
    %vm3153 = vcmask 916480
    %v3154 = vsel %vm3153, %v3145, %v2855
    %v3155 = vsel %vm3153, %v3146, %v2857
    %v3156 = vsel %vm3153, %v3147, %v2859
    %v3157 = vsel %vm3153, %v3148, %v2861
    %v3158 = vsel %vm3153, %v3149, %v2863
    %v3159 = vsel %vm3153, %v3150, %v2865
    %v3160 = vsel %vm3153, %v3151, %v2867
    %v3161 = vsel %vm3153, %v3152, %v2869
    %v3162 = vsel %vm55, %v2366, %v2887
    %v3163 = vsel %vm55, %v2367, %v2889
    %v3164 = vsel %vm55, %v2368, %v2891
    %v3165 = vsel %vm55, %v2369, %v2893
    %v3166 = vsel %vm55, %v2370, %v2895
    %v3167 = vsel %vm55, %v2371, %v2897
    %v3168 = vsel %vm55, %v2372, %v2899
    %v3169 = vsel %vm55, %v2373, %v2901
    %v3170 = vsel %vm1515, %v3162, %v2919
    %v3171 = vsel %vm1515, %v3163, %v2921
    %v3172 = vsel %vm1515, %v3164, %v2923
    %v3173 = vsel %vm1515, %v3165, %v2925
    %v3174 = vsel %vm1515, %v3166, %v2927
    %v3175 = vsel %vm1515, %v3167, %v2929
    %v3176 = vsel %vm1515, %v3168, %v2931
    %v3177 = vsel %vm1515, %v3169, %v2933
    %v3178 = vsel %vm3118, %v3170, %v2951
    %v3179 = vsel %vm3118, %v3171, %v2953
    %v3180 = vsel %vm3118, %v3172, %v2955
    %v3181 = vsel %vm3118, %v3173, %v2957
    %v3182 = vsel %vm3118, %v3174, %v2959
    %v3183 = vsel %vm3118, %v3175, %v2961
    %v3184 = vsel %vm3118, %v3176, %v2963
    %v3185 = vsel %vm3118, %v3177, %v2965
    %v3186 = vsel %vm519, %v3178, %v2983
    %v3187 = vsel %vm519, %v3179, %v2985
    %v3188 = vsel %vm519, %v3180, %v2987
    %v3189 = vsel %vm519, %v3181, %v2989
    %v3190 = vsel %vm519, %v3182, %v2991
    %v3191 = vsel %vm519, %v3183, %v2993
    %v3192 = vsel %vm519, %v3184, %v2995
    %v3193 = vsel %vm519, %v3185, %v2997
    %v3194 = vsel %vm3135, %v3186, %v3015
    %v3195 = vsel %vm3135, %v3187, %v3017
    %v3196 = vsel %vm3135, %v3188, %v3019
    %v3197 = vsel %vm3135, %v3189, %v3021
    %v3198 = vsel %vm3135, %v3190, %v3023
    %v3199 = vsel %vm3135, %v3191, %v3025
    %v3200 = vsel %vm3135, %v3192, %v3027
    %v3201 = vsel %vm3135, %v3193, %v3029
    %v3202 = vsel %vm3144, %v3194, %v3047
    %v3203 = vsel %vm3144, %v3195, %v3049
    %v3204 = vsel %vm3144, %v3196, %v3051
    %v3205 = vsel %vm3144, %v3197, %v3053
    %v3206 = vsel %vm3144, %v3198, %v3055
    %v3207 = vsel %vm3144, %v3199, %v3057
    %v3208 = vsel %vm3144, %v3200, %v3059
    %v3209 = vsel %vm3144, %v3201, %v3061
    %v3210 = vsel %vm3153, %v3202, %v3079
    %v3211 = vsel %vm3153, %v3203, %v3081
    %v3212 = vsel %vm3153, %v3204, %v3083
    %v3213 = vsel %vm3153, %v3205, %v3085
    %v3214 = vsel %vm3153, %v3206, %v3087
    %v3215 = vsel %vm3153, %v3207, %v3089
    %v3216 = vsel %vm3153, %v3208, %v3091
    %v3217 = vsel %vm3153, %v3209, %v3093
    %v3219 = vsel %vm519, %v54, 0
    %v3221 = vand.u32 %v3210, 4294901760
    %3222 = vmatprep.subr.mxu0 %v3221
    %v3223 = vand.u32 %v3154, 4294901760
    %3224 = vmatpush1.msra.mxu0 %v3223
    %v3225 = vand.u32 %v3211, 4294901760
    %3226 = vmatprep.subr.mxu0 %v3225
    %v3227 = vand.u32 %v3155, 4294901760
    %3228 = vmatpush1.msra.mxu0 %v3227
    %v3229 = vand.u32 %v3212, 4294901760
    %3230 = vmatprep.subr.mxu0 %v3229
    %v3231 = vand.u32 %v3156, 4294901760
    %3232 = vmatpush1.msra.mxu0 %v3231
    %v3233 = vand.u32 %v3213, 4294901760
    %3234 = vmatprep.subr.mxu0 %v3233
    %v3235 = vand.u32 %v3157, 4294901760
    %3236 = vmatpush1.msra.mxu0 %v3235
    %v3237 = vand.u32 %v3214, 4294901760
    %3238 = vmatprep.subr.mxu0 %v3237
    %v3239 = vand.u32 %v3158, 4294901760
    %3240 = vmatpush1.msra.mxu0 %v3239
    %v3241 = vand.u32 %v3215, 4294901760
    %3242 = vmatprep.subr.mxu0 %v3241
    %v3243 = vand.u32 %v3159, 4294901760
    %3244 = vmatpush1.msra.mxu0 %v3243
    %v3245 = vand.u32 %v3216, 4294901760
    %3246 = vmatprep.subr.mxu0 %v3245
    %v3247 = vand.u32 %v3160, 4294901760
    %3248 = vmatpush1.msra.mxu0 %v3247
    %v3249 = vand.u32 %v3217, 4294901760
    %3250 = vmatprep.subr.mxu0 %v3249
    %v3251 = vand.u32 %v3161, 4294901760
    %3252 = vmatpush1.msra.mxu0 %v3251
    %3253 = vmatprep.subr.mxu0 0.0
    %3254 = vmatpush1.msra.mxu0 0.0
    %3255 = vmatprep.subr.mxu0 0.0
    %3256 = vmatpush1.msra.mxu0 0.0
    %3257 = vmatprep.subr.mxu0 0.0
    %3258 = vmatpush1.msra.mxu0 0.0
    %3259 = vmatprep.subr.mxu0 0.0
    %3260 = vmatpush1.msra.mxu0 0.0
    %3261 = vmatprep.subr.mxu0 0.0
    %3262 = vmatpush1.msra.mxu0 0.0
    %3263 = vmatprep.subr.mxu0 0.0
    %3264 = vmatpush1.msra.mxu0 0.0
    %3265 = vmatprep.subr.mxu0 0.0
    %3266 = vmatpush1.msra.mxu0 0.0
    %3267 = vmatprep.subr.mxu0 0.0
    %3268 = vmatpush1.msra.mxu0 0.0
    %3269 = vmatprep.subr.mxu0 0.0
    %3270 = vmatpush1.msra.mxu0 0.0
    %3271 = vmatprep.subr.mxu0 0.0
    %3272 = vmatpush1.msra.mxu0 0.0
    %3273 = vmatprep.subr.mxu0 0.0
    %3274 = vmatpush1.msra.mxu0 0.0
    %3275 = vmatprep.subr.mxu0 0.0
    %3276 = vmatpush1.msra.mxu0 0.0
    %3277 = vmatprep.subr.mxu0 0.0
    %3278 = vmatpush1.msra.mxu0 0.0
    %3279 = vmatprep.subr.mxu0 0.0
    %3280 = vmatpush1.msra.mxu0 0.0
    %3281 = vmatprep.subr.mxu0 0.0
    %3282 = vmatpush1.msra.mxu0 0.0
    %3283 = vmatprep.subr.mxu0 0.0
    %3284 = vmatpush1.msra.mxu0 0.0
    %3285 = vmatprep.subr.mxu0 0.0
    %3286 = vmatpush1.msra.mxu0 0.0
    %3287 = vmatprep.subr.mxu0 0.0
    %3288 = vmatpush1.msra.mxu0 0.0
    %3289 = vmatprep.subr.mxu0 0.0
    %3290 = vmatpush1.msra.mxu0 0.0
    %3291 = vmatprep.subr.mxu0 0.0
    %3292 = vmatpush1.msra.mxu0 0.0
    %3293 = vmatprep.subr.mxu0 0.0
    %3294 = vmatpush1.msra.mxu0 0.0
    %3295 = vmatprep.subr.mxu0 0.0
    %3296 = vmatpush1.msra.mxu0 0.0
    %3297 = vmatprep.subr.mxu0 0.0
    %3298 = vmatpush1.msra.mxu0 0.0
    %3299 = vmatprep.subr.mxu0 0.0
    %3300 = vmatpush1.msra.mxu0 0.0
    %3301 = vmatprep.mubr.f32.mxu0 0.0
    %v3302 = vand.u32 %v3219, 4294901760
    %v3303 = vsub.f32 %v3219, %v3302
    %v3304 = vand.u32 %v3303, 4294901760
    %v3305 = vsub.f32 %v3303, %v3304
    %v3306 = vand.u32 %v3305, 4294901760
    %3307 = vmatmul.mubr.f32.gmra.mrb[0].mxu0 %v3306
    %v3308 = vpop.f32.mrb[0].mxu0
    %v3309 = vadd.f32 0.0, %v3308
    %v3310 = vpop.f32.mrb[0].mxu0
    %v3311 = vadd.f32 0.0, %v3310
    %3312 = vdwg.mxu0
    %v3313 = vand.u32 %v3210, 4294901760
    %v3314 = vsub.f32 %v3210, %v3313
    %v3315 = vand.u32 %v3314, 4294901760
    %v3316 = vsub.f32 %v3314, %v3315
    %v3317 = vand.u32 %v3316, 4294901760
    %3318 = vmatprep.subr.mxu0 %v3317
    %v3319 = vand.u32 %v3154, 4294901760
    %v3320 = vsub.f32 %v3154, %v3319
    %v3321 = vand.u32 %v3320, 4294901760
    %v3322 = vsub.f32 %v3320, %v3321
    %v3323 = vand.u32 %v3322, 4294901760
    %3324 = vmatpush1.msra.mxu0 %v3323
    %v3325 = vand.u32 %v3211, 4294901760
    %v3326 = vsub.f32 %v3211, %v3325
    %v3327 = vand.u32 %v3326, 4294901760
    %v3328 = vsub.f32 %v3326, %v3327
    %v3329 = vand.u32 %v3328, 4294901760
    %3330 = vmatprep.subr.mxu0 %v3329
    %v3331 = vand.u32 %v3155, 4294901760
    %v3332 = vsub.f32 %v3155, %v3331
    %v3333 = vand.u32 %v3332, 4294901760
    %v3334 = vsub.f32 %v3332, %v3333
    %v3335 = vand.u32 %v3334, 4294901760
    %3336 = vmatpush1.msra.mxu0 %v3335
    %v3337 = vand.u32 %v3212, 4294901760
    %v3338 = vsub.f32 %v3212, %v3337
    %v3339 = vand.u32 %v3338, 4294901760
    %v3340 = vsub.f32 %v3338, %v3339
    %v3341 = vand.u32 %v3340, 4294901760
    %3342 = vmatprep.subr.mxu0 %v3341
    %v3343 = vand.u32 %v3156, 4294901760
    %v3344 = vsub.f32 %v3156, %v3343
    %v3345 = vand.u32 %v3344, 4294901760
    %v3346 = vsub.f32 %v3344, %v3345
    %v3347 = vand.u32 %v3346, 4294901760
    %3348 = vmatpush1.msra.mxu0 %v3347
    %v3349 = vand.u32 %v3213, 4294901760
    %v3350 = vsub.f32 %v3213, %v3349
    %v3351 = vand.u32 %v3350, 4294901760
    %v3352 = vsub.f32 %v3350, %v3351
    %v3353 = vand.u32 %v3352, 4294901760
    %3354 = vmatprep.subr.mxu0 %v3353
    %v3355 = vand.u32 %v3157, 4294901760
    %v3356 = vsub.f32 %v3157, %v3355
    %v3357 = vand.u32 %v3356, 4294901760
    %v3358 = vsub.f32 %v3356, %v3357
    %v3359 = vand.u32 %v3358, 4294901760
    %3360 = vmatpush1.msra.mxu0 %v3359
    %v3361 = vand.u32 %v3214, 4294901760
    %v3362 = vsub.f32 %v3214, %v3361
    %v3363 = vand.u32 %v3362, 4294901760
    %v3364 = vsub.f32 %v3362, %v3363
    %v3365 = vand.u32 %v3364, 4294901760
    %3366 = vmatprep.subr.mxu0 %v3365
    %v3367 = vand.u32 %v3158, 4294901760
    %v3368 = vsub.f32 %v3158, %v3367
    %v3369 = vand.u32 %v3368, 4294901760
    %v3370 = vsub.f32 %v3368, %v3369
    %v3371 = vand.u32 %v3370, 4294901760
    %3372 = vmatpush1.msra.mxu0 %v3371
    %v3373 = vand.u32 %v3215, 4294901760
    %v3374 = vsub.f32 %v3215, %v3373
    %v3375 = vand.u32 %v3374, 4294901760
    %v3376 = vsub.f32 %v3374, %v3375
    %v3377 = vand.u32 %v3376, 4294901760
    %3378 = vmatprep.subr.mxu0 %v3377
    %v3379 = vand.u32 %v3159, 4294901760
    %v3380 = vsub.f32 %v3159, %v3379
    %v3381 = vand.u32 %v3380, 4294901760
    %v3382 = vsub.f32 %v3380, %v3381
    %v3383 = vand.u32 %v3382, 4294901760
    %3384 = vmatpush1.msra.mxu0 %v3383
    %v3385 = vand.u32 %v3216, 4294901760
    %v3386 = vsub.f32 %v3216, %v3385
    %v3387 = vand.u32 %v3386, 4294901760
    %v3388 = vsub.f32 %v3386, %v3387
    %v3389 = vand.u32 %v3388, 4294901760
    %3390 = vmatprep.subr.mxu0 %v3389
    %v3391 = vand.u32 %v3160, 4294901760
    %v3392 = vsub.f32 %v3160, %v3391
    %v3393 = vand.u32 %v3392, 4294901760
    %v3394 = vsub.f32 %v3392, %v3393
    %v3395 = vand.u32 %v3394, 4294901760
    %3396 = vmatpush1.msra.mxu0 %v3395
    %v3397 = vand.u32 %v3217, 4294901760
    %v3398 = vsub.f32 %v3217, %v3397
    %v3399 = vand.u32 %v3398, 4294901760
    %v3400 = vsub.f32 %v3398, %v3399
    %v3401 = vand.u32 %v3400, 4294901760
    %3402 = vmatprep.subr.mxu0 %v3401
    %v3403 = vand.u32 %v3161, 4294901760
    %v3404 = vsub.f32 %v3161, %v3403
    %v3405 = vand.u32 %v3404, 4294901760
    %v3406 = vsub.f32 %v3404, %v3405
    %v3407 = vand.u32 %v3406, 4294901760
    %3408 = vmatpush1.msra.mxu0 %v3407
    %3409 = vmatprep.subr.mxu0 0.0
    %3410 = vmatpush1.msra.mxu0 0.0
    %3411 = vmatprep.subr.mxu0 0.0
    %3412 = vmatpush1.msra.mxu0 0.0
    %3413 = vmatprep.subr.mxu0 0.0
    %3414 = vmatpush1.msra.mxu0 0.0
    %3415 = vmatprep.subr.mxu0 0.0
    %3416 = vmatpush1.msra.mxu0 0.0
    %3417 = vmatprep.subr.mxu0 0.0
    %3418 = vmatpush1.msra.mxu0 0.0
    %3419 = vmatprep.subr.mxu0 0.0
    %3420 = vmatpush1.msra.mxu0 0.0
    %3421 = vmatprep.subr.mxu0 0.0
    %3422 = vmatpush1.msra.mxu0 0.0
    %3423 = vmatprep.subr.mxu0 0.0
    %3424 = vmatpush1.msra.mxu0 0.0
    %3425 = vmatprep.subr.mxu0 0.0
    %3426 = vmatpush1.msra.mxu0 0.0
    %3427 = vmatprep.subr.mxu0 0.0
    %3428 = vmatpush1.msra.mxu0 0.0
    %3429 = vmatprep.subr.mxu0 0.0
    %3430 = vmatpush1.msra.mxu0 0.0
    %3431 = vmatprep.subr.mxu0 0.0
    %3432 = vmatpush1.msra.mxu0 0.0
    %3433 = vmatprep.subr.mxu0 0.0
    %3434 = vmatpush1.msra.mxu0 0.0
    %3435 = vmatprep.subr.mxu0 0.0
    %3436 = vmatpush1.msra.mxu0 0.0
    %3437 = vmatprep.subr.mxu0 0.0
    %3438 = vmatpush1.msra.mxu0 0.0
    %3439 = vmatprep.subr.mxu0 0.0
    %3440 = vmatpush1.msra.mxu0 0.0
    %3441 = vmatprep.subr.mxu0 0.0
    %3442 = vmatpush1.msra.mxu0 0.0
    %3443 = vmatprep.subr.mxu0 0.0
    %3444 = vmatpush1.msra.mxu0 0.0
    %3445 = vmatprep.subr.mxu0 0.0
    %3446 = vmatpush1.msra.mxu0 0.0
    %3447 = vmatprep.subr.mxu0 0.0
    %3448 = vmatpush1.msra.mxu0 0.0
    %3449 = vmatprep.subr.mxu0 0.0
    %3450 = vmatpush1.msra.mxu0 0.0
    %3451 = vmatprep.subr.mxu0 0.0
    %3452 = vmatpush1.msra.mxu0 0.0
    %3453 = vmatprep.subr.mxu0 0.0
    %3454 = vmatpush1.msra.mxu0 0.0
    %3455 = vmatprep.subr.mxu0 0.0
    %3456 = vmatpush1.msra.mxu0 0.0
    %3457 = vmatprep.mubr.f32.mxu0 0.0
    %v3458 = vand.u32 %v3219, 4294901760
    %3459 = vmatmul.mubr.f32.gmra.mrb[0].mxu0 %v3458
    %v3460 = vpop.f32.mrb[0].mxu0
    %v3461 = vadd.f32 %v3309, %v3460
    %v3462 = vpop.f32.mrb[0].mxu0
    %v3463 = vadd.f32 %v3311, %v3462
    %3464 = vdwg.mxu0
    %v3465 = vand.u32 %v3210, 4294901760
    %v3466 = vsub.f32 %v3210, %v3465
    %3467 = vmatprep.subr.mxu0 %v3466
    %v3468 = vand.u32 %v3154, 4294901760
    %v3469 = vsub.f32 %v3154, %v3468
    %3470 = vmatpush1.msra.mxu0 %v3469
    %v3471 = vand.u32 %v3211, 4294901760
    %v3472 = vsub.f32 %v3211, %v3471
    %3473 = vmatprep.subr.mxu0 %v3472
    %v3474 = vand.u32 %v3155, 4294901760
    %v3475 = vsub.f32 %v3155, %v3474
    %3476 = vmatpush1.msra.mxu0 %v3475
    %v3477 = vand.u32 %v3212, 4294901760
    %v3478 = vsub.f32 %v3212, %v3477
    %3479 = vmatprep.subr.mxu0 %v3478
    %v3480 = vand.u32 %v3156, 4294901760
    %v3481 = vsub.f32 %v3156, %v3480
    %3482 = vmatpush1.msra.mxu0 %v3481
    %v3483 = vand.u32 %v3213, 4294901760
    %v3484 = vsub.f32 %v3213, %v3483
    %3485 = vmatprep.subr.mxu0 %v3484
    %v3486 = vand.u32 %v3157, 4294901760
    %v3487 = vsub.f32 %v3157, %v3486
    %3488 = vmatpush1.msra.mxu0 %v3487
    %v3489 = vand.u32 %v3214, 4294901760
    %v3490 = vsub.f32 %v3214, %v3489
    %3491 = vmatprep.subr.mxu0 %v3490
    %v3492 = vand.u32 %v3158, 4294901760
    %v3493 = vsub.f32 %v3158, %v3492
    %3494 = vmatpush1.msra.mxu0 %v3493
    %v3495 = vand.u32 %v3215, 4294901760
    %v3496 = vsub.f32 %v3215, %v3495
    %3497 = vmatprep.subr.mxu0 %v3496
    %v3498 = vand.u32 %v3159, 4294901760
    %v3499 = vsub.f32 %v3159, %v3498
    %3500 = vmatpush1.msra.mxu0 %v3499
    %v3501 = vand.u32 %v3216, 4294901760
    %v3502 = vsub.f32 %v3216, %v3501
    %3503 = vmatprep.subr.mxu0 %v3502
    %v3504 = vand.u32 %v3160, 4294901760
    %v3505 = vsub.f32 %v3160, %v3504
    %3506 = vmatpush1.msra.mxu0 %v3505
    %v3507 = vand.u32 %v3217, 4294901760
    %v3508 = vsub.f32 %v3217, %v3507
    %3509 = vmatprep.subr.mxu0 %v3508
    %v3510 = vand.u32 %v3161, 4294901760
    %v3511 = vsub.f32 %v3161, %v3510
    %3512 = vmatpush1.msra.mxu0 %v3511
    %3513 = vmatprep.subr.mxu0 0.0
    %3514 = vmatpush1.msra.mxu0 0.0
    %3515 = vmatprep.subr.mxu0 0.0
    %3516 = vmatpush1.msra.mxu0 0.0
    %3517 = vmatprep.subr.mxu0 0.0
    %3518 = vmatpush1.msra.mxu0 0.0
    %3519 = vmatprep.subr.mxu0 0.0
    %3520 = vmatpush1.msra.mxu0 0.0
    %3521 = vmatprep.subr.mxu0 0.0
    %3522 = vmatpush1.msra.mxu0 0.0
    %3523 = vmatprep.subr.mxu0 0.0
    %3524 = vmatpush1.msra.mxu0 0.0
    %3525 = vmatprep.subr.mxu0 0.0
    %3526 = vmatpush1.msra.mxu0 0.0
    %3527 = vmatprep.subr.mxu0 0.0
    %3528 = vmatpush1.msra.mxu0 0.0
    %3529 = vmatprep.subr.mxu0 0.0
    %3530 = vmatpush1.msra.mxu0 0.0
    %3531 = vmatprep.subr.mxu0 0.0
    %3532 = vmatpush1.msra.mxu0 0.0
    %3533 = vmatprep.subr.mxu0 0.0
    %3534 = vmatpush1.msra.mxu0 0.0
    %3535 = vmatprep.subr.mxu0 0.0
    %3536 = vmatpush1.msra.mxu0 0.0
    %3537 = vmatprep.subr.mxu0 0.0
    %3538 = vmatpush1.msra.mxu0 0.0
    %3539 = vmatprep.subr.mxu0 0.0
    %3540 = vmatpush1.msra.mxu0 0.0
    %3541 = vmatprep.subr.mxu0 0.0
    %3542 = vmatpush1.msra.mxu0 0.0
    %3543 = vmatprep.subr.mxu0 0.0
    %3544 = vmatpush1.msra.mxu0 0.0
    %3545 = vmatprep.subr.mxu0 0.0
    %3546 = vmatpush1.msra.mxu0 0.0
    %3547 = vmatprep.subr.mxu0 0.0
    %3548 = vmatpush1.msra.mxu0 0.0
    %3549 = vmatprep.subr.mxu0 0.0
    %3550 = vmatpush1.msra.mxu0 0.0
    %3551 = vmatprep.subr.mxu0 0.0
    %3552 = vmatpush1.msra.mxu0 0.0
    %3553 = vmatprep.subr.mxu0 0.0
    %3554 = vmatpush1.msra.mxu0 0.0
    %3555 = vmatprep.subr.mxu0 0.0
    %3556 = vmatpush1.msra.mxu0 0.0
    %3557 = vmatprep.subr.mxu0 0.0
    %3558 = vmatpush1.msra.mxu0 0.0
    %3559 = vmatprep.subr.mxu0 0.0
    %3560 = vmatpush1.msra.mxu0 0.0
    %3561 = vmatprep.mubr.f32.mxu0 0.0
    %v3562 = vand.u32 %v3219, 4294901760
    %v3563 = vsub.f32 %v3219, %v3562
    %3564 = vmatmul.mubr.f32.gmra.mrb[0].mxu0 %v3563
    %v3565 = vpop.f32.mrb[0].mxu0
    %v3566 = vadd.f32 %v3461, %v3565
    %v3567 = vpop.f32.mrb[0].mxu0
    %v3568 = vadd.f32 %v3463, %v3567
    %3569 = vdwg.mxu0
    %v3570 = vand.u32 %v3210, 4294901760
    %3571 = vmatprep.subr.mxu0 %v3570
    %v3572 = vand.u32 %v3154, 4294901760
    %3573 = vmatpush1.msra.mxu0 %v3572
    %v3574 = vand.u32 %v3211, 4294901760
    %3575 = vmatprep.subr.mxu0 %v3574
    %v3576 = vand.u32 %v3155, 4294901760
    %3577 = vmatpush1.msra.mxu0 %v3576
    %v3578 = vand.u32 %v3212, 4294901760
    %3579 = vmatprep.subr.mxu0 %v3578
    %v3580 = vand.u32 %v3156, 4294901760
    %3581 = vmatpush1.msra.mxu0 %v3580
    %v3582 = vand.u32 %v3213, 4294901760
    %3583 = vmatprep.subr.mxu0 %v3582
    %v3584 = vand.u32 %v3157, 4294901760
    %3585 = vmatpush1.msra.mxu0 %v3584
    %v3586 = vand.u32 %v3214, 4294901760
    %3587 = vmatprep.subr.mxu0 %v3586
    %v3588 = vand.u32 %v3158, 4294901760
    %3589 = vmatpush1.msra.mxu0 %v3588
    %v3590 = vand.u32 %v3215, 4294901760
    %3591 = vmatprep.subr.mxu0 %v3590
    %v3592 = vand.u32 %v3159, 4294901760
    %3593 = vmatpush1.msra.mxu0 %v3592
    %v3594 = vand.u32 %v3216, 4294901760
    %3595 = vmatprep.subr.mxu0 %v3594
    %v3596 = vand.u32 %v3160, 4294901760
    %3597 = vmatpush1.msra.mxu0 %v3596
    %v3598 = vand.u32 %v3217, 4294901760
    %3599 = vmatprep.subr.mxu0 %v3598
    %v3600 = vand.u32 %v3161, 4294901760
    %3601 = vmatpush1.msra.mxu0 %v3600
    %3602 = vmatprep.subr.mxu0 0.0
    %3603 = vmatpush1.msra.mxu0 0.0
    %3604 = vmatprep.subr.mxu0 0.0
    %3605 = vmatpush1.msra.mxu0 0.0
    %3606 = vmatprep.subr.mxu0 0.0
    %3607 = vmatpush1.msra.mxu0 0.0
    %3608 = vmatprep.subr.mxu0 0.0
    %3609 = vmatpush1.msra.mxu0 0.0
    %3610 = vmatprep.subr.mxu0 0.0
    %3611 = vmatpush1.msra.mxu0 0.0
    %3612 = vmatprep.subr.mxu0 0.0
    %3613 = vmatpush1.msra.mxu0 0.0
    %3614 = vmatprep.subr.mxu0 0.0
    %3615 = vmatpush1.msra.mxu0 0.0
    %3616 = vmatprep.subr.mxu0 0.0
    %3617 = vmatpush1.msra.mxu0 0.0
    %3618 = vmatprep.subr.mxu0 0.0
    %3619 = vmatpush1.msra.mxu0 0.0
    %3620 = vmatprep.subr.mxu0 0.0
    %3621 = vmatpush1.msra.mxu0 0.0
    %3622 = vmatprep.subr.mxu0 0.0
    %3623 = vmatpush1.msra.mxu0 0.0
    %3624 = vmatprep.subr.mxu0 0.0
    %3625 = vmatpush1.msra.mxu0 0.0
    %3626 = vmatprep.subr.mxu0 0.0
    %3627 = vmatpush1.msra.mxu0 0.0
    %3628 = vmatprep.subr.mxu0 0.0
    %3629 = vmatpush1.msra.mxu0 0.0
    %3630 = vmatprep.subr.mxu0 0.0
    %3631 = vmatpush1.msra.mxu0 0.0
    %3632 = vmatprep.subr.mxu0 0.0
    %3633 = vmatpush1.msra.mxu0 0.0
    %3634 = vmatprep.subr.mxu0 0.0
    %3635 = vmatpush1.msra.mxu0 0.0
    %3636 = vmatprep.subr.mxu0 0.0
    %3637 = vmatpush1.msra.mxu0 0.0
    %3638 = vmatprep.subr.mxu0 0.0
    %3639 = vmatpush1.msra.mxu0 0.0
    %3640 = vmatprep.subr.mxu0 0.0
    %3641 = vmatpush1.msra.mxu0 0.0
    %3642 = vmatprep.subr.mxu0 0.0
    %3643 = vmatpush1.msra.mxu0 0.0
    %3644 = vmatprep.subr.mxu0 0.0
    %3645 = vmatpush1.msra.mxu0 0.0
    %3646 = vmatprep.subr.mxu0 0.0
    %3647 = vmatpush1.msra.mxu0 0.0
    %3648 = vmatprep.subr.mxu0 0.0
    %3649 = vmatpush1.msra.mxu0 0.0
    %3650 = vmatprep.mubr.f32.mxu0 0.0
    %v3651 = vand.u32 %v3219, 4294901760
    %v3652 = vsub.f32 %v3219, %v3651
    %v3653 = vand.u32 %v3652, 4294901760
    %3654 = vmatmul.mubr.f32.gmra.mrb[0].mxu0 %v3653
    %v3655 = vpop.f32.mrb[0].mxu0
    %v3656 = vadd.f32 %v3566, %v3655
    %v3657 = vpop.f32.mrb[0].mxu0
    %v3658 = vadd.f32 %v3568, %v3657
    %3659 = vdwg.mxu0
    %v3660 = vand.u32 %v3210, 4294901760
    %v3661 = vsub.f32 %v3210, %v3660
    %v3662 = vand.u32 %v3661, 4294901760
    %3663 = vmatprep.subr.mxu0 %v3662
    %v3664 = vand.u32 %v3154, 4294901760
    %v3665 = vsub.f32 %v3154, %v3664
    %v3666 = vand.u32 %v3665, 4294901760
    %3667 = vmatpush1.msra.mxu0 %v3666
    %v3668 = vand.u32 %v3211, 4294901760
    %v3669 = vsub.f32 %v3211, %v3668
    %v3670 = vand.u32 %v3669, 4294901760
    %3671 = vmatprep.subr.mxu0 %v3670
    %v3672 = vand.u32 %v3155, 4294901760
    %v3673 = vsub.f32 %v3155, %v3672
    %v3674 = vand.u32 %v3673, 4294901760
    %3675 = vmatpush1.msra.mxu0 %v3674
    %v3676 = vand.u32 %v3212, 4294901760
    %v3677 = vsub.f32 %v3212, %v3676
    %v3678 = vand.u32 %v3677, 4294901760
    %3679 = vmatprep.subr.mxu0 %v3678
    %v3680 = vand.u32 %v3156, 4294901760
    %v3681 = vsub.f32 %v3156, %v3680
    %v3682 = vand.u32 %v3681, 4294901760
    %3683 = vmatpush1.msra.mxu0 %v3682
    %v3684 = vand.u32 %v3213, 4294901760
    %v3685 = vsub.f32 %v3213, %v3684
    %v3686 = vand.u32 %v3685, 4294901760
    %3687 = vmatprep.subr.mxu0 %v3686
    %v3688 = vand.u32 %v3157, 4294901760
    %v3689 = vsub.f32 %v3157, %v3688
    %v3690 = vand.u32 %v3689, 4294901760
    %3691 = vmatpush1.msra.mxu0 %v3690
    %v3692 = vand.u32 %v3214, 4294901760
    %v3693 = vsub.f32 %v3214, %v3692
    %v3694 = vand.u32 %v3693, 4294901760
    %3695 = vmatprep.subr.mxu0 %v3694
    %v3696 = vand.u32 %v3158, 4294901760
    %v3697 = vsub.f32 %v3158, %v3696
    %v3698 = vand.u32 %v3697, 4294901760
    %3699 = vmatpush1.msra.mxu0 %v3698
    %v3700 = vand.u32 %v3215, 4294901760
    %v3701 = vsub.f32 %v3215, %v3700
    %v3702 = vand.u32 %v3701, 4294901760
    %3703 = vmatprep.subr.mxu0 %v3702
    %v3704 = vand.u32 %v3159, 4294901760
    %v3705 = vsub.f32 %v3159, %v3704
    %v3706 = vand.u32 %v3705, 4294901760
    %3707 = vmatpush1.msra.mxu0 %v3706
    %v3708 = vand.u32 %v3216, 4294901760
    %v3709 = vsub.f32 %v3216, %v3708
    %v3710 = vand.u32 %v3709, 4294901760
    %3711 = vmatprep.subr.mxu0 %v3710
    %v3712 = vand.u32 %v3160, 4294901760
    %v3713 = vsub.f32 %v3160, %v3712
    %v3714 = vand.u32 %v3713, 4294901760
    %3715 = vmatpush1.msra.mxu0 %v3714
    %v3716 = vand.u32 %v3217, 4294901760
    %v3717 = vsub.f32 %v3217, %v3716
    %v3718 = vand.u32 %v3717, 4294901760
    %3719 = vmatprep.subr.mxu0 %v3718
    %v3720 = vand.u32 %v3161, 4294901760
    %v3721 = vsub.f32 %v3161, %v3720
    %v3722 = vand.u32 %v3721, 4294901760
    %3723 = vmatpush1.msra.mxu0 %v3722
    %3724 = vmatprep.subr.mxu0 0.0
    %3725 = vmatpush1.msra.mxu0 0.0
    %3726 = vmatprep.subr.mxu0 0.0
    %3727 = vmatpush1.msra.mxu0 0.0
    %3728 = vmatprep.subr.mxu0 0.0
    %3729 = vmatpush1.msra.mxu0 0.0
    %3730 = vmatprep.subr.mxu0 0.0
    %3731 = vmatpush1.msra.mxu0 0.0
    %3732 = vmatprep.subr.mxu0 0.0
    %3733 = vmatpush1.msra.mxu0 0.0
    %3734 = vmatprep.subr.mxu0 0.0
    %3735 = vmatpush1.msra.mxu0 0.0
    %3736 = vmatprep.subr.mxu0 0.0
    %3737 = vmatpush1.msra.mxu0 0.0
    %3738 = vmatprep.subr.mxu0 0.0
    %3739 = vmatpush1.msra.mxu0 0.0
    %3740 = vmatprep.subr.mxu0 0.0
    %3741 = vmatpush1.msra.mxu0 0.0
    %3742 = vmatprep.subr.mxu0 0.0
    %3743 = vmatpush1.msra.mxu0 0.0
    %3744 = vmatprep.subr.mxu0 0.0
    %3745 = vmatpush1.msra.mxu0 0.0
    %3746 = vmatprep.subr.mxu0 0.0
    %3747 = vmatpush1.msra.mxu0 0.0
    %3748 = vmatprep.subr.mxu0 0.0
    %3749 = vmatpush1.msra.mxu0 0.0
    %3750 = vmatprep.subr.mxu0 0.0
    %3751 = vmatpush1.msra.mxu0 0.0
    %3752 = vmatprep.subr.mxu0 0.0
    %3753 = vmatpush1.msra.mxu0 0.0
    %3754 = vmatprep.subr.mxu0 0.0
    %3755 = vmatpush1.msra.mxu0 0.0
    %3756 = vmatprep.subr.mxu0 0.0
    %3757 = vmatpush1.msra.mxu0 0.0
    %3758 = vmatprep.subr.mxu0 0.0
    %3759 = vmatpush1.msra.mxu0 0.0
    %3760 = vmatprep.subr.mxu0 0.0
    %3761 = vmatpush1.msra.mxu0 0.0
    %3762 = vmatprep.subr.mxu0 0.0
    %3763 = vmatpush1.msra.mxu0 0.0
    %3764 = vmatprep.subr.mxu0 0.0
    %3765 = vmatpush1.msra.mxu0 0.0
    %3766 = vmatprep.subr.mxu0 0.0
    %3767 = vmatpush1.msra.mxu0 0.0
    %3768 = vmatprep.subr.mxu0 0.0
    %3769 = vmatpush1.msra.mxu0 0.0
    %3770 = vmatprep.subr.mxu0 0.0
    %3771 = vmatpush1.msra.mxu0 0.0
    %3772 = vmatprep.mubr.f32.mxu0 0.0
    %v3773 = vand.u32 %v3219, 4294901760
    %3774 = vmatmul.mubr.f32.gmra.mrb[0].mxu0 %v3773
    %v3775 = vpop.f32.mrb[0].mxu0
    %v3776 = vadd.f32 %v3656, %v3775
    %v3777 = vpop.f32.mrb[0].mxu0
    %v3778 = vadd.f32 %v3658, %v3777
    %3779 = vdwg.mxu0
    %v3780 = vand.u32 %v3210, 4294901760
    %3781 = vmatprep.subr.mxu0 %v3780
    %v3782 = vand.u32 %v3154, 4294901760
    %3783 = vmatpush1.msra.mxu0 %v3782
    %v3784 = vand.u32 %v3211, 4294901760
    %3785 = vmatprep.subr.mxu0 %v3784
    %v3786 = vand.u32 %v3155, 4294901760
    %3787 = vmatpush1.msra.mxu0 %v3786
    %v3788 = vand.u32 %v3212, 4294901760
    %3789 = vmatprep.subr.mxu0 %v3788
    %v3790 = vand.u32 %v3156, 4294901760
    %3791 = vmatpush1.msra.mxu0 %v3790
    %v3792 = vand.u32 %v3213, 4294901760
    %3793 = vmatprep.subr.mxu0 %v3792
    %v3794 = vand.u32 %v3157, 4294901760
    %3795 = vmatpush1.msra.mxu0 %v3794
    %v3796 = vand.u32 %v3214, 4294901760
    %3797 = vmatprep.subr.mxu0 %v3796
    %v3798 = vand.u32 %v3158, 4294901760
    %3799 = vmatpush1.msra.mxu0 %v3798
    %v3800 = vand.u32 %v3215, 4294901760
    %3801 = vmatprep.subr.mxu0 %v3800
    %v3802 = vand.u32 %v3159, 4294901760
    %3803 = vmatpush1.msra.mxu0 %v3802
    %v3804 = vand.u32 %v3216, 4294901760
    %3805 = vmatprep.subr.mxu0 %v3804
    %v3806 = vand.u32 %v3160, 4294901760
    %3807 = vmatpush1.msra.mxu0 %v3806
    %v3808 = vand.u32 %v3217, 4294901760
    %3809 = vmatprep.subr.mxu0 %v3808
    %v3810 = vand.u32 %v3161, 4294901760
    %3811 = vmatpush1.msra.mxu0 %v3810
    %3812 = vmatprep.subr.mxu0 0.0
    %3813 = vmatpush1.msra.mxu0 0.0
    %3814 = vmatprep.subr.mxu0 0.0
    %3815 = vmatpush1.msra.mxu0 0.0
    %3816 = vmatprep.subr.mxu0 0.0
    %3817 = vmatpush1.msra.mxu0 0.0
    %3818 = vmatprep.subr.mxu0 0.0
    %3819 = vmatpush1.msra.mxu0 0.0
    %3820 = vmatprep.subr.mxu0 0.0
    %3821 = vmatpush1.msra.mxu0 0.0
    %3822 = vmatprep.subr.mxu0 0.0
    %3823 = vmatpush1.msra.mxu0 0.0
    %3824 = vmatprep.subr.mxu0 0.0
    %3825 = vmatpush1.msra.mxu0 0.0
    %3826 = vmatprep.subr.mxu0 0.0
    %3827 = vmatpush1.msra.mxu0 0.0
    %3828 = vmatprep.subr.mxu0 0.0
    %3829 = vmatpush1.msra.mxu0 0.0
    %3830 = vmatprep.subr.mxu0 0.0
    %3831 = vmatpush1.msra.mxu0 0.0
    %3832 = vmatprep.subr.mxu0 0.0
    %3833 = vmatpush1.msra.mxu0 0.0
    %3834 = vmatprep.subr.mxu0 0.0
    %3835 = vmatpush1.msra.mxu0 0.0
    %3836 = vmatprep.subr.mxu0 0.0
    %3837 = vmatpush1.msra.mxu0 0.0
    %3838 = vmatprep.subr.mxu0 0.0
    %3839 = vmatpush1.msra.mxu0 0.0
    %3840 = vmatprep.subr.mxu0 0.0
    %3841 = vmatpush1.msra.mxu0 0.0
    %3842 = vmatprep.subr.mxu0 0.0
    %3843 = vmatpush1.msra.mxu0 0.0
    %3844 = vmatprep.subr.mxu0 0.0
    %3845 = vmatpush1.msra.mxu0 0.0
    %3846 = vmatprep.subr.mxu0 0.0
    %3847 = vmatpush1.msra.mxu0 0.0
    %3848 = vmatprep.subr.mxu0 0.0
    %3849 = vmatpush1.msra.mxu0 0.0
    %3850 = vmatprep.subr.mxu0 0.0
    %3851 = vmatpush1.msra.mxu0 0.0
    %3852 = vmatprep.subr.mxu0 0.0
    %3853 = vmatpush1.msra.mxu0 0.0
    %3854 = vmatprep.subr.mxu0 0.0
    %3855 = vmatpush1.msra.mxu0 0.0
    %3856 = vmatprep.subr.mxu0 0.0
    %3857 = vmatpush1.msra.mxu0 0.0
    %3858 = vmatprep.subr.mxu0 0.0
    %3859 = vmatpush1.msra.mxu0 0.0
    %3860 = vmatprep.mubr.f32.mxu0 0.0
    %v3861 = vand.u32 %v3219, 4294901760
    %3862 = vmatmul.mubr.f32.gmra.mrb[0].mxu0 %v3861
    %v3863 = vpop.f32.mrb[0].mxu0
    %v3864 = vadd.f32 %v3776, %v3863
    %v3865 = vpop.f32.mrb[0].mxu0
    %v3866 = vadd.f32 %v3778, %v3865
    %3867 = vdwg.mxu0
    %v3870 = vcombine.low %v3864, %v3866
    %3872 = vst [vmem:[#allocation4] sm:$0xff] %v3870
    // Predicated region
    $region30: #{quadratic_net2_forward.1} parent=1 // pred_check
      _
    $region31: #{quadratic_net2_forward.1} parent=1 // pred_check_branch
      %3874 = sbr.rel (0) target = $region33
    $region32: #{quadratic_net2_forward.1} parent=1 // pred_region
      %s3876 = ssub.s32 128, 128
      %3877 = vsyncadd [#allocation3], %s3876
      %s3879 = sshll.u32 [#allocation2], 4
      %s3880 = int_to_ptr.vmem [resolvable:$true] %s3879
      %3882 = dma.vmem_to_hbm [thread:$0]  %s3880, 128, %s7, [#allocation3]
    $region33: #{quadratic_net2_forward.1} parent=1 // pred_fallthru
      _
    // Predicated region
    $region34: #{quadratic_net2_forward.1} parent=1 // pred_check
      _
    $region35: #{quadratic_net2_forward.1} parent=1 // pred_check_branch
      %3884 = sbr.rel (0) target = $region37
    $region36: #{quadratic_net2_forward.1} parent=1 // pred_region
      %s3886 = ssub.s32 128, 128
      %3887 = vsyncadd [#allocation5], %s3886
      %s3889 = sshll.u32 [#allocation4], 4
      %s3890 = int_to_ptr.vmem [resolvable:$true] %s3889
      %3892 = dma.vmem_to_hbm [thread:$0]  %s3890, 128, %s8, [#allocation5]
    $region37: #{quadratic_net2_forward.1} parent=1 // pred_fallthru
      _
    // Predicated region
    $region38: #{quadratic_net2_forward.1} parent=1 // pred_check
      _
    $region39: #{quadratic_net2_forward.1} parent=1 // pred_check_branch
      %3894 = sbr.rel (0) target = $region41
    $region40: #{quadratic_net2_forward.1} parent=1 // pred_region
      %3895 = dma.done [#allocation3], 128
    $region41: #{quadratic_net2_forward.1} parent=1 // pred_fallthru
      _
    // Predicated region
    $region42: #{quadratic_net2_forward.1} parent=1 // pred_check
      _
    $region43: #{quadratic_net2_forward.1} parent=1 // pred_check_branch
      %3897 = sbr.rel (0) target = $region45
    $region44: #{quadratic_net2_forward.1} parent=1 // pred_region
      %3898 = dma.done [#allocation5], 128
    $region45: #{quadratic_net2_forward.1} parent=1 // pred_fallthru
      _
    %3899 = vsyncpa [#allocation3], 1
    %3900 = vsyncpa [#allocation5], 1

</llo_original>
